<compile_context>
chip_gen: v6e
topology: v6e:2x2x1
jax: 0.10.0
libtpu: 0.0.40
codegen_flags: <defaults>
</compile_context>

<pallas_src>
import jax
import jax.numpy as jnp
from jax.experimental import pallas as pl
from jax.experimental.pallas import tpu as pltpu

DIM_RUIDO = 64
DIM_OCULTA = 128
DIM_IMG = 784
DIM_IMG_PAD = 896          # 7 * 128: lane-dense output (784 = 6*128 + 16)
BN_EPS = 1e-5
LEAKY_SLOPE = 0.2


def _leaky_relu(x):
    return jnp.where(x > 0, x, LEAKY_SLOPE * x)


def _bn_leaky(x, gamma, beta):
    # BatchNorm1d, training semantics (batch mean, biased variance), with the
    # affine transform folded into a single per-feature scale/shift FMA.
    mean = jnp.mean(x, axis=0, keepdims=True)
    var = jnp.mean(jnp.square(x - mean), axis=0, keepdims=True)
    scale = gamma * jax.lax.rsqrt(var + BN_EPS)
    shift = beta - mean * scale
    return _leaky_relu(x * scale + shift)


def gerador_kernel(
    x_ref,
    w1_ref, b1_ref,
    w2_ref, g2_ref, be2_ref,
    w3_ref, g3_ref, be3_ref,
    w4_ref, b4_ref,
    out_ref,
):
    # Block 1: Linear(64 -> 256) + LeakyReLU (no batchnorm).
    x = x_ref[...].astype(jnp.bfloat16)
    h = jnp.dot(x, w1_ref[...], preferred_element_type=jnp.float32) + b1_ref[...]
    h = _leaky_relu(h)

    # Block 2: Linear(256 -> 512) + BatchNorm1d + LeakyReLU.
    # Linear bias omitted: a per-feature constant is exactly cancelled by the
    # BN batch-mean subtraction, so the result is unchanged.
    h = jnp.dot(h.astype(jnp.bfloat16), w2_ref[...],
                preferred_element_type=jnp.float32)
    h = _bn_leaky(h, g2_ref[...], be2_ref[...])

    # Block 3: Linear(512 -> 1024) + BatchNorm1d + LeakyReLU (bias omitted, as above).
    h = jnp.dot(h.astype(jnp.bfloat16), w3_ref[...],
                preferred_element_type=jnp.float32)
    h = _bn_leaky(h, g3_ref[...], be3_ref[...])

    # Output: Linear(1024 -> 896 [= 784 zero-padded]) + Sigmoid.
    # Padded columns are dead weight (zeros) and are sliced off by the wrapper.
    h = jnp.dot(h.astype(jnp.bfloat16), w4_ref[...],
                preferred_element_type=jnp.float32)
    out_ref[...] = jax.nn.sigmoid(h + b4_ref[...])


def _full_spec(shape):
    # Whole-array block resident in VMEM; grid is empty so index_map takes no args.
    return pl.BlockSpec(shape, lambda: (0,) * len(shape))


@jax.jit
def gerador_forward(ruido, params):
    B = ruido.shape[0]
    kernel_inputs = (
        ruido,
        params["w1"], params["b1"],
        params["w2"], params["g2"], params["be2"],
        params["w3"], params["g3"], params["be3"],
        params["w4"], params["b4"],
    )
    out = pl.pallas_call(
        gerador_kernel,
        out_shape=jax.ShapeDtypeStruct((B, DIM_IMG_PAD), jnp.float32),
        grid=(),
        in_specs=[_full_spec(a.shape) for a in kernel_inputs],
        out_specs=_full_spec((B, DIM_IMG_PAD)),
        # Working set: ~3.2 MB of bf16 weights + small f32 activations.
        # 32 MiB fits every generation (v7x physical VMEM is 64 MiB).
        compiler_params=pltpu.CompilerParams(vmem_limit_bytes=32 << 20),
    )(*kernel_inputs)
    return out[:, :DIM_IMG]


def init_params(key):
    """PyTorch-style Linear init (uniform +-1/sqrt(fan_in)); weights pre-transposed
    to (in, out), cast to bf16; w4/b4 zero-padded to 896 output columns."""
    dims = [
        (DIM_RUIDO, DIM_OCULTA * 2),       # 64 -> 256
        (DIM_OCULTA * 2, DIM_OCULTA * 4),  # 256 -> 512
        (DIM_OCULTA * 4, DIM_OCULTA * 8),  # 512 -> 1024
        (DIM_OCULTA * 8, DIM_IMG),         # 1024 -> 784
    ]
    keys = jax.random.split(key, 2 * len(dims))
    lin = []
    for i, (din, dout) in enumerate(dims):
        bound = 1.0 / (din ** 0.5)
        w = jax.random.uniform(keys[2 * i], (din, dout), jnp.float32, -bound, bound)
        b = jax.random.uniform(keys[2 * i + 1], (1, dout), jnp.float32, -bound, bound)
        lin.append((w, b))
    (w1, b1), (w2, b2), (w3, b3), (w4, b4) = lin

    pad = DIM_IMG_PAD - DIM_IMG
    w4p = jnp.pad(w4, ((0, 0), (0, pad)))
    b4p = jnp.pad(b4, ((0, 0), (0, pad)))

    return dict(
        w1=w1.astype(jnp.bfloat16), b1=b1,
        w2=w2.astype(jnp.bfloat16), b2=b2,                       # b2 kept for the reference only
        g2=jnp.ones((1, DIM_OCULTA * 4), jnp.float32),
        be2=jnp.zeros((1, DIM_OCULTA * 4), jnp.float32),
        w3=w3.astype(jnp.bfloat16), b3=b3,                       # b3 kept for the reference only
        g3=jnp.ones((1, DIM_OCULTA * 8), jnp.float32),
        be3=jnp.zeros((1, DIM_OCULTA * 8), jnp.float32),
        w4=w4p.astype(jnp.bfloat16), b4=b4p,
    )


def reference_forward(ruido, params):
    """Pure-JAX reference with the same bf16 weights (includes the b2/b3 bias adds
    to demonstrate they cancel under BatchNorm's batch statistics)."""
    def dot(a, w):
        return jnp.dot(a.astype(jnp.bfloat16), w, preferred_element_type=jnp.float32)

    def bn(x, g, b):
        mean = jnp.mean(x, axis=0, keepdims=True)
        var = jnp.mean(jnp.square(x - mean), axis=0, keepdims=True)
        return (x - mean) * jax.lax.rsqrt(var + BN_EPS) * g + b

    h = _leaky_relu(dot(ruido, params["w1"]) + params["b1"])
    h = _leaky_relu(bn(dot(h, params["w2"]) + params["b2"], params["g2"], params["be2"]))
    h = _leaky_relu(bn(dot(h, params["w3"]) + params["b3"], params["g3"], params["be3"]))
    h = jax.nn.sigmoid(dot(h, params["w4"]) + params["b4"])
    return h[:, :DIM_IMG]


if __name__ == "__main__":
    key = jax.random.PRNGKey(0)
    k_params, k_noise = jax.random.split(key)

    params = init_params(k_params)
    batch = 8
    ruido = jax.random.normal(k_noise, (batch, DIM_RUIDO), jnp.float32)

    out = gerador_forward(ruido, params)
    out = jax.block_until_ready(out)

    ref = reference_forward(ruido, params)
    assert out.shape == (batch, DIM_IMG)
    assert bool(jnp.all(jnp.isfinite(out)))
    # bf16 weights in both paths; tolerance covers accumulation-order differences
    # and the (mathematically exact) b2/b3 cancellation under BN.
    assert jnp.allclose(out, ref, atol=1e-3, rtol=1e-3), "mismatch vs reference"

    print("KERNEL_OK")
</pallas_src>

<mosaic_0001>
module attributes {stable_mosaic.version = 11 : i64} {
  func.func @gerador_kernel(%arg0: memref<8x64xf32, #tpu.memory_space<vmem>>, %arg1: memref<64x256xbf16, #tpu.memory_space<vmem>>, %arg2: memref<1x256xf32, #tpu.memory_space<vmem>>, %arg3: memref<256x512xbf16, #tpu.memory_space<vmem>>, %arg4: memref<1x512xf32, #tpu.memory_space<vmem>>, %arg5: memref<1x512xf32, #tpu.memory_space<vmem>>, %arg6: memref<512x1024xbf16, #tpu.memory_space<vmem>>, %arg7: memref<1x1024xf32, #tpu.memory_space<vmem>>, %arg8: memref<1x1024xf32, #tpu.memory_space<vmem>>, %arg9: memref<1024x896xbf16, #tpu.memory_space<vmem>>, %arg10: memref<1x896xf32, #tpu.memory_space<vmem>>, %arg11: memref<8x896xf32, #tpu.memory_space<vmem>>) attributes {dimension_semantics = [], scalar_prefetch = 0 : i64, scratch_operands = 0 : i64, tpu.core_type = #tpu.core_type<tc>} {
    %c0 = arith.constant 0 : index
    %c0_0 = arith.constant 0 : index
    %0 = vector.load %arg0[%c0, %c0_0] : memref<8x64xf32, #tpu.memory_space<vmem>>, vector<8x64xf32>
    %1 = arith.truncf %0 : vector<8x64xf32> to vector<8x64xbf16>
    %c0_1 = arith.constant 0 : index
    %c0_2 = arith.constant 0 : index
    %2 = vector.load %arg1[%c0_1, %c0_2] : memref<64x256xbf16, #tpu.memory_space<vmem>>, vector<64x256xbf16>
    %cst = arith.constant dense<0.000000e+00> : vector<8x256xf32>
    %3 = tpu.matmul %1, %2, %cst {dimension_numbers = #tpu.dot_dimension_numbers<[1], [0], [0], [1], [0, 0, 1, 1], [], []>} : vector<8x64xbf16>, vector<64x256xbf16>, vector<8x256xf32> -> vector<8x256xf32>
    %c0_3 = arith.constant 0 : index
    %c0_4 = arith.constant 0 : index
    %4 = vector.load %arg2[%c0_3, %c0_4] : memref<1x256xf32, #tpu.memory_space<vmem>>, vector<1x256xf32>
    %5 = vector.broadcast %4 : vector<1x256xf32> to vector<8x256xf32>
    %6 = arith.addf %3, %5 : vector<8x256xf32>
    %cst_5 = arith.constant 0.000000e+00 : f32
    %7 = vector.broadcast %cst_5 : f32 to vector<8x256xf32>
    %8 = arith.cmpf ogt, %6, %7 : vector<8x256xf32>
    %cst_6 = arith.constant 2.000000e-01 : f32
    %9 = vector.broadcast %cst_6 : f32 to vector<8x256xf32>
    %10 = arith.mulf %9, %6 : vector<8x256xf32>
    %11 = arith.select %8, %6, %10 : vector<8x256xi1>, vector<8x256xf32>
    %12 = arith.truncf %11 : vector<8x256xf32> to vector<8x256xbf16>
    %c0_7 = arith.constant 0 : index
    %c0_8 = arith.constant 0 : index
    %13 = vector.load %arg3[%c0_7, %c0_8] : memref<256x512xbf16, #tpu.memory_space<vmem>>, vector<256x512xbf16>
    %cst_9 = arith.constant dense<0.000000e+00> : vector<8x512xf32>
    %14 = tpu.matmul %12, %13, %cst_9 {dimension_numbers = #tpu.dot_dimension_numbers<[1], [0], [0], [1], [0, 0, 1, 1], [], []>} : vector<8x256xbf16>, vector<256x512xbf16>, vector<8x512xf32> -> vector<8x512xf32>
    %c0_10 = arith.constant 0 : index
    %c0_11 = arith.constant 0 : index
    %15 = vector.load %arg4[%c0_10, %c0_11] : memref<1x512xf32, #tpu.memory_space<vmem>>, vector<1x512xf32>
    %c0_12 = arith.constant 0 : index
    %c0_13 = arith.constant 0 : index
    %16 = vector.load %arg5[%c0_12, %c0_13] : memref<1x512xf32, #tpu.memory_space<vmem>>, vector<1x512xf32>
    %cst_14 = arith.constant dense<0.000000e+00> : vector<512xf32>
    %17 = vector.multi_reduction <add>, %14, %cst_14 [0] : vector<8x512xf32> to vector<512xf32>
    %18 = vector.shape_cast %17 : vector<512xf32> to vector<1x512xf32>
    %cst_15 = arith.constant 8.000000e+00 : f32
    %19 = vector.broadcast %cst_15 : f32 to vector<1x512xf32>
    %20 = arith.divf %18, %19 : vector<1x512xf32>
    %21 = vector.broadcast %20 : vector<1x512xf32> to vector<8x512xf32>
    %22 = arith.subf %14, %21 : vector<8x512xf32>
    %23 = arith.mulf %22, %22 : vector<8x512xf32>
    %cst_16 = arith.constant dense<0.000000e+00> : vector<512xf32>
    %24 = vector.multi_reduction <add>, %23, %cst_16 [0] : vector<8x512xf32> to vector<512xf32>
    %25 = vector.shape_cast %24 : vector<512xf32> to vector<1x512xf32>
    %cst_17 = arith.constant 8.000000e+00 : f32
    %26 = vector.broadcast %cst_17 : f32 to vector<1x512xf32>
    %27 = arith.divf %25, %26 : vector<1x512xf32>
    %cst_18 = arith.constant 9.99999974E-6 : f32
    %28 = vector.broadcast %cst_18 : f32 to vector<1x512xf32>
    %29 = arith.addf %27, %28 : vector<1x512xf32>
    %30 = math.rsqrt %29 : vector<1x512xf32>
    %31 = arith.mulf %15, %30 : vector<1x512xf32>
    %32 = arith.mulf %20, %31 : vector<1x512xf32>
    %33 = arith.subf %16, %32 : vector<1x512xf32>
    %34 = vector.broadcast %31 : vector<1x512xf32> to vector<8x512xf32>
    %35 = arith.mulf %14, %34 : vector<8x512xf32>
    %36 = vector.broadcast %33 : vector<1x512xf32> to vector<8x512xf32>
    %37 = arith.addf %35, %36 : vector<8x512xf32>
    %cst_19 = arith.constant 0.000000e+00 : f32
    %38 = vector.broadcast %cst_19 : f32 to vector<8x512xf32>
    %39 = arith.cmpf ogt, %37, %38 : vector<8x512xf32>
    %cst_20 = arith.constant 2.000000e-01 : f32
    %40 = vector.broadcast %cst_20 : f32 to vector<8x512xf32>
    %41 = arith.mulf %40, %37 : vector<8x512xf32>
    %42 = arith.select %39, %37, %41 : vector<8x512xi1>, vector<8x512xf32>
    %43 = arith.truncf %42 : vector<8x512xf32> to vector<8x512xbf16>
    %c0_21 = arith.constant 0 : index
    %c0_22 = arith.constant 0 : index
    %44 = vector.load %arg6[%c0_21, %c0_22] : memref<512x1024xbf16, #tpu.memory_space<vmem>>, vector<512x1024xbf16>
    %cst_23 = arith.constant dense<0.000000e+00> : vector<8x1024xf32>
    %45 = tpu.matmul %43, %44, %cst_23 {dimension_numbers = #tpu.dot_dimension_numbers<[1], [0], [0], [1], [0, 0, 1, 1], [], []>} : vector<8x512xbf16>, vector<512x1024xbf16>, vector<8x1024xf32> -> vector<8x1024xf32>
    %c0_24 = arith.constant 0 : index
    %c0_25 = arith.constant 0 : index
    %46 = vector.load %arg7[%c0_24, %c0_25] : memref<1x1024xf32, #tpu.memory_space<vmem>>, vector<1x1024xf32>
    %c0_26 = arith.constant 0 : index
    %c0_27 = arith.constant 0 : index
    %47 = vector.load %arg8[%c0_26, %c0_27] : memref<1x1024xf32, #tpu.memory_space<vmem>>, vector<1x1024xf32>
    %cst_28 = arith.constant dense<0.000000e+00> : vector<1024xf32>
    %48 = vector.multi_reduction <add>, %45, %cst_28 [0] : vector<8x1024xf32> to vector<1024xf32>
    %49 = vector.shape_cast %48 : vector<1024xf32> to vector<1x1024xf32>
    %cst_29 = arith.constant 8.000000e+00 : f32
    %50 = vector.broadcast %cst_29 : f32 to vector<1x1024xf32>
    %51 = arith.divf %49, %50 : vector<1x1024xf32>
    %52 = vector.broadcast %51 : vector<1x1024xf32> to vector<8x1024xf32>
    %53 = arith.subf %45, %52 : vector<8x1024xf32>
    %54 = arith.mulf %53, %53 : vector<8x1024xf32>
    %cst_30 = arith.constant dense<0.000000e+00> : vector<1024xf32>
    %55 = vector.multi_reduction <add>, %54, %cst_30 [0] : vector<8x1024xf32> to vector<1024xf32>
    %56 = vector.shape_cast %55 : vector<1024xf32> to vector<1x1024xf32>
    %cst_31 = arith.constant 8.000000e+00 : f32
    %57 = vector.broadcast %cst_31 : f32 to vector<1x1024xf32>
    %58 = arith.divf %56, %57 : vector<1x1024xf32>
    %cst_32 = arith.constant 9.99999974E-6 : f32
    %59 = vector.broadcast %cst_32 : f32 to vector<1x1024xf32>
    %60 = arith.addf %58, %59 : vector<1x1024xf32>
    %61 = math.rsqrt %60 : vector<1x1024xf32>
    %62 = arith.mulf %46, %61 : vector<1x1024xf32>
    %63 = arith.mulf %51, %62 : vector<1x1024xf32>
    %64 = arith.subf %47, %63 : vector<1x1024xf32>
    %65 = vector.broadcast %62 : vector<1x1024xf32> to vector<8x1024xf32>
    %66 = arith.mulf %45, %65 : vector<8x1024xf32>
    %67 = vector.broadcast %64 : vector<1x1024xf32> to vector<8x1024xf32>
    %68 = arith.addf %66, %67 : vector<8x1024xf32>
    %cst_33 = arith.constant 0.000000e+00 : f32
    %69 = vector.broadcast %cst_33 : f32 to vector<8x1024xf32>
    %70 = arith.cmpf ogt, %68, %69 : vector<8x1024xf32>
    %cst_34 = arith.constant 2.000000e-01 : f32
    %71 = vector.broadcast %cst_34 : f32 to vector<8x1024xf32>
    %72 = arith.mulf %71, %68 : vector<8x1024xf32>
    %73 = arith.select %70, %68, %72 : vector<8x1024xi1>, vector<8x1024xf32>
    %74 = arith.truncf %73 : vector<8x1024xf32> to vector<8x1024xbf16>
    %c0_35 = arith.constant 0 : index
    %c0_36 = arith.constant 0 : index
    %75 = vector.load %arg9[%c0_35, %c0_36] : memref<1024x896xbf16, #tpu.memory_space<vmem>>, vector<1024x896xbf16>
    %cst_37 = arith.constant dense<0.000000e+00> : vector<8x896xf32>
    %76 = tpu.matmul %74, %75, %cst_37 {dimension_numbers = #tpu.dot_dimension_numbers<[1], [0], [0], [1], [0, 0, 1, 1], [], []>} : vector<8x1024xbf16>, vector<1024x896xbf16>, vector<8x896xf32> -> vector<8x896xf32>
    %c0_38 = arith.constant 0 : index
    %c0_39 = arith.constant 0 : index
    %77 = vector.load %arg10[%c0_38, %c0_39] : memref<1x896xf32, #tpu.memory_space<vmem>>, vector<1x896xf32>
    %78 = vector.broadcast %77 : vector<1x896xf32> to vector<8x896xf32>
    %79 = arith.addf %76, %78 : vector<8x896xf32>
    %80 = arith.negf %79 : vector<8x896xf32>
    %81 = math.exp %80 : vector<8x896xf32>
    %cst_40 = arith.constant 1.000000e+00 : f32
    %82 = vector.broadcast %cst_40 : f32 to vector<8x896xf32>
    %83 = arith.addf %82, %81 : vector<8x896xf32>
    %84 = arith.divf %82, %83 : vector<8x896xf32>
    %c0_41 = arith.constant 0 : index
    %c0_42 = arith.constant 0 : index
    %85 = vector.load %arg11[%c0_41, %c0_42] : memref<8x896xf32, #tpu.memory_space<vmem>>, vector<8x896xf32>
    tpu.vector_store %arg11[%c0_41, %c0_42], %84 {strides = array<i32>} : memref<8x896xf32, #tpu.memory_space<vmem>>, vector<8x896xf32>,
    return
  }
}

</mosaic_0001>

<llo_original>
// kernel: gerador_forward.1
$region0: #{gerador_forward.1}
  #allocation0 [shape = 'u32[]', space=smem, size = 0x4, offset = 0x4, fixed_abs, tag = 'smem constant byte address 0x4 - core index']
  #allocation1 [shape = 'u32[144,128]{1,0:T(1,128)}', space=vmem, size = 0x12000, scoped, tag = 'internal scratch']
  %s0 = inlined_call_operand.hbm [shape: f32[8,64], index: 0, kind: input, shape index: {}]
  %s1 = inlined_call_operand.hbm [shape: bf16[64,256], index: 1, kind: input, shape index: {}]
  %s2 = inlined_call_operand.hbm [shape: f32[1,256], index: 2, kind: input, shape index: {}]
  %s3 = inlined_call_operand.hbm [shape: bf16[256,512], index: 3, kind: input, shape index: {}]
  %s4 = inlined_call_operand.hbm [shape: f32[1,512], index: 4, kind: input, shape index: {}]
  %s5 = inlined_call_operand.hbm [shape: f32[1,512], index: 5, kind: input, shape index: {}]
  %s6 = inlined_call_operand.hbm [shape: bf16[512,1024], index: 6, kind: input, shape index: {}]
  %s7 = inlined_call_operand.hbm [shape: f32[1,1024], index: 7, kind: input, shape index: {}]
  %s8 = inlined_call_operand.hbm [shape: f32[1,1024], index: 8, kind: input, shape index: {}]
  %s9 = inlined_call_operand.hbm [shape: bf16[1024,896], index: 9, kind: input, shape index: {}]
  %s10 = inlined_call_operand.hbm [shape: f32[1,896], index: 10, kind: input, shape index: {}]
  %s11 = inlined_call_operand.hbm [shape: f32[8,896], index: 11, kind: output, shape index: {}]
  %s12 = sld [smem:[#allocation0]]
  $region98: #{gerador_forward.1} parent=0
    _
  %s14 = ssub.s32 1, %s12
  %s15 = scalar_select 0, %s14, %s12
  $region1: #{gerador_forward.1} parent=0
    #allocation2 [shape = 'u8[4096]{0}', space=vmem, size = 0x1000, scoped, tag = 'input window, operand 0, single buffered']
    #allocation3 [shape = 's32[1]{0}', space=sflag, size = 0x4, scoped, tag = 'scoped memory for gerador_forward.1']
    #allocation4 [shape = 's32[1]{0}', space=sflag, size = 0x4, scoped, tag = 'scoped memory for gerador_forward.1']
    #allocation5 [shape = 'u8[32768]{0}', space=vmem, size = 0x8000, scoped, tag = 'input window, operand 1, single buffered']
    #allocation6 [shape = 's32[1]{0}', space=sflag, size = 0x4, scoped, tag = 'scoped memory for gerador_forward.1']
    #allocation7 [shape = 'u8[1024]{0}', space=vmem, size = 0x400, scoped, tag = 'input window, operand 2, single buffered']
    #allocation8 [shape = 'u8[262144]{0}', space=vmem, size = 0x40000, scoped, tag = 'input window, operand 3, single buffered']
    #allocation9 [shape = 's32[1]{0}', space=sflag, size = 0x4, scoped, tag = 'scoped memory for gerador_forward.1']
    #allocation10 [shape = 'u8[2048]{0}', space=vmem, size = 0x800, scoped, tag = 'input window, operand 4, single buffered']
    #allocation11 [shape = 'u8[2048]{0}', space=vmem, size = 0x800, scoped, tag = 'input window, operand 5, single buffered']
    #allocation12 [shape = 's32[1]{0}', space=sflag, size = 0x4, scoped, tag = 'scoped memory for gerador_forward.1']
    #allocation13 [shape = 'u8[1048576]{0}', space=vmem, size = 0x100000, scoped, tag = 'input window, operand 6, single buffered']
    #allocation14 [shape = 'u8[4096]{0}', space=vmem, size = 0x1000, scoped, tag = 'input window, operand 7, single buffered']
    #allocation15 [shape = 's32[1]{0}', space=sflag, size = 0x4, scoped, tag = 'scoped memory for gerador_forward.1']
    #allocation16 [shape = 'u8[4096]{0}', space=vmem, size = 0x1000, scoped, tag = 'input window, operand 8, single buffered']
    #allocation17 [shape = 'u8[1835008]{0}', space=vmem, size = 0x1c0000, scoped, tag = 'input window, operand 9, single buffered']
    #allocation18 [shape = 's32[1]{0}', space=sflag, size = 0x4, scoped, tag = 'scoped memory for gerador_forward.1']
    #allocation19 [shape = 'u8[3584]{0}', space=vmem, size = 0x1000, scoped, tag = 'input window, operand 10, single buffered']
    #allocation20 [shape = 'u8[28672]{0}', space=vmem, size = 0x7000, scoped, tag = 'output window, operand 0, single buffered']
    %16 = vsyncpa [#allocation3], 0
    %17 = vsyncpa [#allocation6], 0
    %18 = vsyncpa [#allocation9], 0
    %19 = vsyncpa [#allocation12], 0
    %20 = vsyncpa [#allocation15], 0
    %21 = vsyncpa [#allocation18], 0
    %22 = vsyncpa [#allocation4], 0
    // Predicated region
    $region2: #{gerador_forward.1} parent=1 // pred_check
      _
    $region3: #{gerador_forward.1} parent=1 // pred_check_branch
      %24 = sbr.rel (0) target = $region5
    $region4: #{gerador_forward.1} parent=1 // pred_region
      %s26 = ssub.s32 128, 128
      %27 = vsyncadd [#allocation3], %s26
      %s29 = sshll.u32 [#allocation2], 4
      %s30 = int_to_ptr.vmem [resolvable:$true] %s29
      %32 = dma.hbm_to_vmem [thread:$0]  %s0, 128, %s30, [#allocation3]
    $region5: #{gerador_forward.1} parent=1 // pred_fallthru
      _
    // Predicated region
    $region6: #{gerador_forward.1} parent=1 // pred_check
      _
    $region7: #{gerador_forward.1} parent=1 // pred_check_branch
      %34 = sbr.rel (0) target = $region9
    $region8: #{gerador_forward.1} parent=1 // pred_region
      %s36 = ssub.s32 1024, 1024
      %37 = vsyncadd [#allocation6], %s36
      %s38 = sshll.u32 [#allocation5], 4
      %s39 = int_to_ptr.vmem [resolvable:$true] %s38
      %44 = dma.hbm_to_vmem [thread:$0]  %s1, 1024, %s39, [#allocation6], 128, 128, 8
    $region9: #{gerador_forward.1} parent=1 // pred_fallthru
      _
    // Predicated region
    $region10: #{gerador_forward.1} parent=1 // pred_check
      _
    $region11: #{gerador_forward.1} parent=1 // pred_check_branch
      %46 = sbr.rel (0) target = $region13
    $region12: #{gerador_forward.1} parent=1 // pred_region
      %s48 = ssub.s32 32, 32
      %49 = vsyncadd [#allocation6], %s48
      %s51 = sshll.u32 [#allocation7], 4
      %s52 = int_to_ptr.vmem [resolvable:$true] %s51
      %54 = dma.hbm_to_vmem [thread:$0]  %s2, 32, %s52, [#allocation6]
    $region13: #{gerador_forward.1} parent=1 // pred_fallthru
      _
    // Predicated region
    $region14: #{gerador_forward.1} parent=1 // pred_check
      _
    $region15: #{gerador_forward.1} parent=1 // pred_check_branch
      %56 = sbr.rel (0) target = $region17
    $region16: #{gerador_forward.1} parent=1 // pred_region
      %s58 = ssub.s32 8192, 8192
      %59 = vsyncadd [#allocation9], %s58
      %s60 = sshll.u32 [#allocation8], 4
      %s61 = int_to_ptr.vmem [resolvable:$true] %s60
      %66 = dma.hbm_to_vmem [thread:$0]  %s3, 8192, %s61, [#allocation9], 256, 256, 16
    $region17: #{gerador_forward.1} parent=1 // pred_fallthru
      _
    // Predicated region
    $region18: #{gerador_forward.1} parent=1 // pred_check
      _
    $region19: #{gerador_forward.1} parent=1 // pred_check_branch
      %68 = sbr.rel (0) target = $region21
    $region20: #{gerador_forward.1} parent=1 // pred_region
      %s70 = ssub.s32 64, 64
      %71 = vsyncadd [#allocation9], %s70
      %s73 = sshll.u32 [#allocation10], 4
      %s74 = int_to_ptr.vmem [resolvable:$true] %s73
      %76 = dma.hbm_to_vmem [thread:$0]  %s4, 64, %s74, [#allocation9]
    $region21: #{gerador_forward.1} parent=1 // pred_fallthru
      _
    // Predicated region
    $region22: #{gerador_forward.1} parent=1 // pred_check
      _
    $region23: #{gerador_forward.1} parent=1 // pred_check_branch
      %78 = sbr.rel (0) target = $region25
    $region24: #{gerador_forward.1} parent=1 // pred_region
      %s80 = ssub.s32 64, 64
      %81 = vsyncadd [#allocation12], %s80
      %s83 = sshll.u32 [#allocation11], 4
      %s84 = int_to_ptr.vmem [resolvable:$true] %s83
      %86 = dma.hbm_to_vmem [thread:$0]  %s5, 64, %s84, [#allocation12]
    $region25: #{gerador_forward.1} parent=1 // pred_fallthru
      _
    // Predicated region
    $region26: #{gerador_forward.1} parent=1 // pred_check
      _
    $region27: #{gerador_forward.1} parent=1 // pred_check_branch
      %88 = sbr.rel (0) target = $region29
    $region28: #{gerador_forward.1} parent=1 // pred_region
      %s90 = ssub.s32 32768, 32768
      %91 = vsyncadd [#allocation12], %s90
      %s92 = sshll.u32 [#allocation13], 4
      %s93 = int_to_ptr.vmem [resolvable:$true] %s92
      %98 = dma.hbm_to_vmem [thread:$0]  %s6, 32768, %s93, [#allocation12], 512, 512, 32
    $region29: #{gerador_forward.1} parent=1 // pred_fallthru
      _
    // Predicated region
    $region30: #{gerador_forward.1} parent=1 // pred_check
      _
    $region31: #{gerador_forward.1} parent=1 // pred_check_branch
      %100 = sbr.rel (0) target = $region33
    $region32: #{gerador_forward.1} parent=1 // pred_region
      %s102 = ssub.s32 128, 128
      %103 = vsyncadd [#allocation15], %s102
      %s105 = sshll.u32 [#allocation14], 4
      %s106 = int_to_ptr.vmem [resolvable:$true] %s105
      %108 = dma.hbm_to_vmem [thread:$0]  %s7, 128, %s106, [#allocation15]
    $region33: #{gerador_forward.1} parent=1 // pred_fallthru
      _
    // Predicated region
    $region34: #{gerador_forward.1} parent=1 // pred_check
      _
    $region35: #{gerador_forward.1} parent=1 // pred_check_branch
      %110 = sbr.rel (0) target = $region37
    $region36: #{gerador_forward.1} parent=1 // pred_region
      %s112 = ssub.s32 128, 128
      %113 = vsyncadd [#allocation15], %s112
      %s115 = sshll.u32 [#allocation16], 4
      %s116 = int_to_ptr.vmem [resolvable:$true] %s115
      %118 = dma.hbm_to_vmem [thread:$0]  %s8, 128, %s116, [#allocation15]
    $region37: #{gerador_forward.1} parent=1 // pred_fallthru
      _
    // Predicated region
    $region38: #{gerador_forward.1} parent=1 // pred_check
      _
    $region39: #{gerador_forward.1} parent=1 // pred_check_branch
      %120 = sbr.rel (0) target = $region41
    $region40: #{gerador_forward.1} parent=1 // pred_region
      %s122 = ssub.s32 57344, 57344
      %123 = vsyncadd [#allocation18], %s122
      %s124 = sshll.u32 [#allocation17], 4
      %s125 = int_to_ptr.vmem [resolvable:$true] %s124
      %130 = dma.hbm_to_vmem [thread:$0]  %s9, 57344, %s125, [#allocation18], 448, 448, 28
    $region41: #{gerador_forward.1} parent=1 // pred_fallthru
      _
    // Predicated region
    $region42: #{gerador_forward.1} parent=1 // pred_check
      _
    $region43: #{gerador_forward.1} parent=1 // pred_check_branch
      %132 = sbr.rel (0) target = $region45
    $region44: #{gerador_forward.1} parent=1 // pred_region
      %s134 = ssub.s32 112, 112
      %135 = vsyncadd [#allocation18], %s134
      %s137 = sshll.u32 [#allocation19], 4
      %s138 = int_to_ptr.vmem [resolvable:$true] %s137
      %140 = dma.hbm_to_vmem [thread:$0]  %s10, 112, %s138, [#allocation18]
    $region45: #{gerador_forward.1} parent=1 // pred_fallthru
      _
    // Predicated region
    $region46: #{gerador_forward.1} parent=1 // pred_check
      _
    $region47: #{gerador_forward.1} parent=1 // pred_check_branch
      %142 = sbr.rel (0) target = $region49
    $region48: #{gerador_forward.1} parent=1 // pred_region
      %143 = dma.done [#allocation3], 128
    $region49: #{gerador_forward.1} parent=1 // pred_fallthru
      _
    // Predicated region
    $region50: #{gerador_forward.1} parent=1 // pred_check
      _
    $region51: #{gerador_forward.1} parent=1 // pred_check_branch
      %145 = sbr.rel (0) target = $region53
    $region52: #{gerador_forward.1} parent=1 // pred_region
      %146 = dma.done [#allocation6], 1024
    $region53: #{gerador_forward.1} parent=1 // pred_fallthru
      _
    // Predicated region
    $region54: #{gerador_forward.1} parent=1 // pred_check
      _
    $region55: #{gerador_forward.1} parent=1 // pred_check_branch
      %148 = sbr.rel (0) target = $region57
    $region56: #{gerador_forward.1} parent=1 // pred_region
      %149 = dma.done [#allocation6], 32
    $region57: #{gerador_forward.1} parent=1 // pred_fallthru
      _
    // Predicated region
    $region58: #{gerador_forward.1} parent=1 // pred_check
      _
    $region59: #{gerador_forward.1} parent=1 // pred_check_branch
      %151 = sbr.rel (0) target = $region61
    $region60: #{gerador_forward.1} parent=1 // pred_region
      %152 = dma.done [#allocation9], 8192
    $region61: #{gerador_forward.1} parent=1 // pred_fallthru
      _
    // Predicated region
    $region62: #{gerador_forward.1} parent=1 // pred_check
      _
    $region63: #{gerador_forward.1} parent=1 // pred_check_branch
      %154 = sbr.rel (0) target = $region65
    $region64: #{gerador_forward.1} parent=1 // pred_region
      %155 = dma.done [#allocation9], 64
    $region65: #{gerador_forward.1} parent=1 // pred_fallthru
      _
    // Predicated region
    $region66: #{gerador_forward.1} parent=1 // pred_check
      _
    $region67: #{gerador_forward.1} parent=1 // pred_check_branch
      %157 = sbr.rel (0) target = $region69
    $region68: #{gerador_forward.1} parent=1 // pred_region
      %158 = dma.done [#allocation12], 64
    $region69: #{gerador_forward.1} parent=1 // pred_fallthru
      _
    // Predicated region
    $region70: #{gerador_forward.1} parent=1 // pred_check
      _
    $region71: #{gerador_forward.1} parent=1 // pred_check_branch
      %160 = sbr.rel (0) target = $region73
    $region72: #{gerador_forward.1} parent=1 // pred_region
      %161 = dma.done [#allocation12], 32768
    $region73: #{gerador_forward.1} parent=1 // pred_fallthru
      _
    // Predicated region
    $region74: #{gerador_forward.1} parent=1 // pred_check
      _
    $region75: #{gerador_forward.1} parent=1 // pred_check_branch
      %163 = sbr.rel (0) target = $region77
    $region76: #{gerador_forward.1} parent=1 // pred_region
      %164 = dma.done [#allocation15], 128
    $region77: #{gerador_forward.1} parent=1 // pred_fallthru
      _
    // Predicated region
    $region78: #{gerador_forward.1} parent=1 // pred_check
      _
    $region79: #{gerador_forward.1} parent=1 // pred_check_branch
      %166 = sbr.rel (0) target = $region81
    $region80: #{gerador_forward.1} parent=1 // pred_region
      %167 = dma.done [#allocation15], 128
    $region81: #{gerador_forward.1} parent=1 // pred_fallthru
      _
    // Predicated region
    $region82: #{gerador_forward.1} parent=1 // pred_check
      _
    $region83: #{gerador_forward.1} parent=1 // pred_check_branch
      %169 = sbr.rel (0) target = $region85
    $region84: #{gerador_forward.1} parent=1 // pred_region
      %170 = dma.done [#allocation18], 57344
    $region85: #{gerador_forward.1} parent=1 // pred_fallthru
      _
    // Predicated region
    $region86: #{gerador_forward.1} parent=1 // pred_check
      _
    $region87: #{gerador_forward.1} parent=1 // pred_check_branch
      %172 = sbr.rel (0) target = $region89
    $region88: #{gerador_forward.1} parent=1 // pred_region
      %173 = dma.done [#allocation18], 112
    $region89: #{gerador_forward.1} parent=1 // pred_fallthru
      _
    %v175 = vld [vmem:[#allocation2] sm:$0xff]
    %v176 = vpack.c.bf16 %v175, %v175
    %v177 = vld [vmem:[#allocation5] sm:$0xff]
    %v178 = vld [vmem:[#allocation5 + $0x8] sm:$0xff]
    %v179 = vld [vmem:[#allocation5 + $0x10] sm:$0xff]
    %v180 = vld [vmem:[#allocation5 + $0x18] sm:$0xff]
    %v181 = vld [vmem:[#allocation5 + $0x20] sm:$0xff]
    %v182 = vld [vmem:[#allocation5 + $0x28] sm:$0xff]
    %v183 = vld [vmem:[#allocation5 + $0x30] sm:$0xff]
    %v184 = vld [vmem:[#allocation5 + $0x38] sm:$0xff]
    %v185 = vld [vmem:[#allocation7] sm:$0x3]
    %v187 = vlaneseq
    %v188 = vshrl.u32 %v187, 7
    %v189 = vsub.s32 0, %v188
    %v190 = vrot.slane %v185, %v189
    %v191 = vlaneseq
    %v192 = vshrl.u32 %v191, 7
    %v193 = vsub.s32 1, %v192
    %v194 = vrot.slane %v185, %v193
    %v205 = vunpack.c.l.b16 %v177
    %v206 = vunpack.c.h.b16 %v177
    %v207 = vunpack.c.l.b16 %v178
    %v208 = vunpack.c.h.b16 %v178
    %v209 = vunpack.c.l.b16 %v179
    %v210 = vunpack.c.h.b16 %v179
    %v211 = vunpack.c.l.b16 %v180
    %v212 = vunpack.c.h.b16 %v180
    %v213 = vunpack.c.l.b16 %v181
    %v214 = vunpack.c.h.b16 %v181
    %v215 = vunpack.c.l.b16 %v182
    %v216 = vunpack.c.h.b16 %v182
    %v217 = vunpack.c.l.b16 %v183
    %v218 = vunpack.c.h.b16 %v183
    %v219 = vunpack.c.l.b16 %v184
    %v220 = vunpack.c.h.b16 %v184
    %v221 = vpack.c.b16 %v207, %v205
    %v222 = vpack.c.b16 %v208, %v206
    %v223 = vpack.c.b16 %v211, %v209
    %v224 = vpack.c.b16 %v212, %v210
    %v225 = vpack.c.b16 %v215, %v213
    %v226 = vpack.c.b16 %v216, %v214
    %v227 = vpack.c.b16 %v219, %v217
    %v228 = vpack.c.b16 %v220, %v218
    %vm237 = vcmask 523264
    %v239 = vsel %vm237, %v176, 0
    %241 = vmatprep.subr.bf16.mxu0 0
    %242 = vmatpush1.bf16.msra.mxu0 0
    %243 = vmatprep.subr.bf16.mxu0 0
    %244 = vmatpush1.bf16.msra.mxu0 0
    %245 = vmatprep.subr.bf16.mxu0 0
    %246 = vmatpush1.bf16.msra.mxu0 0
    %247 = vmatprep.subr.bf16.mxu0 0
    %248 = vmatpush1.bf16.msra.mxu0 0
    %249 = vmatprep.subr.bf16.mxu0 %v228
    %250 = vmatpush1.bf16.msra.mxu0 %v227
    %251 = vmatprep.subr.bf16.mxu0 %v226
    %252 = vmatpush1.bf16.msra.mxu0 %v225
    %253 = vmatprep.subr.bf16.mxu0 %v224
    %254 = vmatpush1.bf16.msra.mxu0 %v223
    %255 = vmatprep.subr.bf16.mxu0 %v222
    %256 = vmatpush1.bf16.msra.mxu0 %v221
    %257 = vmatprep.subr.bf16.mxu0 0
    %258 = vmatpush2.bf16.msra.mxu0 0
    %259 = vmatprep.subr.bf16.mxu0 0
    %260 = vmatpush2.bf16.msra.mxu0 0
    %261 = vmatprep.subr.bf16.mxu0 0
    %262 = vmatpush2.bf16.msra.mxu0 0
    %263 = vmatprep.subr.bf16.mxu0 0
    %264 = vmatpush2.bf16.msra.mxu0 0
    %265 = vmatprep.subr.bf16.mxu0 0
    %266 = vmatpush2.bf16.msra.mxu0 0
    %267 = vmatprep.subr.bf16.mxu0 0
    %268 = vmatpush2.bf16.msra.mxu0 0
    %269 = vmatprep.subr.bf16.mxu0 0
    %270 = vmatpush2.bf16.msra.mxu0 0
    %271 = vmatprep.subr.bf16.mxu0 0
    %272 = vmatpush2.bf16.msra.mxu0 0
    %273 = vmatprep.mubr.bf16.mxu0 0
    %274 = vmatmul.mubr.bf16.gmra.mxu0 %v239
    %v275 = vpop.f32.mrf.mxu0
    %v276 = vadd.f32 %v190, %v275
    %v277 = vpop.f32.mrf.mxu0
    %v278 = vadd.f32 %v194, %v277
    %v279 = vpop.f32.mrf.mxu0
    %v280 = vpop.f32.mrf.mxu0
    %281 = vdwg.mxu0
    %vm282 = vcmp.gt.f32.partialorder %v276, 0.0
    %vm283 = vcmp.gt.f32.partialorder %v278, 0.0
    %v284 = vmul.f32 %v276, 0.2
    %v285 = vmul.f32 %v278, 0.2
    %v286 = vsel %vm282, %v276, %v284
    %v287 = vsel %vm283, %v278, %v285
    %v288 = vpack.c.bf16 %v286, %v286
    %v289 = vpack.c.bf16 %v287, %v287
    %v290 = vld [vmem:[#allocation8] sm:$0xff]
    %v291 = vld [vmem:[#allocation8 + $0x8] sm:$0xff]
    %v292 = vld [vmem:[#allocation8 + $0x10] sm:$0xff]
    %v293 = vld [vmem:[#allocation8 + $0x18] sm:$0xff]
    %v294 = vld [vmem:[#allocation8 + $0x20] sm:$0xff]
    %v295 = vld [vmem:[#allocation8 + $0x28] sm:$0xff]
    %v296 = vld [vmem:[#allocation8 + $0x30] sm:$0xff]
    %v297 = vld [vmem:[#allocation8 + $0x38] sm:$0xff]
    %v298 = vld [vmem:[#allocation8 + $0x40] sm:$0xff]
    %v299 = vld [vmem:[#allocation8 + $0x48] sm:$0xff]
    %v300 = vld [vmem:[#allocation8 + $0x50] sm:$0xff]
    %v301 = vld [vmem:[#allocation8 + $0x58] sm:$0xff]
    %v302 = vld [vmem:[#allocation8 + $0x60] sm:$0xff]
    %v303 = vld [vmem:[#allocation8 + $0x68] sm:$0xff]
    %v304 = vld [vmem:[#allocation8 + $0x70] sm:$0xff]
    %v305 = vld [vmem:[#allocation8 + $0x78] sm:$0xff]
    %v306 = vld [vmem:[#allocation8 + $0x80] sm:$0xff]
    %v307 = vld [vmem:[#allocation8 + $0x88] sm:$0xff]
    %v308 = vld [vmem:[#allocation8 + $0x90] sm:$0xff]
    %v309 = vld [vmem:[#allocation8 + $0x98] sm:$0xff]
    %v310 = vld [vmem:[#allocation8 + $0xa0] sm:$0xff]
    %v311 = vld [vmem:[#allocation8 + $0xa8] sm:$0xff]
    %v312 = vld [vmem:[#allocation8 + $0xb0] sm:$0xff]
    %v313 = vld [vmem:[#allocation8 + $0xb8] sm:$0xff]
    %v314 = vld [vmem:[#allocation8 + $0xc0] sm:$0xff]
    %v315 = vld [vmem:[#allocation8 + $0xc8] sm:$0xff]
    %v316 = vld [vmem:[#allocation8 + $0xd0] sm:$0xff]
    %v317 = vld [vmem:[#allocation8 + $0xd8] sm:$0xff]
    %v318 = vld [vmem:[#allocation8 + $0xe0] sm:$0xff]
    %v319 = vld [vmem:[#allocation8 + $0xe8] sm:$0xff]
    %v320 = vld [vmem:[#allocation8 + $0xf0] sm:$0xff]
    %v321 = vld [vmem:[#allocation8 + $0xf8] sm:$0xff]
    %v322 = vld [vmem:[#allocation8 + $0x100] sm:$0xff]
    %v323 = vld [vmem:[#allocation8 + $0x108] sm:$0xff]
    %v324 = vld [vmem:[#allocation8 + $0x110] sm:$0xff]
    %v325 = vld [vmem:[#allocation8 + $0x118] sm:$0xff]
    %v326 = vld [vmem:[#allocation8 + $0x120] sm:$0xff]
    %v327 = vld [vmem:[#allocation8 + $0x128] sm:$0xff]
    %v328 = vld [vmem:[#allocation8 + $0x130] sm:$0xff]
    %v329 = vld [vmem:[#allocation8 + $0x138] sm:$0xff]
    %v330 = vld [vmem:[#allocation8 + $0x140] sm:$0xff]
    %v331 = vld [vmem:[#allocation8 + $0x148] sm:$0xff]
    %v332 = vld [vmem:[#allocation8 + $0x150] sm:$0xff]
    %v333 = vld [vmem:[#allocation8 + $0x158] sm:$0xff]
    %v334 = vld [vmem:[#allocation8 + $0x160] sm:$0xff]
    %v335 = vld [vmem:[#allocation8 + $0x168] sm:$0xff]
    %v336 = vld [vmem:[#allocation8 + $0x170] sm:$0xff]
    %v337 = vld [vmem:[#allocation8 + $0x178] sm:$0xff]
    %v338 = vld [vmem:[#allocation8 + $0x180] sm:$0xff]
    %v339 = vld [vmem:[#allocation8 + $0x188] sm:$0xff]
    %v340 = vld [vmem:[#allocation8 + $0x190] sm:$0xff]
    %v341 = vld [vmem:[#allocation8 + $0x198] sm:$0xff]
    %v342 = vld [vmem:[#allocation8 + $0x1a0] sm:$0xff]
    %v343 = vld [vmem:[#allocation8 + $0x1a8] sm:$0xff]
    %v344 = vld [vmem:[#allocation8 + $0x1b0] sm:$0xff]
    %v345 = vld [vmem:[#allocation8 + $0x1b8] sm:$0xff]
    %v346 = vld [vmem:[#allocation8 + $0x1c0] sm:$0xff]
    %v347 = vld [vmem:[#allocation8 + $0x1c8] sm:$0xff]
    %v348 = vld [vmem:[#allocation8 + $0x1d0] sm:$0xff]
    %v349 = vld [vmem:[#allocation8 + $0x1d8] sm:$0xff]
    %v350 = vld [vmem:[#allocation8 + $0x1e0] sm:$0xff]
    %v351 = vld [vmem:[#allocation8 + $0x1e8] sm:$0xff]
    %v352 = vld [vmem:[#allocation8 + $0x1f0] sm:$0xff]
    %v353 = vld [vmem:[#allocation8 + $0x1f8] sm:$0xff]
    %v418 = vunpack.c.l.b16 %v290
    %v419 = vunpack.c.h.b16 %v290
    %v420 = vunpack.c.l.b16 %v291
    %v421 = vunpack.c.h.b16 %v291
    %v422 = vunpack.c.l.b16 %v292
    %v423 = vunpack.c.h.b16 %v292
    %v424 = vunpack.c.l.b16 %v293
    %v425 = vunpack.c.h.b16 %v293
    %v426 = vunpack.c.l.b16 %v294
    %v427 = vunpack.c.h.b16 %v294
    %v428 = vunpack.c.l.b16 %v295
    %v429 = vunpack.c.h.b16 %v295
    %v430 = vunpack.c.l.b16 %v296
    %v431 = vunpack.c.h.b16 %v296
    %v432 = vunpack.c.l.b16 %v297
    %v433 = vunpack.c.h.b16 %v297
    %v434 = vunpack.c.l.b16 %v298
    %v435 = vunpack.c.h.b16 %v298
    %v436 = vunpack.c.l.b16 %v299
    %v437 = vunpack.c.h.b16 %v299
    %v438 = vunpack.c.l.b16 %v300
    %v439 = vunpack.c.h.b16 %v300
    %v440 = vunpack.c.l.b16 %v301
    %v441 = vunpack.c.h.b16 %v301
    %v442 = vunpack.c.l.b16 %v302
    %v443 = vunpack.c.h.b16 %v302
    %v444 = vunpack.c.l.b16 %v303
    %v445 = vunpack.c.h.b16 %v303
    %v446 = vunpack.c.l.b16 %v304
    %v447 = vunpack.c.h.b16 %v304
    %v448 = vunpack.c.l.b16 %v305
    %v449 = vunpack.c.h.b16 %v305
    %v450 = vunpack.c.l.b16 %v306
    %v451 = vunpack.c.h.b16 %v306
    %v452 = vunpack.c.l.b16 %v307
    %v453 = vunpack.c.h.b16 %v307
    %v454 = vunpack.c.l.b16 %v308
    %v455 = vunpack.c.h.b16 %v308
    %v456 = vunpack.c.l.b16 %v309
    %v457 = vunpack.c.h.b16 %v309
    %v458 = vunpack.c.l.b16 %v310
    %v459 = vunpack.c.h.b16 %v310
    %v460 = vunpack.c.l.b16 %v311
    %v461 = vunpack.c.h.b16 %v311
    %v462 = vunpack.c.l.b16 %v312
    %v463 = vunpack.c.h.b16 %v312
    %v464 = vunpack.c.l.b16 %v313
    %v465 = vunpack.c.h.b16 %v313
    %v466 = vunpack.c.l.b16 %v314
    %v467 = vunpack.c.h.b16 %v314
    %v468 = vunpack.c.l.b16 %v315
    %v469 = vunpack.c.h.b16 %v315
    %v470 = vunpack.c.l.b16 %v316
    %v471 = vunpack.c.h.b16 %v316
    %v472 = vunpack.c.l.b16 %v317
    %v473 = vunpack.c.h.b16 %v317
    %v474 = vunpack.c.l.b16 %v318
    %v475 = vunpack.c.h.b16 %v318
    %v476 = vunpack.c.l.b16 %v319
    %v477 = vunpack.c.h.b16 %v319
    %v478 = vunpack.c.l.b16 %v320
    %v479 = vunpack.c.h.b16 %v320
    %v480 = vunpack.c.l.b16 %v321
    %v481 = vunpack.c.h.b16 %v321
    %v482 = vunpack.c.l.b16 %v322
    %v483 = vunpack.c.h.b16 %v322
    %v484 = vunpack.c.l.b16 %v323
    %v485 = vunpack.c.h.b16 %v323
    %v486 = vunpack.c.l.b16 %v324
    %v487 = vunpack.c.h.b16 %v324
    %v488 = vunpack.c.l.b16 %v325
    %v489 = vunpack.c.h.b16 %v325
    %v490 = vunpack.c.l.b16 %v326
    %v491 = vunpack.c.h.b16 %v326
    %v492 = vunpack.c.l.b16 %v327
    %v493 = vunpack.c.h.b16 %v327
    %v494 = vunpack.c.l.b16 %v328
    %v495 = vunpack.c.h.b16 %v328
    %v496 = vunpack.c.l.b16 %v329
    %v497 = vunpack.c.h.b16 %v329
    %v498 = vunpack.c.l.b16 %v330
    %v499 = vunpack.c.h.b16 %v330
    %v500 = vunpack.c.l.b16 %v331
    %v501 = vunpack.c.h.b16 %v331
    %v502 = vunpack.c.l.b16 %v332
    %v503 = vunpack.c.h.b16 %v332
    %v504 = vunpack.c.l.b16 %v333
    %v505 = vunpack.c.h.b16 %v333
    %v506 = vunpack.c.l.b16 %v334
    %v507 = vunpack.c.h.b16 %v334
    %v508 = vunpack.c.l.b16 %v335
    %v509 = vunpack.c.h.b16 %v335
    %v510 = vunpack.c.l.b16 %v336
    %v511 = vunpack.c.h.b16 %v336
    %v512 = vunpack.c.l.b16 %v337
    %v513 = vunpack.c.h.b16 %v337
    %v514 = vunpack.c.l.b16 %v338
    %v515 = vunpack.c.h.b16 %v338
    %v516 = vunpack.c.l.b16 %v339
    %v517 = vunpack.c.h.b16 %v339
    %v518 = vunpack.c.l.b16 %v340
    %v519 = vunpack.c.h.b16 %v340
    %v520 = vunpack.c.l.b16 %v341
    %v521 = vunpack.c.h.b16 %v341
    %v522 = vunpack.c.l.b16 %v342
    %v523 = vunpack.c.h.b16 %v342
    %v524 = vunpack.c.l.b16 %v343
    %v525 = vunpack.c.h.b16 %v343
    %v526 = vunpack.c.l.b16 %v344
    %v527 = vunpack.c.h.b16 %v344
    %v528 = vunpack.c.l.b16 %v345
    %v529 = vunpack.c.h.b16 %v345
    %v530 = vunpack.c.l.b16 %v346
    %v531 = vunpack.c.h.b16 %v346
    %v532 = vunpack.c.l.b16 %v347
    %v533 = vunpack.c.h.b16 %v347
    %v534 = vunpack.c.l.b16 %v348
    %v535 = vunpack.c.h.b16 %v348
    %v536 = vunpack.c.l.b16 %v349
    %v537 = vunpack.c.h.b16 %v349
    %v538 = vunpack.c.l.b16 %v350
    %v539 = vunpack.c.h.b16 %v350
    %v540 = vunpack.c.l.b16 %v351
    %v541 = vunpack.c.h.b16 %v351
    %v542 = vunpack.c.l.b16 %v352
    %v543 = vunpack.c.h.b16 %v352
    %v544 = vunpack.c.l.b16 %v353
    %v545 = vunpack.c.h.b16 %v353
    %v546 = vpack.c.b16 %v422, %v418
    %v547 = vpack.c.b16 %v423, %v419
    %v548 = vpack.c.b16 %v424, %v420
    %v549 = vpack.c.b16 %v425, %v421
    %v550 = vpack.c.b16 %v430, %v426
    %v551 = vpack.c.b16 %v431, %v427
    %v552 = vpack.c.b16 %v432, %v428
    %v553 = vpack.c.b16 %v433, %v429
    %v554 = vpack.c.b16 %v438, %v434
    %v555 = vpack.c.b16 %v439, %v435
    %v556 = vpack.c.b16 %v440, %v436
    %v557 = vpack.c.b16 %v441, %v437
    %v558 = vpack.c.b16 %v446, %v442
    %v559 = vpack.c.b16 %v447, %v443
    %v560 = vpack.c.b16 %v448, %v444
    %v561 = vpack.c.b16 %v449, %v445
    %v562 = vpack.c.b16 %v454, %v450
    %v563 = vpack.c.b16 %v455, %v451
    %v564 = vpack.c.b16 %v456, %v452
    %v565 = vpack.c.b16 %v457, %v453
    %v566 = vpack.c.b16 %v462, %v458
    %v567 = vpack.c.b16 %v463, %v459
    %v568 = vpack.c.b16 %v464, %v460
    %v569 = vpack.c.b16 %v465, %v461
    %v570 = vpack.c.b16 %v470, %v466
    %v571 = vpack.c.b16 %v471, %v467
    %v572 = vpack.c.b16 %v472, %v468
    %v573 = vpack.c.b16 %v473, %v469
    %v574 = vpack.c.b16 %v478, %v474
    %v575 = vpack.c.b16 %v479, %v475
    %v576 = vpack.c.b16 %v480, %v476
    %v577 = vpack.c.b16 %v481, %v477
    %v578 = vpack.c.b16 %v486, %v482
    %v579 = vpack.c.b16 %v487, %v483
    %v580 = vpack.c.b16 %v488, %v484
    %v581 = vpack.c.b16 %v489, %v485
    %v582 = vpack.c.b16 %v494, %v490
    %v583 = vpack.c.b16 %v495, %v491
    %v584 = vpack.c.b16 %v496, %v492
    %v585 = vpack.c.b16 %v497, %v493
    %v586 = vpack.c.b16 %v502, %v498
    %v587 = vpack.c.b16 %v503, %v499
    %v588 = vpack.c.b16 %v504, %v500
    %v589 = vpack.c.b16 %v505, %v501
    %v590 = vpack.c.b16 %v510, %v506
    %v591 = vpack.c.b16 %v511, %v507
    %v592 = vpack.c.b16 %v512, %v508
    %v593 = vpack.c.b16 %v513, %v509
    %v594 = vpack.c.b16 %v518, %v514
    %v595 = vpack.c.b16 %v519, %v515
    %v596 = vpack.c.b16 %v520, %v516
    %v597 = vpack.c.b16 %v521, %v517
    %v598 = vpack.c.b16 %v526, %v522
    %v599 = vpack.c.b16 %v527, %v523
    %v600 = vpack.c.b16 %v528, %v524
    %v601 = vpack.c.b16 %v529, %v525
    %v602 = vpack.c.b16 %v534, %v530
    %v603 = vpack.c.b16 %v535, %v531
    %v604 = vpack.c.b16 %v536, %v532
    %v605 = vpack.c.b16 %v537, %v533
    %v606 = vpack.c.b16 %v542, %v538
    %v607 = vpack.c.b16 %v543, %v539
    %v608 = vpack.c.b16 %v544, %v540
    %v609 = vpack.c.b16 %v545, %v541
    %674 = vmatprep.subr.bf16.mxu0 %v575
    %675 = vmatpush1.bf16.msra.mxu0 %v574
    %676 = vmatprep.subr.bf16.mxu0 %v571
    %677 = vmatpush1.bf16.msra.mxu0 %v570
    %678 = vmatprep.subr.bf16.mxu0 %v567
    %679 = vmatpush1.bf16.msra.mxu0 %v566
    %680 = vmatprep.subr.bf16.mxu0 %v563
    %681 = vmatpush1.bf16.msra.mxu0 %v562
    %682 = vmatprep.subr.bf16.mxu0 %v559
    %683 = vmatpush1.bf16.msra.mxu0 %v558
    %684 = vmatprep.subr.bf16.mxu0 %v555
    %685 = vmatpush1.bf16.msra.mxu0 %v554
    %686 = vmatprep.subr.bf16.mxu0 %v551
    %687 = vmatpush1.bf16.msra.mxu0 %v550
    %688 = vmatprep.subr.bf16.mxu0 %v547
    %689 = vmatpush1.bf16.msra.mxu0 %v546
    %690 = vmatprep.subr.bf16.mxu0 %v607
    %691 = vmatpush2.bf16.msra.mxu0 %v606
    %692 = vmatprep.subr.bf16.mxu0 %v603
    %693 = vmatpush2.bf16.msra.mxu0 %v602
    %694 = vmatprep.subr.bf16.mxu0 %v599
    %695 = vmatpush2.bf16.msra.mxu0 %v598
    %696 = vmatprep.subr.bf16.mxu0 %v595
    %697 = vmatpush2.bf16.msra.mxu0 %v594
    %698 = vmatprep.subr.bf16.mxu0 %v591
    %699 = vmatpush2.bf16.msra.mxu0 %v590
    %700 = vmatprep.subr.bf16.mxu0 %v587
    %701 = vmatpush2.bf16.msra.mxu0 %v586
    %702 = vmatprep.subr.bf16.mxu0 %v583
    %703 = vmatpush2.bf16.msra.mxu0 %v582
    %704 = vmatprep.subr.bf16.mxu0 %v579
    %705 = vmatpush2.bf16.msra.mxu0 %v578
    %706 = vmatprep.mubr.bf16.mxu0 %v289
    %707 = vmatmul.mubr.bf16.gmra.mxu0 %v288
    %v708 = vpop.f32.mrf.mxu0
    %v709 = vadd.f32 0.0, %v708
    %v710 = vpop.f32.mrf.mxu0
    %v711 = vadd.f32 0.0, %v710
    %v712 = vpop.f32.mrf.mxu0
    %v713 = vpop.f32.mrf.mxu0
    %714 = vdwg.mxu0
    %715 = vmatprep.subr.bf16.mxu0 %v577
    %716 = vmatpush1.bf16.msra.mxu0 %v576
    %717 = vmatprep.subr.bf16.mxu0 %v573
    %718 = vmatpush1.bf16.msra.mxu0 %v572
    %719 = vmatprep.subr.bf16.mxu0 %v569
    %720 = vmatpush1.bf16.msra.mxu0 %v568
    %721 = vmatprep.subr.bf16.mxu0 %v565
    %722 = vmatpush1.bf16.msra.mxu0 %v564
    %723 = vmatprep.subr.bf16.mxu0 %v561
    %724 = vmatpush1.bf16.msra.mxu0 %v560
    %725 = vmatprep.subr.bf16.mxu0 %v557
    %726 = vmatpush1.bf16.msra.mxu0 %v556
    %727 = vmatprep.subr.bf16.mxu0 %v553
    %728 = vmatpush1.bf16.msra.mxu0 %v552
    %729 = vmatprep.subr.bf16.mxu0 %v549
    %730 = vmatpush1.bf16.msra.mxu0 %v548
    %731 = vmatprep.subr.bf16.mxu0 %v609
    %732 = vmatpush2.bf16.msra.mxu0 %v608
    %733 = vmatprep.subr.bf16.mxu0 %v605
    %734 = vmatpush2.bf16.msra.mxu0 %v604
    %735 = vmatprep.subr.bf16.mxu0 %v601
    %736 = vmatpush2.bf16.msra.mxu0 %v600
    %737 = vmatprep.subr.bf16.mxu0 %v597
    %738 = vmatpush2.bf16.msra.mxu0 %v596
    %739 = vmatprep.subr.bf16.mxu0 %v593
    %740 = vmatpush2.bf16.msra.mxu0 %v592
    %741 = vmatprep.subr.bf16.mxu0 %v589
    %742 = vmatpush2.bf16.msra.mxu0 %v588
    %743 = vmatprep.subr.bf16.mxu0 %v585
    %744 = vmatpush2.bf16.msra.mxu0 %v584
    %745 = vmatprep.subr.bf16.mxu0 %v581
    %746 = vmatpush2.bf16.msra.mxu0 %v580
    %747 = vmatprep.mubr.bf16.mxu0 %v289
    %748 = vmatmul.mubr.bf16.gmra.mxu0 %v288
    %v749 = vpop.f32.mrf.mxu0
    %v750 = vadd.f32 0.0, %v749
    %v751 = vpop.f32.mrf.mxu0
    %v752 = vadd.f32 0.0, %v751
    %v753 = vpop.f32.mrf.mxu0
    %v754 = vpop.f32.mrf.mxu0
    %755 = vdwg.mxu0
    %v756 = vld [vmem:[#allocation10] sm:$0xf]
    %v757 = vld [vmem:[#allocation11] sm:$0xf]
    %v758 = vrot.slane %v709, 4
    %v759 = vadd.f32 %v709, %v758
    %v760 = vrot.slane %v759, 2
    %v761 = vadd.f32 %v759, %v760
    %v762 = vrot.slane %v761, 1
    %v763 = vadd.f32 %v761, %v762
    %v764 = vrot.slane %v711, 4
    %v765 = vadd.f32 %v711, %v764
    %v766 = vrot.slane %v765, 2
    %v767 = vadd.f32 %v765, %v766
    %v768 = vrot.slane %v767, 1
    %v769 = vadd.f32 %v767, %v768
    %v770 = vrot.slane %v750, 4
    %v771 = vadd.f32 %v750, %v770
    %v772 = vrot.slane %v771, 2
    %v773 = vadd.f32 %v771, %v772
    %v774 = vrot.slane %v773, 1
    %v775 = vadd.f32 %v773, %v774
    %v776 = vrot.slane %v752, 4
    %v777 = vadd.f32 %v752, %v776
    %v778 = vrot.slane %v777, 2
    %v779 = vadd.f32 %v777, %v778
    %v780 = vrot.slane %v779, 1
    %v781 = vadd.f32 %v779, %v780
    %v782 = vrcp.pop 8.0
    %v783 = vmul.f32 %v763, %v782
    %v784 = vmul.f32 %v769, %v782
    %v785 = vmul.f32 %v775, %v782
    %v786 = vmul.f32 %v781, %v782
    %v787 = vsub.f32 %v709, %v783
    %v788 = vsub.f32 %v711, %v784
    %v789 = vsub.f32 %v750, %v785
    %v790 = vsub.f32 %v752, %v786
    %v791 = vmul.f32 %v787, %v787
    %v792 = vmul.f32 %v788, %v788
    %v793 = vmul.f32 %v789, %v789
    %v794 = vmul.f32 %v790, %v790
    %v795 = vrot.slane %v791, 4
    %v796 = vadd.f32 %v791, %v795
    %v797 = vrot.slane %v796, 2
    %v798 = vadd.f32 %v796, %v797
    %v799 = vrot.slane %v798, 1
    %v800 = vadd.f32 %v798, %v799
    %v801 = vrot.slane %v792, 4
    %v802 = vadd.f32 %v792, %v801
    %v803 = vrot.slane %v802, 2
    %v804 = vadd.f32 %v802, %v803
    %v805 = vrot.slane %v804, 1
    %v806 = vadd.f32 %v804, %v805
    %v807 = vrot.slane %v793, 4
    %v808 = vadd.f32 %v793, %v807
    %v809 = vrot.slane %v808, 2
    %v810 = vadd.f32 %v808, %v809
    %v811 = vrot.slane %v810, 1
    %v812 = vadd.f32 %v810, %v811
    %v813 = vrot.slane %v794, 4
    %v814 = vadd.f32 %v794, %v813
    %v815 = vrot.slane %v814, 2
    %v816 = vadd.f32 %v814, %v815
    %v817 = vrot.slane %v816, 1
    %v818 = vadd.f32 %v816, %v817
    %v819 = vmul.f32 %v800, %v782
    %v820 = vmul.f32 %v806, %v782
    %v821 = vmul.f32 %v812, %v782
    %v822 = vmul.f32 %v818, %v782
    %v823 = vadd.f32 %v819, 1e-05
    %v824 = vadd.f32 %v820, 1e-05
    %v825 = vadd.f32 %v821, 1e-05
    %v826 = vadd.f32 %v822, 1e-05
    %v827 = vrsqrt.pop %v823
    %v828 = vrsqrt.pop %v824
    %v829 = vrsqrt.pop %v825
    %v830 = vrsqrt.pop %v826
    %v835 = vcombine.low %v827, %v828
    %v836 = vcombine.low %v829, %v830
    %v838 = vunpack.c.l.s4 1966171168
    %v839 = vunpack.c.0.s8 %v838
    %v840 = vlaneseq
    %v841 = vshrl.u32 %v840, 7
    %v842 = vsub.s32 %v839, %v841
    %v843 = vrot.slane %v835, %v842
    %v845 = vunpack.c.l.s4 1966171168
    %v846 = vunpack.c.0.s8 %v845
    %v847 = vlaneseq
    %v848 = vshrl.u32 %v847, 7
    %v849 = vsub.s32 %v846, %v848
    %v850 = vrot.slane %v836, %v849
    %v851 = vcombine.low %v843, %v850
    %v853 = vunpack.c.l.s4 1966171168
    %v854 = vunpack.c.0.s8 %v853
    %v855 = vlaneseq
    %v856 = vshrl.u32 %v855, 7
    %v857 = vsub.s32 %v854, %v856
    %v858 = vrot.slane %v851, %v857
    %v860 = vmul.f32 %v756, %v858
    %v862 = vlaneseq
    %v863 = vshrl.u32 %v862, 7
    %v864 = vsub.s32 0, %v863
    %v865 = vrot.slane %v860, %v864
    %v866 = vlaneseq
    %v867 = vshrl.u32 %v866, 7
    %v868 = vsub.s32 1, %v867
    %v869 = vrot.slane %v860, %v868
    %v870 = vlaneseq
    %v871 = vshrl.u32 %v870, 7
    %v872 = vsub.s32 2, %v871
    %v873 = vrot.slane %v860, %v872
    %v874 = vlaneseq
    %v875 = vshrl.u32 %v874, 7
    %v876 = vsub.s32 3, %v875
    %v877 = vrot.slane %v860, %v876
    %v882 = vmul.f32 %v783, %v865
    %v883 = vmul.f32 %v784, %v869
    %v884 = vmul.f32 %v785, %v873
    %v885 = vmul.f32 %v786, %v877
    %v890 = vcombine.low %v882, %v883
    %v891 = vcombine.low %v884, %v885
    %v893 = vunpack.c.l.s4 1966171168
    %v894 = vunpack.c.0.s8 %v893
    %v895 = vlaneseq
    %v896 = vshrl.u32 %v895, 7
    %v897 = vsub.s32 %v894, %v896
    %v898 = vrot.slane %v890, %v897
    %v900 = vunpack.c.l.s4 1966171168
    %v901 = vunpack.c.0.s8 %v900
    %v902 = vlaneseq
    %v903 = vshrl.u32 %v902, 7
    %v904 = vsub.s32 %v901, %v903
    %v905 = vrot.slane %v891, %v904
    %v906 = vcombine.low %v898, %v905
    %v908 = vunpack.c.l.s4 1966171168
    %v909 = vunpack.c.0.s8 %v908
    %v910 = vlaneseq
    %v911 = vshrl.u32 %v910, 7
    %v912 = vsub.s32 %v909, %v911
    %v913 = vrot.slane %v906, %v912
    %v915 = vsub.f32 %v757, %v913
    %v916 = vmul.f32 %v709, %v865
    %v917 = vmul.f32 %v711, %v869
    %v918 = vmul.f32 %v750, %v873
    %v919 = vmul.f32 %v752, %v877
    %v921 = vlaneseq
    %v922 = vshrl.u32 %v921, 7
    %v923 = vsub.s32 0, %v922
    %v924 = vrot.slane %v915, %v923
    %v925 = vlaneseq
    %v926 = vshrl.u32 %v925, 7
    %v927 = vsub.s32 1, %v926
    %v928 = vrot.slane %v915, %v927
    %v929 = vlaneseq
    %v930 = vshrl.u32 %v929, 7
    %v931 = vsub.s32 2, %v930
    %v932 = vrot.slane %v915, %v931
    %v933 = vlaneseq
    %v934 = vshrl.u32 %v933, 7
    %v935 = vsub.s32 3, %v934
    %v936 = vrot.slane %v915, %v935
    %v941 = vadd.f32 %v916, %v924
    %v942 = vadd.f32 %v917, %v928
    %v943 = vadd.f32 %v918, %v932
    %v944 = vadd.f32 %v919, %v936
    %vm945 = vcmp.gt.f32.partialorder %v941, 0.0
    %vm946 = vcmp.gt.f32.partialorder %v942, 0.0
    %vm947 = vcmp.gt.f32.partialorder %v943, 0.0
    %vm948 = vcmp.gt.f32.partialorder %v944, 0.0
    %v949 = vmul.f32 %v941, 0.2
    %v950 = vmul.f32 %v942, 0.2
    %v951 = vmul.f32 %v943, 0.2
    %v952 = vmul.f32 %v944, 0.2
    %v953 = vsel %vm945, %v941, %v949
    %v954 = vsel %vm946, %v942, %v950
    %v955 = vsel %vm947, %v943, %v951
    %v956 = vsel %vm948, %v944, %v952
    %v957 = vpack.c.bf16 %v953, %v953
    %v958 = vpack.c.bf16 %v954, %v954
    %v959 = vpack.c.bf16 %v955, %v955
    %v960 = vpack.c.bf16 %v956, %v956
    %v961 = vld [vmem:[#allocation13] sm:$0xff]
    %v962 = vld [vmem:[#allocation13 + $0x8] sm:$0xff]
    %v963 = vld [vmem:[#allocation13 + $0x10] sm:$0xff]
    %v964 = vld [vmem:[#allocation13 + $0x18] sm:$0xff]
    %v965 = vld [vmem:[#allocation13 + $0x20] sm:$0xff]
    %v966 = vld [vmem:[#allocation13 + $0x28] sm:$0xff]
    %v967 = vld [vmem:[#allocation13 + $0x30] sm:$0xff]
    %v968 = vld [vmem:[#allocation13 + $0x38] sm:$0xff]
    %v969 = vld [vmem:[#allocation13 + $0x40] sm:$0xff]
    %v970 = vld [vmem:[#allocation13 + $0x48] sm:$0xff]
    %v971 = vld [vmem:[#allocation13 + $0x50] sm:$0xff]
    %v972 = vld [vmem:[#allocation13 + $0x58] sm:$0xff]
    %v973 = vld [vmem:[#allocation13 + $0x60] sm:$0xff]
    %v974 = vld [vmem:[#allocation13 + $0x68] sm:$0xff]
    %v975 = vld [vmem:[#allocation13 + $0x70] sm:$0xff]
    %v976 = vld [vmem:[#allocation13 + $0x78] sm:$0xff]
    %v977 = vld [vmem:[#allocation13 + $0x80] sm:$0xff]
    %v978 = vld [vmem:[#allocation13 + $0x88] sm:$0xff]
    %v979 = vld [vmem:[#allocation13 + $0x90] sm:$0xff]
    %v980 = vld [vmem:[#allocation13 + $0x98] sm:$0xff]
    %v981 = vld [vmem:[#allocation13 + $0xa0] sm:$0xff]
    %v982 = vld [vmem:[#allocation13 + $0xa8] sm:$0xff]
    %v983 = vld [vmem:[#allocation13 + $0xb0] sm:$0xff]
    %v984 = vld [vmem:[#allocation13 + $0xb8] sm:$0xff]
    %v985 = vld [vmem:[#allocation13 + $0xc0] sm:$0xff]
    %v986 = vld [vmem:[#allocation13 + $0xc8] sm:$0xff]
    %v987 = vld [vmem:[#allocation13 + $0xd0] sm:$0xff]
    %v988 = vld [vmem:[#allocation13 + $0xd8] sm:$0xff]
    %v989 = vld [vmem:[#allocation13 + $0xe0] sm:$0xff]
    %v990 = vld [vmem:[#allocation13 + $0xe8] sm:$0xff]
    %v991 = vld [vmem:[#allocation13 + $0xf0] sm:$0xff]
    %v992 = vld [vmem:[#allocation13 + $0xf8] sm:$0xff]
    %v993 = vld [vmem:[#allocation13 + $0x100] sm:$0xff]
    %v994 = vld [vmem:[#allocation13 + $0x108] sm:$0xff]
    %v995 = vld [vmem:[#allocation13 + $0x110] sm:$0xff]
    %v996 = vld [vmem:[#allocation13 + $0x118] sm:$0xff]
    %v997 = vld [vmem:[#allocation13 + $0x120] sm:$0xff]
    %v998 = vld [vmem:[#allocation13 + $0x128] sm:$0xff]
    %v999 = vld [vmem:[#allocation13 + $0x130] sm:$0xff]
    %v1000 = vld [vmem:[#allocation13 + $0x138] sm:$0xff]
    %v1001 = vld [vmem:[#allocation13 + $0x140] sm:$0xff]
    %v1002 = vld [vmem:[#allocation13 + $0x148] sm:$0xff]
    %v1003 = vld [vmem:[#allocation13 + $0x150] sm:$0xff]
    %v1004 = vld [vmem:[#allocation13 + $0x158] sm:$0xff]
    %v1005 = vld [vmem:[#allocation13 + $0x160] sm:$0xff]
    %v1006 = vld [vmem:[#allocation13 + $0x168] sm:$0xff]
    %v1007 = vld [vmem:[#allocation13 + $0x170] sm:$0xff]
    %v1008 = vld [vmem:[#allocation13 + $0x178] sm:$0xff]
    %v1009 = vld [vmem:[#allocation13 + $0x180] sm:$0xff]
    %v1010 = vld [vmem:[#allocation13 + $0x188] sm:$0xff]
    %v1011 = vld [vmem:[#allocation13 + $0x190] sm:$0xff]
    %v1012 = vld [vmem:[#allocation13 + $0x198] sm:$0xff]
    %v1013 = vld [vmem:[#allocation13 + $0x1a0] sm:$0xff]
    %v1014 = vld [vmem:[#allocation13 + $0x1a8] sm:$0xff]
    %v1015 = vld [vmem:[#allocation13 + $0x1b0] sm:$0xff]
    %v1016 = vld [vmem:[#allocation13 + $0x1b8] sm:$0xff]
    %v1017 = vld [vmem:[#allocation13 + $0x1c0] sm:$0xff]
    %v1018 = vld [vmem:[#allocation13 + $0x1c8] sm:$0xff]
    %v1019 = vld [vmem:[#allocation13 + $0x1d0] sm:$0xff]
    %v1020 = vld [vmem:[#allocation13 + $0x1d8] sm:$0xff]
    %v1021 = vld [vmem:[#allocation13 + $0x1e0] sm:$0xff]
    %v1022 = vld [vmem:[#allocation13 + $0x1e8] sm:$0xff]
    %v1023 = vld [vmem:[#allocation13 + $0x1f0] sm:$0xff]
    %v1024 = vld [vmem:[#allocation13 + $0x1f8] sm:$0xff]
    %v1025 = vld [vmem:[#allocation13 + $0x200] sm:$0xff]
    %v1026 = vld [vmem:[#allocation13 + $0x208] sm:$0xff]
    %v1027 = vld [vmem:[#allocation13 + $0x210] sm:$0xff]
    %v1028 = vld [vmem:[#allocation13 + $0x218] sm:$0xff]
    %v1029 = vld [vmem:[#allocation13 + $0x220] sm:$0xff]
    %v1030 = vld [vmem:[#allocation13 + $0x228] sm:$0xff]
    %v1031 = vld [vmem:[#allocation13 + $0x230] sm:$0xff]
    %v1032 = vld [vmem:[#allocation13 + $0x238] sm:$0xff]
    %v1033 = vld [vmem:[#allocation13 + $0x240] sm:$0xff]
    %v1034 = vld [vmem:[#allocation13 + $0x248] sm:$0xff]
    %v1035 = vld [vmem:[#allocation13 + $0x250] sm:$0xff]
    %v1036 = vld [vmem:[#allocation13 + $0x258] sm:$0xff]
    %v1037 = vld [vmem:[#allocation13 + $0x260] sm:$0xff]
    %v1038 = vld [vmem:[#allocation13 + $0x268] sm:$0xff]
    %v1039 = vld [vmem:[#allocation13 + $0x270] sm:$0xff]
    %v1040 = vld [vmem:[#allocation13 + $0x278] sm:$0xff]
    %v1041 = vld [vmem:[#allocation13 + $0x280] sm:$0xff]
    %v1042 = vld [vmem:[#allocation13 + $0x288] sm:$0xff]
    %v1043 = vld [vmem:[#allocation13 + $0x290] sm:$0xff]
    %v1044 = vld [vmem:[#allocation13 + $0x298] sm:$0xff]
    %v1045 = vld [vmem:[#allocation13 + $0x2a0] sm:$0xff]
    %v1046 = vld [vmem:[#allocation13 + $0x2a8] sm:$0xff]
    %v1047 = vld [vmem:[#allocation13 + $0x2b0] sm:$0xff]
    %v1048 = vld [vmem:[#allocation13 + $0x2b8] sm:$0xff]
    %v1049 = vld [vmem:[#allocation13 + $0x2c0] sm:$0xff]
    %v1050 = vld [vmem:[#allocation13 + $0x2c8] sm:$0xff]
    %v1051 = vld [vmem:[#allocation13 + $0x2d0] sm:$0xff]
    %v1052 = vld [vmem:[#allocation13 + $0x2d8] sm:$0xff]
    %v1053 = vld [vmem:[#allocation13 + $0x2e0] sm:$0xff]
    %v1054 = vld [vmem:[#allocation13 + $0x2e8] sm:$0xff]
    %v1055 = vld [vmem:[#allocation13 + $0x2f0] sm:$0xff]
    %v1056 = vld [vmem:[#allocation13 + $0x2f8] sm:$0xff]
    %v1057 = vld [vmem:[#allocation13 + $0x300] sm:$0xff]
    %v1058 = vld [vmem:[#allocation13 + $0x308] sm:$0xff]
    %v1059 = vld [vmem:[#allocation13 + $0x310] sm:$0xff]
    %v1060 = vld [vmem:[#allocation13 + $0x318] sm:$0xff]
    %v1061 = vld [vmem:[#allocation13 + $0x320] sm:$0xff]
    %v1062 = vld [vmem:[#allocation13 + $0x328] sm:$0xff]
    %v1063 = vld [vmem:[#allocation13 + $0x330] sm:$0xff]
    %v1064 = vld [vmem:[#allocation13 + $0x338] sm:$0xff]
    %v1065 = vld [vmem:[#allocation13 + $0x340] sm:$0xff]
    %v1066 = vld [vmem:[#allocation13 + $0x348] sm:$0xff]
    %v1067 = vld [vmem:[#allocation13 + $0x350] sm:$0xff]
    %v1068 = vld [vmem:[#allocation13 + $0x358] sm:$0xff]
    %v1069 = vld [vmem:[#allocation13 + $0x360] sm:$0xff]
    %v1070 = vld [vmem:[#allocation13 + $0x368] sm:$0xff]
    %v1071 = vld [vmem:[#allocation13 + $0x370] sm:$0xff]
    %v1072 = vld [vmem:[#allocation13 + $0x378] sm:$0xff]
    %v1073 = vld [vmem:[#allocation13 + $0x380] sm:$0xff]
    %v1074 = vld [vmem:[#allocation13 + $0x388] sm:$0xff]
    %v1075 = vld [vmem:[#allocation13 + $0x390] sm:$0xff]
    %v1076 = vld [vmem:[#allocation13 + $0x398] sm:$0xff]
    %v1077 = vld [vmem:[#allocation13 + $0x3a0] sm:$0xff]
    %v1078 = vld [vmem:[#allocation13 + $0x3a8] sm:$0xff]
    %v1079 = vld [vmem:[#allocation13 + $0x3b0] sm:$0xff]
    %v1080 = vld [vmem:[#allocation13 + $0x3b8] sm:$0xff]
    %v1081 = vld [vmem:[#allocation13 + $0x3c0] sm:$0xff]
    %v1082 = vld [vmem:[#allocation13 + $0x3c8] sm:$0xff]
    %v1083 = vld [vmem:[#allocation13 + $0x3d0] sm:$0xff]
    %v1084 = vld [vmem:[#allocation13 + $0x3d8] sm:$0xff]
    %v1085 = vld [vmem:[#allocation13 + $0x3e0] sm:$0xff]
    %v1086 = vld [vmem:[#allocation13 + $0x3e8] sm:$0xff]
    %v1087 = vld [vmem:[#allocation13 + $0x3f0] sm:$0xff]
    %v1088 = vld [vmem:[#allocation13 + $0x3f8] sm:$0xff]
    %v1089 = vld [vmem:[#allocation13 + $0x400] sm:$0xff]
    %v1090 = vld [vmem:[#allocation13 + $0x408] sm:$0xff]
    %v1091 = vld [vmem:[#allocation13 + $0x410] sm:$0xff]
    %v1092 = vld [vmem:[#allocation13 + $0x418] sm:$0xff]
    %v1093 = vld [vmem:[#allocation13 + $0x420] sm:$0xff]
    %v1094 = vld [vmem:[#allocation13 + $0x428] sm:$0xff]
    %v1095 = vld [vmem:[#allocation13 + $0x430] sm:$0xff]
    %v1096 = vld [vmem:[#allocation13 + $0x438] sm:$0xff]
    %v1097 = vld [vmem:[#allocation13 + $0x440] sm:$0xff]
    %v1098 = vld [vmem:[#allocation13 + $0x448] sm:$0xff]
    %v1099 = vld [vmem:[#allocation13 + $0x450] sm:$0xff]
    %v1100 = vld [vmem:[#allocation13 + $0x458] sm:$0xff]
    %v1101 = vld [vmem:[#allocation13 + $0x460] sm:$0xff]
    %v1102 = vld [vmem:[#allocation13 + $0x468] sm:$0xff]
    %v1103 = vld [vmem:[#allocation13 + $0x470] sm:$0xff]
    %v1104 = vld [vmem:[#allocation13 + $0x478] sm:$0xff]
    %v1105 = vld [vmem:[#allocation13 + $0x480] sm:$0xff]
    %v1106 = vld [vmem:[#allocation13 + $0x488] sm:$0xff]
    %v1107 = vld [vmem:[#allocation13 + $0x490] sm:$0xff]
    %v1108 = vld [vmem:[#allocation13 + $0x498] sm:$0xff]
    %v1109 = vld [vmem:[#allocation13 + $0x4a0] sm:$0xff]
    %v1110 = vld [vmem:[#allocation13 + $0x4a8] sm:$0xff]
    %v1111 = vld [vmem:[#allocation13 + $0x4b0] sm:$0xff]
    %v1112 = vld [vmem:[#allocation13 + $0x4b8] sm:$0xff]
    %v1113 = vld [vmem:[#allocation13 + $0x4c0] sm:$0xff]
    %v1114 = vld [vmem:[#allocation13 + $0x4c8] sm:$0xff]
    %v1115 = vld [vmem:[#allocation13 + $0x4d0] sm:$0xff]
    %v1116 = vld [vmem:[#allocation13 + $0x4d8] sm:$0xff]
    %v1117 = vld [vmem:[#allocation13 + $0x4e0] sm:$0xff]
    %v1118 = vld [vmem:[#allocation13 + $0x4e8] sm:$0xff]
    %v1119 = vld [vmem:[#allocation13 + $0x4f0] sm:$0xff]
    %v1120 = vld [vmem:[#allocation13 + $0x4f8] sm:$0xff]
    %v1121 = vld [vmem:[#allocation13 + $0x500] sm:$0xff]
    %v1122 = vld [vmem:[#allocation13 + $0x508] sm:$0xff]
    %v1123 = vld [vmem:[#allocation13 + $0x510] sm:$0xff]
    %v1124 = vld [vmem:[#allocation13 + $0x518] sm:$0xff]
    %v1125 = vld [vmem:[#allocation13 + $0x520] sm:$0xff]
    %v1126 = vld [vmem:[#allocation13 + $0x528] sm:$0xff]
    %v1127 = vld [vmem:[#allocation13 + $0x530] sm:$0xff]
    %v1128 = vld [vmem:[#allocation13 + $0x538] sm:$0xff]
    %v1129 = vld [vmem:[#allocation13 + $0x540] sm:$0xff]
    %v1130 = vld [vmem:[#allocation13 + $0x548] sm:$0xff]
    %v1131 = vld [vmem:[#allocation13 + $0x550] sm:$0xff]
    %v1132 = vld [vmem:[#allocation13 + $0x558] sm:$0xff]
    %v1133 = vld [vmem:[#allocation13 + $0x560] sm:$0xff]
    %v1134 = vld [vmem:[#allocation13 + $0x568] sm:$0xff]
    %v1135 = vld [vmem:[#allocation13 + $0x570] sm:$0xff]
    %v1136 = vld [vmem:[#allocation13 + $0x578] sm:$0xff]
    %v1137 = vld [vmem:[#allocation13 + $0x580] sm:$0xff]
    %v1138 = vld [vmem:[#allocation13 + $0x588] sm:$0xff]
    %v1139 = vld [vmem:[#allocation13 + $0x590] sm:$0xff]
    %v1140 = vld [vmem:[#allocation13 + $0x598] sm:$0xff]
    %v1141 = vld [vmem:[#allocation13 + $0x5a0] sm:$0xff]
    %v1142 = vld [vmem:[#allocation13 + $0x5a8] sm:$0xff]
    %v1143 = vld [vmem:[#allocation13 + $0x5b0] sm:$0xff]
    %v1144 = vld [vmem:[#allocation13 + $0x5b8] sm:$0xff]
    %v1145 = vld [vmem:[#allocation13 + $0x5c0] sm:$0xff]
    %v1146 = vld [vmem:[#allocation13 + $0x5c8] sm:$0xff]
    %v1147 = vld [vmem:[#allocation13 + $0x5d0] sm:$0xff]
    %v1148 = vld [vmem:[#allocation13 + $0x5d8] sm:$0xff]
    %v1149 = vld [vmem:[#allocation13 + $0x5e0] sm:$0xff]
    %v1150 = vld [vmem:[#allocation13 + $0x5e8] sm:$0xff]
    %v1151 = vld [vmem:[#allocation13 + $0x5f0] sm:$0xff]
    %v1152 = vld [vmem:[#allocation13 + $0x5f8] sm:$0xff]
    %v1153 = vld [vmem:[#allocation13 + $0x600] sm:$0xff]
    %v1154 = vld [vmem:[#allocation13 + $0x608] sm:$0xff]
    %v1155 = vld [vmem:[#allocation13 + $0x610] sm:$0xff]
    %v1156 = vld [vmem:[#allocation13 + $0x618] sm:$0xff]
    %v1157 = vld [vmem:[#allocation13 + $0x620] sm:$0xff]
    %v1158 = vld [vmem:[#allocation13 + $0x628] sm:$0xff]
    %v1159 = vld [vmem:[#allocation13 + $0x630] sm:$0xff]
    %v1160 = vld [vmem:[#allocation13 + $0x638] sm:$0xff]
    %v1161 = vld [vmem:[#allocation13 + $0x640] sm:$0xff]
    %v1162 = vld [vmem:[#allocation13 + $0x648] sm:$0xff]
    %v1163 = vld [vmem:[#allocation13 + $0x650] sm:$0xff]
    %v1164 = vld [vmem:[#allocation13 + $0x658] sm:$0xff]
    %v1165 = vld [vmem:[#allocation13 + $0x660] sm:$0xff]
    %v1166 = vld [vmem:[#allocation13 + $0x668] sm:$0xff]
    %v1167 = vld [vmem:[#allocation13 + $0x670] sm:$0xff]
    %v1168 = vld [vmem:[#allocation13 + $0x678] sm:$0xff]
    %v1169 = vld [vmem:[#allocation13 + $0x680] sm:$0xff]
    %v1170 = vld [vmem:[#allocation13 + $0x688] sm:$0xff]
    %v1171 = vld [vmem:[#allocation13 + $0x690] sm:$0xff]
    %v1172 = vld [vmem:[#allocation13 + $0x698] sm:$0xff]
    %v1173 = vld [vmem:[#allocation13 + $0x6a0] sm:$0xff]
    %v1174 = vld [vmem:[#allocation13 + $0x6a8] sm:$0xff]
    %v1175 = vld [vmem:[#allocation13 + $0x6b0] sm:$0xff]
    %v1176 = vld [vmem:[#allocation13 + $0x6b8] sm:$0xff]
    %v1177 = vld [vmem:[#allocation13 + $0x6c0] sm:$0xff]
    %v1178 = vld [vmem:[#allocation13 + $0x6c8] sm:$0xff]
    %v1179 = vld [vmem:[#allocation13 + $0x6d0] sm:$0xff]
    %v1180 = vld [vmem:[#allocation13 + $0x6d8] sm:$0xff]
    %v1181 = vld [vmem:[#allocation13 + $0x6e0] sm:$0xff]
    %v1182 = vld [vmem:[#allocation13 + $0x6e8] sm:$0xff]
    %v1183 = vld [vmem:[#allocation13 + $0x6f0] sm:$0xff]
    %v1184 = vld [vmem:[#allocation13 + $0x6f8] sm:$0xff]
    %v1185 = vld [vmem:[#allocation13 + $0x700] sm:$0xff]
    %v1186 = vld [vmem:[#allocation13 + $0x708] sm:$0xff]
    %v1187 = vld [vmem:[#allocation13 + $0x710] sm:$0xff]
    %v1188 = vld [vmem:[#allocation13 + $0x718] sm:$0xff]
    %v1189 = vld [vmem:[#allocation13 + $0x720] sm:$0xff]
    %v1190 = vld [vmem:[#allocation13 + $0x728] sm:$0xff]
    %v1191 = vld [vmem:[#allocation13 + $0x730] sm:$0xff]
    %v1192 = vld [vmem:[#allocation13 + $0x738] sm:$0xff]
    %v1193 = vld [vmem:[#allocation13 + $0x740] sm:$0xff]
    %v1194 = vld [vmem:[#allocation13 + $0x748] sm:$0xff]
    %v1195 = vld [vmem:[#allocation13 + $0x750] sm:$0xff]
    %v1196 = vld [vmem:[#allocation13 + $0x758] sm:$0xff]
    %v1197 = vld [vmem:[#allocation13 + $0x760] sm:$0xff]
    %v1198 = vld [vmem:[#allocation13 + $0x768] sm:$0xff]
    %v1199 = vld [vmem:[#allocation13 + $0x770] sm:$0xff]
    %v1200 = vld [vmem:[#allocation13 + $0x778] sm:$0xff]
    %v1201 = vld [vmem:[#allocation13 + $0x780] sm:$0xff]
    %v1202 = vld [vmem:[#allocation13 + $0x788] sm:$0xff]
    %v1203 = vld [vmem:[#allocation13 + $0x790] sm:$0xff]
    %v1204 = vld [vmem:[#allocation13 + $0x798] sm:$0xff]
    %v1205 = vld [vmem:[#allocation13 + $0x7a0] sm:$0xff]
    %v1206 = vld [vmem:[#allocation13 + $0x7a8] sm:$0xff]
    %v1207 = vld [vmem:[#allocation13 + $0x7b0] sm:$0xff]
    %v1208 = vld [vmem:[#allocation13 + $0x7b8] sm:$0xff]
    %v1209 = vld [vmem:[#allocation13 + $0x7c0] sm:$0xff]
    %v1210 = vld [vmem:[#allocation13 + $0x7c8] sm:$0xff]
    %v1211 = vld [vmem:[#allocation13 + $0x7d0] sm:$0xff]
    %v1212 = vld [vmem:[#allocation13 + $0x7d8] sm:$0xff]
    %v1213 = vld [vmem:[#allocation13 + $0x7e0] sm:$0xff]
    %v1214 = vld [vmem:[#allocation13 + $0x7e8] sm:$0xff]
    %v1215 = vld [vmem:[#allocation13 + $0x7f0] sm:$0xff]
    %v1216 = vld [vmem:[#allocation13 + $0x7f8] sm:$0xff]
    %v1473 = vunpack.c.l.b16 %v961
    %v1474 = vunpack.c.h.b16 %v961
    %v1475 = vunpack.c.l.b16 %v962
    %v1476 = vunpack.c.h.b16 %v962
    %v1477 = vunpack.c.l.b16 %v963
    %v1478 = vunpack.c.h.b16 %v963
    %v1479 = vunpack.c.l.b16 %v964
    %v1480 = vunpack.c.h.b16 %v964
    %v1481 = vunpack.c.l.b16 %v965
    %v1482 = vunpack.c.h.b16 %v965
    %v1483 = vunpack.c.l.b16 %v966
    %v1484 = vunpack.c.h.b16 %v966
    %v1485 = vunpack.c.l.b16 %v967
    %v1486 = vunpack.c.h.b16 %v967
    %v1487 = vunpack.c.l.b16 %v968
    %v1488 = vunpack.c.h.b16 %v968
    %v1489 = vunpack.c.l.b16 %v969
    %v1490 = vunpack.c.h.b16 %v969
    %v1491 = vunpack.c.l.b16 %v970
    %v1492 = vunpack.c.h.b16 %v970
    %v1493 = vunpack.c.l.b16 %v971
    %v1494 = vunpack.c.h.b16 %v971
    %v1495 = vunpack.c.l.b16 %v972
    %v1496 = vunpack.c.h.b16 %v972
    %v1497 = vunpack.c.l.b16 %v973
    %v1498 = vunpack.c.h.b16 %v973
    %v1499 = vunpack.c.l.b16 %v974
    %v1500 = vunpack.c.h.b16 %v974
    %v1501 = vunpack.c.l.b16 %v975
    %v1502 = vunpack.c.h.b16 %v975
    %v1503 = vunpack.c.l.b16 %v976
    %v1504 = vunpack.c.h.b16 %v976
    %v1505 = vunpack.c.l.b16 %v977
    %v1506 = vunpack.c.h.b16 %v977
    %v1507 = vunpack.c.l.b16 %v978
    %v1508 = vunpack.c.h.b16 %v978
    %v1509 = vunpack.c.l.b16 %v979
    %v1510 = vunpack.c.h.b16 %v979
    %v1511 = vunpack.c.l.b16 %v980
    %v1512 = vunpack.c.h.b16 %v980
    %v1513 = vunpack.c.l.b16 %v981
    %v1514 = vunpack.c.h.b16 %v981
    %v1515 = vunpack.c.l.b16 %v982
    %v1516 = vunpack.c.h.b16 %v982
    %v1517 = vunpack.c.l.b16 %v983
    %v1518 = vunpack.c.h.b16 %v983
    %v1519 = vunpack.c.l.b16 %v984
    %v1520 = vunpack.c.h.b16 %v984
    %v1521 = vunpack.c.l.b16 %v985
    %v1522 = vunpack.c.h.b16 %v985
    %v1523 = vunpack.c.l.b16 %v986
    %v1524 = vunpack.c.h.b16 %v986
    %v1525 = vunpack.c.l.b16 %v987
    %v1526 = vunpack.c.h.b16 %v987
    %v1527 = vunpack.c.l.b16 %v988
    %v1528 = vunpack.c.h.b16 %v988
    %v1529 = vunpack.c.l.b16 %v989
    %v1530 = vunpack.c.h.b16 %v989
    %v1531 = vunpack.c.l.b16 %v990
    %v1532 = vunpack.c.h.b16 %v990
    %v1533 = vunpack.c.l.b16 %v991
    %v1534 = vunpack.c.h.b16 %v991
    %v1535 = vunpack.c.l.b16 %v992
    %v1536 = vunpack.c.h.b16 %v992
    %v1537 = vunpack.c.l.b16 %v993
    %v1538 = vunpack.c.h.b16 %v993
    %v1539 = vunpack.c.l.b16 %v994
    %v1540 = vunpack.c.h.b16 %v994
    %v1541 = vunpack.c.l.b16 %v995
    %v1542 = vunpack.c.h.b16 %v995
    %v1543 = vunpack.c.l.b16 %v996
    %v1544 = vunpack.c.h.b16 %v996
    %v1545 = vunpack.c.l.b16 %v997
    %v1546 = vunpack.c.h.b16 %v997
    %v1547 = vunpack.c.l.b16 %v998
    %v1548 = vunpack.c.h.b16 %v998
    %v1549 = vunpack.c.l.b16 %v999
    %v1550 = vunpack.c.h.b16 %v999
    %v1551 = vunpack.c.l.b16 %v1000
    %v1552 = vunpack.c.h.b16 %v1000
    %v1553 = vunpack.c.l.b16 %v1001
    %v1554 = vunpack.c.h.b16 %v1001
    %v1555 = vunpack.c.l.b16 %v1002
    %v1556 = vunpack.c.h.b16 %v1002
    %v1557 = vunpack.c.l.b16 %v1003
    %v1558 = vunpack.c.h.b16 %v1003
    %v1559 = vunpack.c.l.b16 %v1004
    %v1560 = vunpack.c.h.b16 %v1004
    %v1561 = vunpack.c.l.b16 %v1005
    %v1562 = vunpack.c.h.b16 %v1005
    %v1563 = vunpack.c.l.b16 %v1006
    %v1564 = vunpack.c.h.b16 %v1006
    %v1565 = vunpack.c.l.b16 %v1007
    %v1566 = vunpack.c.h.b16 %v1007
    %v1567 = vunpack.c.l.b16 %v1008
    %v1568 = vunpack.c.h.b16 %v1008
    %v1569 = vunpack.c.l.b16 %v1009
    %v1570 = vunpack.c.h.b16 %v1009
    %v1571 = vunpack.c.l.b16 %v1010
    %v1572 = vunpack.c.h.b16 %v1010
    %v1573 = vunpack.c.l.b16 %v1011
    %v1574 = vunpack.c.h.b16 %v1011
    %v1575 = vunpack.c.l.b16 %v1012
    %v1576 = vunpack.c.h.b16 %v1012
    %v1577 = vunpack.c.l.b16 %v1013
    %v1578 = vunpack.c.h.b16 %v1013
    %v1579 = vunpack.c.l.b16 %v1014
    %v1580 = vunpack.c.h.b16 %v1014
    %v1581 = vunpack.c.l.b16 %v1015
    %v1582 = vunpack.c.h.b16 %v1015
    %v1583 = vunpack.c.l.b16 %v1016
    %v1584 = vunpack.c.h.b16 %v1016
    %v1585 = vunpack.c.l.b16 %v1017
    %v1586 = vunpack.c.h.b16 %v1017
    %v1587 = vunpack.c.l.b16 %v1018
    %v1588 = vunpack.c.h.b16 %v1018
    %v1589 = vunpack.c.l.b16 %v1019
    %v1590 = vunpack.c.h.b16 %v1019
    %v1591 = vunpack.c.l.b16 %v1020
    %v1592 = vunpack.c.h.b16 %v1020
    %v1593 = vunpack.c.l.b16 %v1021
    %v1594 = vunpack.c.h.b16 %v1021
    %v1595 = vunpack.c.l.b16 %v1022
    %v1596 = vunpack.c.h.b16 %v1022
    %v1597 = vunpack.c.l.b16 %v1023
    %v1598 = vunpack.c.h.b16 %v1023
    %v1599 = vunpack.c.l.b16 %v1024
    %v1600 = vunpack.c.h.b16 %v1024
    %v1601 = vunpack.c.l.b16 %v1025
    %v1602 = vunpack.c.h.b16 %v1025
    %v1603 = vunpack.c.l.b16 %v1026
    %v1604 = vunpack.c.h.b16 %v1026
    %v1605 = vunpack.c.l.b16 %v1027
    %v1606 = vunpack.c.h.b16 %v1027
    %v1607 = vunpack.c.l.b16 %v1028
    %v1608 = vunpack.c.h.b16 %v1028
    %v1609 = vunpack.c.l.b16 %v1029
    %v1610 = vunpack.c.h.b16 %v1029
    %v1611 = vunpack.c.l.b16 %v1030
    %v1612 = vunpack.c.h.b16 %v1030
    %v1613 = vunpack.c.l.b16 %v1031
    %v1614 = vunpack.c.h.b16 %v1031
    %v1615 = vunpack.c.l.b16 %v1032
    %v1616 = vunpack.c.h.b16 %v1032
    %v1617 = vunpack.c.l.b16 %v1033
    %v1618 = vunpack.c.h.b16 %v1033
    %v1619 = vunpack.c.l.b16 %v1034
    %v1620 = vunpack.c.h.b16 %v1034
    %v1621 = vunpack.c.l.b16 %v1035
    %v1622 = vunpack.c.h.b16 %v1035
    %v1623 = vunpack.c.l.b16 %v1036
    %v1624 = vunpack.c.h.b16 %v1036
    %v1625 = vunpack.c.l.b16 %v1037
    %v1626 = vunpack.c.h.b16 %v1037
    %v1627 = vunpack.c.l.b16 %v1038
    %v1628 = vunpack.c.h.b16 %v1038
    %v1629 = vunpack.c.l.b16 %v1039
    %v1630 = vunpack.c.h.b16 %v1039
    %v1631 = vunpack.c.l.b16 %v1040
    %v1632 = vunpack.c.h.b16 %v1040
    %v1633 = vunpack.c.l.b16 %v1041
    %v1634 = vunpack.c.h.b16 %v1041
    %v1635 = vunpack.c.l.b16 %v1042
    %v1636 = vunpack.c.h.b16 %v1042
    %v1637 = vunpack.c.l.b16 %v1043
    %v1638 = vunpack.c.h.b16 %v1043
    %v1639 = vunpack.c.l.b16 %v1044
    %v1640 = vunpack.c.h.b16 %v1044
    %v1641 = vunpack.c.l.b16 %v1045
    %v1642 = vunpack.c.h.b16 %v1045
    %v1643 = vunpack.c.l.b16 %v1046
    %v1644 = vunpack.c.h.b16 %v1046
    %v1645 = vunpack.c.l.b16 %v1047
    %v1646 = vunpack.c.h.b16 %v1047
    %v1647 = vunpack.c.l.b16 %v1048
    %v1648 = vunpack.c.h.b16 %v1048
    %v1649 = vunpack.c.l.b16 %v1049
    %v1650 = vunpack.c.h.b16 %v1049
    %v1651 = vunpack.c.l.b16 %v1050
    %v1652 = vunpack.c.h.b16 %v1050
    %v1653 = vunpack.c.l.b16 %v1051
    %v1654 = vunpack.c.h.b16 %v1051
    %v1655 = vunpack.c.l.b16 %v1052
    %v1656 = vunpack.c.h.b16 %v1052
    %v1657 = vunpack.c.l.b16 %v1053
    %v1658 = vunpack.c.h.b16 %v1053
    %v1659 = vunpack.c.l.b16 %v1054
    %v1660 = vunpack.c.h.b16 %v1054
    %v1661 = vunpack.c.l.b16 %v1055
    %v1662 = vunpack.c.h.b16 %v1055
    %v1663 = vunpack.c.l.b16 %v1056
    %v1664 = vunpack.c.h.b16 %v1056
    %v1665 = vunpack.c.l.b16 %v1057
    %v1666 = vunpack.c.h.b16 %v1057
    %v1667 = vunpack.c.l.b16 %v1058
    %v1668 = vunpack.c.h.b16 %v1058
    %v1669 = vunpack.c.l.b16 %v1059
    %v1670 = vunpack.c.h.b16 %v1059
    %v1671 = vunpack.c.l.b16 %v1060
    %v1672 = vunpack.c.h.b16 %v1060
    %v1673 = vunpack.c.l.b16 %v1061
    %v1674 = vunpack.c.h.b16 %v1061
    %v1675 = vunpack.c.l.b16 %v1062
    %v1676 = vunpack.c.h.b16 %v1062
    %v1677 = vunpack.c.l.b16 %v1063
    %v1678 = vunpack.c.h.b16 %v1063
    %v1679 = vunpack.c.l.b16 %v1064
    %v1680 = vunpack.c.h.b16 %v1064
    %v1681 = vunpack.c.l.b16 %v1065
    %v1682 = vunpack.c.h.b16 %v1065
    %v1683 = vunpack.c.l.b16 %v1066
    %v1684 = vunpack.c.h.b16 %v1066
    %v1685 = vunpack.c.l.b16 %v1067
    %v1686 = vunpack.c.h.b16 %v1067
    %v1687 = vunpack.c.l.b16 %v1068
    %v1688 = vunpack.c.h.b16 %v1068
    %v1689 = vunpack.c.l.b16 %v1069
    %v1690 = vunpack.c.h.b16 %v1069
    %v1691 = vunpack.c.l.b16 %v1070
    %v1692 = vunpack.c.h.b16 %v1070
    %v1693 = vunpack.c.l.b16 %v1071
    %v1694 = vunpack.c.h.b16 %v1071
    %v1695 = vunpack.c.l.b16 %v1072
    %v1696 = vunpack.c.h.b16 %v1072
    %v1697 = vunpack.c.l.b16 %v1073
    %v1698 = vunpack.c.h.b16 %v1073
    %v1699 = vunpack.c.l.b16 %v1074
    %v1700 = vunpack.c.h.b16 %v1074
    %v1701 = vunpack.c.l.b16 %v1075
    %v1702 = vunpack.c.h.b16 %v1075
    %v1703 = vunpack.c.l.b16 %v1076
    %v1704 = vunpack.c.h.b16 %v1076
    %v1705 = vunpack.c.l.b16 %v1077
    %v1706 = vunpack.c.h.b16 %v1077
    %v1707 = vunpack.c.l.b16 %v1078
    %v1708 = vunpack.c.h.b16 %v1078
    %v1709 = vunpack.c.l.b16 %v1079
    %v1710 = vunpack.c.h.b16 %v1079
    %v1711 = vunpack.c.l.b16 %v1080
    %v1712 = vunpack.c.h.b16 %v1080
    %v1713 = vunpack.c.l.b16 %v1081
    %v1714 = vunpack.c.h.b16 %v1081
    %v1715 = vunpack.c.l.b16 %v1082
    %v1716 = vunpack.c.h.b16 %v1082
    %v1717 = vunpack.c.l.b16 %v1083
    %v1718 = vunpack.c.h.b16 %v1083
    %v1719 = vunpack.c.l.b16 %v1084
    %v1720 = vunpack.c.h.b16 %v1084
    %v1721 = vunpack.c.l.b16 %v1085
    %v1722 = vunpack.c.h.b16 %v1085
    %v1723 = vunpack.c.l.b16 %v1086
    %v1724 = vunpack.c.h.b16 %v1086
    %v1725 = vunpack.c.l.b16 %v1087
    %v1726 = vunpack.c.h.b16 %v1087
    %v1727 = vunpack.c.l.b16 %v1088
    %v1728 = vunpack.c.h.b16 %v1088
    %v1729 = vunpack.c.l.b16 %v1089
    %v1730 = vunpack.c.h.b16 %v1089
    %v1731 = vunpack.c.l.b16 %v1090
    %v1732 = vunpack.c.h.b16 %v1090
    %v1733 = vunpack.c.l.b16 %v1091
    %v1734 = vunpack.c.h.b16 %v1091
    %v1735 = vunpack.c.l.b16 %v1092
    %v1736 = vunpack.c.h.b16 %v1092
    %v1737 = vunpack.c.l.b16 %v1093
    %v1738 = vunpack.c.h.b16 %v1093
    %v1739 = vunpack.c.l.b16 %v1094
    %v1740 = vunpack.c.h.b16 %v1094
    %v1741 = vunpack.c.l.b16 %v1095
    %v1742 = vunpack.c.h.b16 %v1095
    %v1743 = vunpack.c.l.b16 %v1096
    %v1744 = vunpack.c.h.b16 %v1096
    %v1745 = vunpack.c.l.b16 %v1097
    %v1746 = vunpack.c.h.b16 %v1097
    %v1747 = vunpack.c.l.b16 %v1098
    %v1748 = vunpack.c.h.b16 %v1098
    %v1749 = vunpack.c.l.b16 %v1099
    %v1750 = vunpack.c.h.b16 %v1099
    %v1751 = vunpack.c.l.b16 %v1100
    %v1752 = vunpack.c.h.b16 %v1100
    %v1753 = vunpack.c.l.b16 %v1101
    %v1754 = vunpack.c.h.b16 %v1101
    %v1755 = vunpack.c.l.b16 %v1102
    %v1756 = vunpack.c.h.b16 %v1102
    %v1757 = vunpack.c.l.b16 %v1103
    %v1758 = vunpack.c.h.b16 %v1103
    %v1759 = vunpack.c.l.b16 %v1104
    %v1760 = vunpack.c.h.b16 %v1104
    %v1761 = vunpack.c.l.b16 %v1105
    %v1762 = vunpack.c.h.b16 %v1105
    %v1763 = vunpack.c.l.b16 %v1106
    %v1764 = vunpack.c.h.b16 %v1106
    %v1765 = vunpack.c.l.b16 %v1107
    %v1766 = vunpack.c.h.b16 %v1107
    %v1767 = vunpack.c.l.b16 %v1108
    %v1768 = vunpack.c.h.b16 %v1108
    %v1769 = vunpack.c.l.b16 %v1109
    %v1770 = vunpack.c.h.b16 %v1109
    %v1771 = vunpack.c.l.b16 %v1110
    %v1772 = vunpack.c.h.b16 %v1110
    %v1773 = vunpack.c.l.b16 %v1111
    %v1774 = vunpack.c.h.b16 %v1111
    %v1775 = vunpack.c.l.b16 %v1112
    %v1776 = vunpack.c.h.b16 %v1112
    %v1777 = vunpack.c.l.b16 %v1113
    %v1778 = vunpack.c.h.b16 %v1113
    %v1779 = vunpack.c.l.b16 %v1114
    %v1780 = vunpack.c.h.b16 %v1114
    %v1781 = vunpack.c.l.b16 %v1115
    %v1782 = vunpack.c.h.b16 %v1115
    %v1783 = vunpack.c.l.b16 %v1116
    %v1784 = vunpack.c.h.b16 %v1116
    %v1785 = vunpack.c.l.b16 %v1117
    %v1786 = vunpack.c.h.b16 %v1117
    %v1787 = vunpack.c.l.b16 %v1118
    %v1788 = vunpack.c.h.b16 %v1118
    %v1789 = vunpack.c.l.b16 %v1119
    %v1790 = vunpack.c.h.b16 %v1119
    %v1791 = vunpack.c.l.b16 %v1120
    %v1792 = vunpack.c.h.b16 %v1120
    %v1793 = vunpack.c.l.b16 %v1121
    %v1794 = vunpack.c.h.b16 %v1121
    %v1795 = vunpack.c.l.b16 %v1122
    %v1796 = vunpack.c.h.b16 %v1122
    %v1797 = vunpack.c.l.b16 %v1123
    %v1798 = vunpack.c.h.b16 %v1123
    %v1799 = vunpack.c.l.b16 %v1124
    %v1800 = vunpack.c.h.b16 %v1124
    %v1801 = vunpack.c.l.b16 %v1125
    %v1802 = vunpack.c.h.b16 %v1125
    %v1803 = vunpack.c.l.b16 %v1126
    %v1804 = vunpack.c.h.b16 %v1126
    %v1805 = vunpack.c.l.b16 %v1127
    %v1806 = vunpack.c.h.b16 %v1127
    %v1807 = vunpack.c.l.b16 %v1128
    %v1808 = vunpack.c.h.b16 %v1128
    %v1809 = vunpack.c.l.b16 %v1129
    %v1810 = vunpack.c.h.b16 %v1129
    %v1811 = vunpack.c.l.b16 %v1130
    %v1812 = vunpack.c.h.b16 %v1130
    %v1813 = vunpack.c.l.b16 %v1131
    %v1814 = vunpack.c.h.b16 %v1131
    %v1815 = vunpack.c.l.b16 %v1132
    %v1816 = vunpack.c.h.b16 %v1132
    %v1817 = vunpack.c.l.b16 %v1133
    %v1818 = vunpack.c.h.b16 %v1133
    %v1819 = vunpack.c.l.b16 %v1134
    %v1820 = vunpack.c.h.b16 %v1134
    %v1821 = vunpack.c.l.b16 %v1135
    %v1822 = vunpack.c.h.b16 %v1135
    %v1823 = vunpack.c.l.b16 %v1136
    %v1824 = vunpack.c.h.b16 %v1136
    %v1825 = vunpack.c.l.b16 %v1137
    %v1826 = vunpack.c.h.b16 %v1137
    %v1827 = vunpack.c.l.b16 %v1138
    %v1828 = vunpack.c.h.b16 %v1138
    %v1829 = vunpack.c.l.b16 %v1139
    %v1830 = vunpack.c.h.b16 %v1139
    %v1831 = vunpack.c.l.b16 %v1140
    %v1832 = vunpack.c.h.b16 %v1140
    %v1833 = vunpack.c.l.b16 %v1141
    %v1834 = vunpack.c.h.b16 %v1141
    %v1835 = vunpack.c.l.b16 %v1142
    %v1836 = vunpack.c.h.b16 %v1142
    %v1837 = vunpack.c.l.b16 %v1143
    %v1838 = vunpack.c.h.b16 %v1143
    %v1839 = vunpack.c.l.b16 %v1144
    %v1840 = vunpack.c.h.b16 %v1144
    %v1841 = vunpack.c.l.b16 %v1145
    %v1842 = vunpack.c.h.b16 %v1145
    %v1843 = vunpack.c.l.b16 %v1146
    %v1844 = vunpack.c.h.b16 %v1146
    %v1845 = vunpack.c.l.b16 %v1147
    %v1846 = vunpack.c.h.b16 %v1147
    %v1847 = vunpack.c.l.b16 %v1148
    %v1848 = vunpack.c.h.b16 %v1148
    %v1849 = vunpack.c.l.b16 %v1149
    %v1850 = vunpack.c.h.b16 %v1149
    %v1851 = vunpack.c.l.b16 %v1150
    %v1852 = vunpack.c.h.b16 %v1150
    %v1853 = vunpack.c.l.b16 %v1151
    %v1854 = vunpack.c.h.b16 %v1151
    %v1855 = vunpack.c.l.b16 %v1152
    %v1856 = vunpack.c.h.b16 %v1152
    %v1857 = vunpack.c.l.b16 %v1153
    %v1858 = vunpack.c.h.b16 %v1153
    %v1859 = vunpack.c.l.b16 %v1154
    %v1860 = vunpack.c.h.b16 %v1154
    %v1861 = vunpack.c.l.b16 %v1155
    %v1862 = vunpack.c.h.b16 %v1155
    %v1863 = vunpack.c.l.b16 %v1156
    %v1864 = vunpack.c.h.b16 %v1156
    %v1865 = vunpack.c.l.b16 %v1157
    %v1866 = vunpack.c.h.b16 %v1157
    %v1867 = vunpack.c.l.b16 %v1158
    %v1868 = vunpack.c.h.b16 %v1158
    %v1869 = vunpack.c.l.b16 %v1159
    %v1870 = vunpack.c.h.b16 %v1159
    %v1871 = vunpack.c.l.b16 %v1160
    %v1872 = vunpack.c.h.b16 %v1160
    %v1873 = vunpack.c.l.b16 %v1161
    %v1874 = vunpack.c.h.b16 %v1161
    %v1875 = vunpack.c.l.b16 %v1162
    %v1876 = vunpack.c.h.b16 %v1162
    %v1877 = vunpack.c.l.b16 %v1163
    %v1878 = vunpack.c.h.b16 %v1163
    %v1879 = vunpack.c.l.b16 %v1164
    %v1880 = vunpack.c.h.b16 %v1164
    %v1881 = vunpack.c.l.b16 %v1165
    %v1882 = vunpack.c.h.b16 %v1165
    %v1883 = vunpack.c.l.b16 %v1166
    %v1884 = vunpack.c.h.b16 %v1166
    %v1885 = vunpack.c.l.b16 %v1167
    %v1886 = vunpack.c.h.b16 %v1167
    %v1887 = vunpack.c.l.b16 %v1168
    %v1888 = vunpack.c.h.b16 %v1168
    %v1889 = vunpack.c.l.b16 %v1169
    %v1890 = vunpack.c.h.b16 %v1169
    %v1891 = vunpack.c.l.b16 %v1170
    %v1892 = vunpack.c.h.b16 %v1170
    %v1893 = vunpack.c.l.b16 %v1171
    %v1894 = vunpack.c.h.b16 %v1171
    %v1895 = vunpack.c.l.b16 %v1172
    %v1896 = vunpack.c.h.b16 %v1172
    %v1897 = vunpack.c.l.b16 %v1173
    %v1898 = vunpack.c.h.b16 %v1173
    %v1899 = vunpack.c.l.b16 %v1174
    %v1900 = vunpack.c.h.b16 %v1174
    %v1901 = vunpack.c.l.b16 %v1175
    %v1902 = vunpack.c.h.b16 %v1175
    %v1903 = vunpack.c.l.b16 %v1176
    %v1904 = vunpack.c.h.b16 %v1176
    %v1905 = vunpack.c.l.b16 %v1177
    %v1906 = vunpack.c.h.b16 %v1177
    %v1907 = vunpack.c.l.b16 %v1178
    %v1908 = vunpack.c.h.b16 %v1178
    %v1909 = vunpack.c.l.b16 %v1179
    %v1910 = vunpack.c.h.b16 %v1179
    %v1911 = vunpack.c.l.b16 %v1180
    %v1912 = vunpack.c.h.b16 %v1180
    %v1913 = vunpack.c.l.b16 %v1181
    %v1914 = vunpack.c.h.b16 %v1181
    %v1915 = vunpack.c.l.b16 %v1182
    %v1916 = vunpack.c.h.b16 %v1182
    %v1917 = vunpack.c.l.b16 %v1183
    %v1918 = vunpack.c.h.b16 %v1183
    %v1919 = vunpack.c.l.b16 %v1184
    %v1920 = vunpack.c.h.b16 %v1184
    %v1921 = vunpack.c.l.b16 %v1185
    %v1922 = vunpack.c.h.b16 %v1185
    %v1923 = vunpack.c.l.b16 %v1186
    %v1924 = vunpack.c.h.b16 %v1186
    %v1925 = vunpack.c.l.b16 %v1187
    %v1926 = vunpack.c.h.b16 %v1187
    %v1927 = vunpack.c.l.b16 %v1188
    %v1928 = vunpack.c.h.b16 %v1188
    %v1929 = vunpack.c.l.b16 %v1189
    %v1930 = vunpack.c.h.b16 %v1189
    %v1931 = vunpack.c.l.b16 %v1190
    %v1932 = vunpack.c.h.b16 %v1190
    %v1933 = vunpack.c.l.b16 %v1191
    %v1934 = vunpack.c.h.b16 %v1191
    %v1935 = vunpack.c.l.b16 %v1192
    %v1936 = vunpack.c.h.b16 %v1192
    %v1937 = vunpack.c.l.b16 %v1193
    %v1938 = vunpack.c.h.b16 %v1193
    %v1939 = vunpack.c.l.b16 %v1194
    %v1940 = vunpack.c.h.b16 %v1194
    %v1941 = vunpack.c.l.b16 %v1195
    %v1942 = vunpack.c.h.b16 %v1195
    %v1943 = vunpack.c.l.b16 %v1196
    %v1944 = vunpack.c.h.b16 %v1196
    %v1945 = vunpack.c.l.b16 %v1197
    %v1946 = vunpack.c.h.b16 %v1197
    %v1947 = vunpack.c.l.b16 %v1198
    %v1948 = vunpack.c.h.b16 %v1198
    %v1949 = vunpack.c.l.b16 %v1199
    %v1950 = vunpack.c.h.b16 %v1199
    %v1951 = vunpack.c.l.b16 %v1200
    %v1952 = vunpack.c.h.b16 %v1200
    %v1953 = vunpack.c.l.b16 %v1201
    %v1954 = vunpack.c.h.b16 %v1201
    %v1955 = vunpack.c.l.b16 %v1202
    %v1956 = vunpack.c.h.b16 %v1202
    %v1957 = vunpack.c.l.b16 %v1203
    %v1958 = vunpack.c.h.b16 %v1203
    %v1959 = vunpack.c.l.b16 %v1204
    %v1960 = vunpack.c.h.b16 %v1204
    %v1961 = vunpack.c.l.b16 %v1205
    %v1962 = vunpack.c.h.b16 %v1205
    %v1963 = vunpack.c.l.b16 %v1206
    %v1964 = vunpack.c.h.b16 %v1206
    %v1965 = vunpack.c.l.b16 %v1207
    %v1966 = vunpack.c.h.b16 %v1207
    %v1967 = vunpack.c.l.b16 %v1208
    %v1968 = vunpack.c.h.b16 %v1208
    %v1969 = vunpack.c.l.b16 %v1209
    %v1970 = vunpack.c.h.b16 %v1209
    %v1971 = vunpack.c.l.b16 %v1210
    %v1972 = vunpack.c.h.b16 %v1210
    %v1973 = vunpack.c.l.b16 %v1211
    %v1974 = vunpack.c.h.b16 %v1211
    %v1975 = vunpack.c.l.b16 %v1212
    %v1976 = vunpack.c.h.b16 %v1212
    %v1977 = vunpack.c.l.b16 %v1213
    %v1978 = vunpack.c.h.b16 %v1213
    %v1979 = vunpack.c.l.b16 %v1214
    %v1980 = vunpack.c.h.b16 %v1214
    %v1981 = vunpack.c.l.b16 %v1215
    %v1982 = vunpack.c.h.b16 %v1215
    %v1983 = vunpack.c.l.b16 %v1216
    %v1984 = vunpack.c.h.b16 %v1216
    %v1985 = vpack.c.b16 %v1481, %v1473
    %v1986 = vpack.c.b16 %v1482, %v1474
    %v1987 = vpack.c.b16 %v1483, %v1475
    %v1988 = vpack.c.b16 %v1484, %v1476
    %v1989 = vpack.c.b16 %v1485, %v1477
    %v1990 = vpack.c.b16 %v1486, %v1478
    %v1991 = vpack.c.b16 %v1487, %v1479
    %v1992 = vpack.c.b16 %v1488, %v1480
    %v1993 = vpack.c.b16 %v1497, %v1489
    %v1994 = vpack.c.b16 %v1498, %v1490
    %v1995 = vpack.c.b16 %v1499, %v1491
    %v1996 = vpack.c.b16 %v1500, %v1492
    %v1997 = vpack.c.b16 %v1501, %v1493
    %v1998 = vpack.c.b16 %v1502, %v1494
    %v1999 = vpack.c.b16 %v1503, %v1495
    %v2000 = vpack.c.b16 %v1504, %v1496
    %v2001 = vpack.c.b16 %v1513, %v1505
    %v2002 = vpack.c.b16 %v1514, %v1506
    %v2003 = vpack.c.b16 %v1515, %v1507
    %v2004 = vpack.c.b16 %v1516, %v1508
    %v2005 = vpack.c.b16 %v1517, %v1509
    %v2006 = vpack.c.b16 %v1518, %v1510
    %v2007 = vpack.c.b16 %v1519, %v1511
    %v2008 = vpack.c.b16 %v1520, %v1512
    %v2009 = vpack.c.b16 %v1529, %v1521
    %v2010 = vpack.c.b16 %v1530, %v1522
    %v2011 = vpack.c.b16 %v1531, %v1523
    %v2012 = vpack.c.b16 %v1532, %v1524
    %v2013 = vpack.c.b16 %v1533, %v1525
    %v2014 = vpack.c.b16 %v1534, %v1526
    %v2015 = vpack.c.b16 %v1535, %v1527
    %v2016 = vpack.c.b16 %v1536, %v1528
    %v2017 = vpack.c.b16 %v1545, %v1537
    %v2018 = vpack.c.b16 %v1546, %v1538
    %v2019 = vpack.c.b16 %v1547, %v1539
    %v2020 = vpack.c.b16 %v1548, %v1540
    %v2021 = vpack.c.b16 %v1549, %v1541
    %v2022 = vpack.c.b16 %v1550, %v1542
    %v2023 = vpack.c.b16 %v1551, %v1543
    %v2024 = vpack.c.b16 %v1552, %v1544
    %v2025 = vpack.c.b16 %v1561, %v1553
    %v2026 = vpack.c.b16 %v1562, %v1554
    %v2027 = vpack.c.b16 %v1563, %v1555
    %v2028 = vpack.c.b16 %v1564, %v1556
    %v2029 = vpack.c.b16 %v1565, %v1557
    %v2030 = vpack.c.b16 %v1566, %v1558
    %v2031 = vpack.c.b16 %v1567, %v1559
    %v2032 = vpack.c.b16 %v1568, %v1560
    %v2033 = vpack.c.b16 %v1577, %v1569
    %v2034 = vpack.c.b16 %v1578, %v1570
    %v2035 = vpack.c.b16 %v1579, %v1571
    %v2036 = vpack.c.b16 %v1580, %v1572
    %v2037 = vpack.c.b16 %v1581, %v1573
    %v2038 = vpack.c.b16 %v1582, %v1574
    %v2039 = vpack.c.b16 %v1583, %v1575
    %v2040 = vpack.c.b16 %v1584, %v1576
    %v2041 = vpack.c.b16 %v1593, %v1585
    %v2042 = vpack.c.b16 %v1594, %v1586
    %v2043 = vpack.c.b16 %v1595, %v1587
    %v2044 = vpack.c.b16 %v1596, %v1588
    %v2045 = vpack.c.b16 %v1597, %v1589
    %v2046 = vpack.c.b16 %v1598, %v1590
    %v2047 = vpack.c.b16 %v1599, %v1591
    %v2048 = vpack.c.b16 %v1600, %v1592
    %v2049 = vpack.c.b16 %v1609, %v1601
    %v2050 = vpack.c.b16 %v1610, %v1602
    %v2051 = vpack.c.b16 %v1611, %v1603
    %v2052 = vpack.c.b16 %v1612, %v1604
    %v2053 = vpack.c.b16 %v1613, %v1605
    %v2054 = vpack.c.b16 %v1614, %v1606
    %v2055 = vpack.c.b16 %v1615, %v1607
    %v2056 = vpack.c.b16 %v1616, %v1608
    %v2057 = vpack.c.b16 %v1625, %v1617
    %v2058 = vpack.c.b16 %v1626, %v1618
    %v2059 = vpack.c.b16 %v1627, %v1619
    %v2060 = vpack.c.b16 %v1628, %v1620
    %v2061 = vpack.c.b16 %v1629, %v1621
    %v2062 = vpack.c.b16 %v1630, %v1622
    %v2063 = vpack.c.b16 %v1631, %v1623
    %v2064 = vpack.c.b16 %v1632, %v1624
    %v2065 = vpack.c.b16 %v1641, %v1633
    %v2066 = vpack.c.b16 %v1642, %v1634
    %v2067 = vpack.c.b16 %v1643, %v1635
    %v2068 = vpack.c.b16 %v1644, %v1636
    %v2069 = vpack.c.b16 %v1645, %v1637
    %v2070 = vpack.c.b16 %v1646, %v1638
    %v2071 = vpack.c.b16 %v1647, %v1639
    %v2072 = vpack.c.b16 %v1648, %v1640
    %v2073 = vpack.c.b16 %v1657, %v1649
    %v2074 = vpack.c.b16 %v1658, %v1650
    %v2075 = vpack.c.b16 %v1659, %v1651
    %v2076 = vpack.c.b16 %v1660, %v1652
    %v2077 = vpack.c.b16 %v1661, %v1653
    %v2078 = vpack.c.b16 %v1662, %v1654
    %v2079 = vpack.c.b16 %v1663, %v1655
    %v2080 = vpack.c.b16 %v1664, %v1656
    %v2081 = vpack.c.b16 %v1673, %v1665
    %v2082 = vpack.c.b16 %v1674, %v1666
    %v2083 = vpack.c.b16 %v1675, %v1667
    %v2084 = vpack.c.b16 %v1676, %v1668
    %v2085 = vpack.c.b16 %v1677, %v1669
    %v2086 = vpack.c.b16 %v1678, %v1670
    %v2087 = vpack.c.b16 %v1679, %v1671
    %v2088 = vpack.c.b16 %v1680, %v1672
    %v2089 = vpack.c.b16 %v1689, %v1681
    %v2090 = vpack.c.b16 %v1690, %v1682
    %v2091 = vpack.c.b16 %v1691, %v1683
    %v2092 = vpack.c.b16 %v1692, %v1684
    %v2093 = vpack.c.b16 %v1693, %v1685
    %v2094 = vpack.c.b16 %v1694, %v1686
    %v2095 = vpack.c.b16 %v1695, %v1687
    %v2096 = vpack.c.b16 %v1696, %v1688
    %v2097 = vpack.c.b16 %v1705, %v1697
    %v2098 = vpack.c.b16 %v1706, %v1698
    %v2099 = vpack.c.b16 %v1707, %v1699
    %v2100 = vpack.c.b16 %v1708, %v1700
    %v2101 = vpack.c.b16 %v1709, %v1701
    %v2102 = vpack.c.b16 %v1710, %v1702
    %v2103 = vpack.c.b16 %v1711, %v1703
    %v2104 = vpack.c.b16 %v1712, %v1704
    %v2105 = vpack.c.b16 %v1721, %v1713
    %v2106 = vpack.c.b16 %v1722, %v1714
    %v2107 = vpack.c.b16 %v1723, %v1715
    %v2108 = vpack.c.b16 %v1724, %v1716
    %v2109 = vpack.c.b16 %v1725, %v1717
    %v2110 = vpack.c.b16 %v1726, %v1718
    %v2111 = vpack.c.b16 %v1727, %v1719
    %v2112 = vpack.c.b16 %v1728, %v1720
    %v2113 = vpack.c.b16 %v1737, %v1729
    %v2114 = vpack.c.b16 %v1738, %v1730
    %v2115 = vpack.c.b16 %v1739, %v1731
    %v2116 = vpack.c.b16 %v1740, %v1732
    %v2117 = vpack.c.b16 %v1741, %v1733
    %v2118 = vpack.c.b16 %v1742, %v1734
    %v2119 = vpack.c.b16 %v1743, %v1735
    %v2120 = vpack.c.b16 %v1744, %v1736
    %v2121 = vpack.c.b16 %v1753, %v1745
    %v2122 = vpack.c.b16 %v1754, %v1746
    %v2123 = vpack.c.b16 %v1755, %v1747
    %v2124 = vpack.c.b16 %v1756, %v1748
    %v2125 = vpack.c.b16 %v1757, %v1749
    %v2126 = vpack.c.b16 %v1758, %v1750
    %v2127 = vpack.c.b16 %v1759, %v1751
    %v2128 = vpack.c.b16 %v1760, %v1752
    %v2129 = vpack.c.b16 %v1769, %v1761
    %v2130 = vpack.c.b16 %v1770, %v1762
    %v2131 = vpack.c.b16 %v1771, %v1763
    %v2132 = vpack.c.b16 %v1772, %v1764
    %v2133 = vpack.c.b16 %v1773, %v1765
    %v2134 = vpack.c.b16 %v1774, %v1766
    %v2135 = vpack.c.b16 %v1775, %v1767
    %v2136 = vpack.c.b16 %v1776, %v1768
    %v2137 = vpack.c.b16 %v1785, %v1777
    %v2138 = vpack.c.b16 %v1786, %v1778
    %v2139 = vpack.c.b16 %v1787, %v1779
    %v2140 = vpack.c.b16 %v1788, %v1780
    %v2141 = vpack.c.b16 %v1789, %v1781
    %v2142 = vpack.c.b16 %v1790, %v1782
    %v2143 = vpack.c.b16 %v1791, %v1783
    %v2144 = vpack.c.b16 %v1792, %v1784
    %v2145 = vpack.c.b16 %v1801, %v1793
    %v2146 = vpack.c.b16 %v1802, %v1794
    %v2147 = vpack.c.b16 %v1803, %v1795
    %v2148 = vpack.c.b16 %v1804, %v1796
    %v2149 = vpack.c.b16 %v1805, %v1797
    %v2150 = vpack.c.b16 %v1806, %v1798
    %v2151 = vpack.c.b16 %v1807, %v1799
    %v2152 = vpack.c.b16 %v1808, %v1800
    %v2153 = vpack.c.b16 %v1817, %v1809
    %v2154 = vpack.c.b16 %v1818, %v1810
    %v2155 = vpack.c.b16 %v1819, %v1811
    %v2156 = vpack.c.b16 %v1820, %v1812
    %v2157 = vpack.c.b16 %v1821, %v1813
    %v2158 = vpack.c.b16 %v1822, %v1814
    %v2159 = vpack.c.b16 %v1823, %v1815
    %v2160 = vpack.c.b16 %v1824, %v1816
    %v2161 = vpack.c.b16 %v1833, %v1825
    %v2162 = vpack.c.b16 %v1834, %v1826
    %v2163 = vpack.c.b16 %v1835, %v1827
    %v2164 = vpack.c.b16 %v1836, %v1828
    %v2165 = vpack.c.b16 %v1837, %v1829
    %v2166 = vpack.c.b16 %v1838, %v1830
    %v2167 = vpack.c.b16 %v1839, %v1831
    %v2168 = vpack.c.b16 %v1840, %v1832
    %v2169 = vpack.c.b16 %v1849, %v1841
    %v2170 = vpack.c.b16 %v1850, %v1842
    %v2171 = vpack.c.b16 %v1851, %v1843
    %v2172 = vpack.c.b16 %v1852, %v1844
    %v2173 = vpack.c.b16 %v1853, %v1845
    %v2174 = vpack.c.b16 %v1854, %v1846
    %v2175 = vpack.c.b16 %v1855, %v1847
    %v2176 = vpack.c.b16 %v1856, %v1848
    %v2177 = vpack.c.b16 %v1865, %v1857
    %v2178 = vpack.c.b16 %v1866, %v1858
    %v2179 = vpack.c.b16 %v1867, %v1859
    %v2180 = vpack.c.b16 %v1868, %v1860
    %v2181 = vpack.c.b16 %v1869, %v1861
    %v2182 = vpack.c.b16 %v1870, %v1862
    %v2183 = vpack.c.b16 %v1871, %v1863
    %v2184 = vpack.c.b16 %v1872, %v1864
    %v2185 = vpack.c.b16 %v1881, %v1873
    %v2186 = vpack.c.b16 %v1882, %v1874
    %v2187 = vpack.c.b16 %v1883, %v1875
    %v2188 = vpack.c.b16 %v1884, %v1876
    %v2189 = vpack.c.b16 %v1885, %v1877
    %v2190 = vpack.c.b16 %v1886, %v1878
    %v2191 = vpack.c.b16 %v1887, %v1879
    %v2192 = vpack.c.b16 %v1888, %v1880
    %v2193 = vpack.c.b16 %v1897, %v1889
    %v2194 = vpack.c.b16 %v1898, %v1890
    %v2195 = vpack.c.b16 %v1899, %v1891
    %v2196 = vpack.c.b16 %v1900, %v1892
    %v2197 = vpack.c.b16 %v1901, %v1893
    %v2198 = vpack.c.b16 %v1902, %v1894
    %v2199 = vpack.c.b16 %v1903, %v1895
    %v2200 = vpack.c.b16 %v1904, %v1896
    %v2201 = vpack.c.b16 %v1913, %v1905
    %v2202 = vpack.c.b16 %v1914, %v1906
    %v2203 = vpack.c.b16 %v1915, %v1907
    %v2204 = vpack.c.b16 %v1916, %v1908
    %v2205 = vpack.c.b16 %v1917, %v1909
    %v2206 = vpack.c.b16 %v1918, %v1910
    %v2207 = vpack.c.b16 %v1919, %v1911
    %v2208 = vpack.c.b16 %v1920, %v1912
    %v2209 = vpack.c.b16 %v1929, %v1921
    %v2210 = vpack.c.b16 %v1930, %v1922
    %v2211 = vpack.c.b16 %v1931, %v1923
    %v2212 = vpack.c.b16 %v1932, %v1924
    %v2213 = vpack.c.b16 %v1933, %v1925
    %v2214 = vpack.c.b16 %v1934, %v1926
    %v2215 = vpack.c.b16 %v1935, %v1927
    %v2216 = vpack.c.b16 %v1936, %v1928
    %v2217 = vpack.c.b16 %v1945, %v1937
    %v2218 = vpack.c.b16 %v1946, %v1938
    %v2219 = vpack.c.b16 %v1947, %v1939
    %v2220 = vpack.c.b16 %v1948, %v1940
    %v2221 = vpack.c.b16 %v1949, %v1941
    %v2222 = vpack.c.b16 %v1950, %v1942
    %v2223 = vpack.c.b16 %v1951, %v1943
    %v2224 = vpack.c.b16 %v1952, %v1944
    %v2225 = vpack.c.b16 %v1961, %v1953
    %v2226 = vpack.c.b16 %v1962, %v1954
    %v2227 = vpack.c.b16 %v1963, %v1955
    %v2228 = vpack.c.b16 %v1964, %v1956
    %v2229 = vpack.c.b16 %v1965, %v1957
    %v2230 = vpack.c.b16 %v1966, %v1958
    %v2231 = vpack.c.b16 %v1967, %v1959
    %v2232 = vpack.c.b16 %v1968, %v1960
    %v2233 = vpack.c.b16 %v1977, %v1969
    %v2234 = vpack.c.b16 %v1978, %v1970
    %v2235 = vpack.c.b16 %v1979, %v1971
    %v2236 = vpack.c.b16 %v1980, %v1972
    %v2237 = vpack.c.b16 %v1981, %v1973
    %v2238 = vpack.c.b16 %v1982, %v1974
    %v2239 = vpack.c.b16 %v1983, %v1975
    %v2240 = vpack.c.b16 %v1984, %v1976
    %2497 = vmatprep.subr.bf16.mxu0 %v2042
    %2498 = vmatpush1.bf16.msra.mxu0 %v2041
    %2499 = vmatprep.subr.bf16.mxu0 %v2034
    %2500 = vmatpush1.bf16.msra.mxu0 %v2033
    %2501 = vmatprep.subr.bf16.mxu0 %v2026
    %2502 = vmatpush1.bf16.msra.mxu0 %v2025
    %2503 = vmatprep.subr.bf16.mxu0 %v2018
    %2504 = vmatpush1.bf16.msra.mxu0 %v2017
    %2505 = vmatprep.subr.bf16.mxu0 %v2010
    %2506 = vmatpush1.bf16.msra.mxu0 %v2009
    %2507 = vmatprep.subr.bf16.mxu0 %v2002
    %2508 = vmatpush1.bf16.msra.mxu0 %v2001
    %2509 = vmatprep.subr.bf16.mxu0 %v1994
    %2510 = vmatpush1.bf16.msra.mxu0 %v1993
    %2511 = vmatprep.subr.bf16.mxu0 %v1986
    %2512 = vmatpush1.bf16.msra.mxu0 %v1985
    %2513 = vmatprep.subr.bf16.mxu0 %v2106
    %2514 = vmatpush2.bf16.msra.mxu0 %v2105
    %2515 = vmatprep.subr.bf16.mxu0 %v2098
    %2516 = vmatpush2.bf16.msra.mxu0 %v2097
    %2517 = vmatprep.subr.bf16.mxu0 %v2090
    %2518 = vmatpush2.bf16.msra.mxu0 %v2089
    %2519 = vmatprep.subr.bf16.mxu0 %v2082
    %2520 = vmatpush2.bf16.msra.mxu0 %v2081
    %2521 = vmatprep.subr.bf16.mxu0 %v2074
    %2522 = vmatpush2.bf16.msra.mxu0 %v2073
    %2523 = vmatprep.subr.bf16.mxu0 %v2066
    %2524 = vmatpush2.bf16.msra.mxu0 %v2065
    %2525 = vmatprep.subr.bf16.mxu0 %v2058
    %2526 = vmatpush2.bf16.msra.mxu0 %v2057
    %2527 = vmatprep.subr.bf16.mxu0 %v2050
    %2528 = vmatpush2.bf16.msra.mxu0 %v2049
    %2529 = vmatprep.mubr.bf16.mxu0 %v958
    %2530 = vmatmul.mubr.bf16.gmra.mxu0 %v957
    %v2531 = vpop.f32.mrf.mxu0
    %v2532 = vadd.f32 0.0, %v2531
    %v2533 = vpop.f32.mrf.mxu0
    %v2534 = vadd.f32 0.0, %v2533
    %v2535 = vpop.f32.mrf.mxu0
    %v2536 = vpop.f32.mrf.mxu0
    %2537 = vdwg.mxu0
    %2538 = vmatprep.subr.bf16.mxu0 %v2170
    %2539 = vmatpush1.bf16.msra.mxu0 %v2169
    %2540 = vmatprep.subr.bf16.mxu0 %v2162
    %2541 = vmatpush1.bf16.msra.mxu0 %v2161
    %2542 = vmatprep.subr.bf16.mxu0 %v2154
    %2543 = vmatpush1.bf16.msra.mxu0 %v2153
    %2544 = vmatprep.subr.bf16.mxu0 %v2146
    %2545 = vmatpush1.bf16.msra.mxu0 %v2145
    %2546 = vmatprep.subr.bf16.mxu0 %v2138
    %2547 = vmatpush1.bf16.msra.mxu0 %v2137
    %2548 = vmatprep.subr.bf16.mxu0 %v2130
    %2549 = vmatpush1.bf16.msra.mxu0 %v2129
    %2550 = vmatprep.subr.bf16.mxu0 %v2122
    %2551 = vmatpush1.bf16.msra.mxu0 %v2121
    %2552 = vmatprep.subr.bf16.mxu0 %v2114
    %2553 = vmatpush1.bf16.msra.mxu0 %v2113
    %2554 = vmatprep.subr.bf16.mxu0 %v2234
    %2555 = vmatpush2.bf16.msra.mxu0 %v2233
    %2556 = vmatprep.subr.bf16.mxu0 %v2226
    %2557 = vmatpush2.bf16.msra.mxu0 %v2225
    %2558 = vmatprep.subr.bf16.mxu0 %v2218
    %2559 = vmatpush2.bf16.msra.mxu0 %v2217
    %2560 = vmatprep.subr.bf16.mxu0 %v2210
    %2561 = vmatpush2.bf16.msra.mxu0 %v2209
    %2562 = vmatprep.subr.bf16.mxu0 %v2202
    %2563 = vmatpush2.bf16.msra.mxu0 %v2201
    %2564 = vmatprep.subr.bf16.mxu0 %v2194
    %2565 = vmatpush2.bf16.msra.mxu0 %v2193
    %2566 = vmatprep.subr.bf16.mxu0 %v2186
    %2567 = vmatpush2.bf16.msra.mxu0 %v2185
    %2568 = vmatprep.subr.bf16.mxu0 %v2178
    %2569 = vmatpush2.bf16.msra.mxu0 %v2177
    %2570 = vmatprep.mubr.bf16.mxu0 %v960
    %2571 = vmatmul.mubr.bf16.gmra.mxu0 %v959
    %v2572 = vpop.f32.mrf.mxu0
    %v2573 = vadd.f32 %v2532, %v2572
    %v2574 = vpop.f32.mrf.mxu0
    %v2575 = vadd.f32 %v2534, %v2574
    %v2576 = vpop.f32.mrf.mxu0
    %v2577 = vpop.f32.mrf.mxu0
    %2578 = vdwg.mxu0
    %2579 = vmatprep.subr.bf16.mxu0 %v2044
    %2580 = vmatpush1.bf16.msra.mxu0 %v2043
    %2581 = vmatprep.subr.bf16.mxu0 %v2036
    %2582 = vmatpush1.bf16.msra.mxu0 %v2035
    %2583 = vmatprep.subr.bf16.mxu0 %v2028
    %2584 = vmatpush1.bf16.msra.mxu0 %v2027
    %2585 = vmatprep.subr.bf16.mxu0 %v2020
    %2586 = vmatpush1.bf16.msra.mxu0 %v2019
    %2587 = vmatprep.subr.bf16.mxu0 %v2012
    %2588 = vmatpush1.bf16.msra.mxu0 %v2011
    %2589 = vmatprep.subr.bf16.mxu0 %v2004
    %2590 = vmatpush1.bf16.msra.mxu0 %v2003
    %2591 = vmatprep.subr.bf16.mxu0 %v1996
    %2592 = vmatpush1.bf16.msra.mxu0 %v1995
    %2593 = vmatprep.subr.bf16.mxu0 %v1988
    %2594 = vmatpush1.bf16.msra.mxu0 %v1987
    %2595 = vmatprep.subr.bf16.mxu0 %v2108
    %2596 = vmatpush2.bf16.msra.mxu0 %v2107
    %2597 = vmatprep.subr.bf16.mxu0 %v2100
    %2598 = vmatpush2.bf16.msra.mxu0 %v2099
    %2599 = vmatprep.subr.bf16.mxu0 %v2092
    %2600 = vmatpush2.bf16.msra.mxu0 %v2091
    %2601 = vmatprep.subr.bf16.mxu0 %v2084
    %2602 = vmatpush2.bf16.msra.mxu0 %v2083
    %2603 = vmatprep.subr.bf16.mxu0 %v2076
    %2604 = vmatpush2.bf16.msra.mxu0 %v2075
    %2605 = vmatprep.subr.bf16.mxu0 %v2068
    %2606 = vmatpush2.bf16.msra.mxu0 %v2067
    %2607 = vmatprep.subr.bf16.mxu0 %v2060
    %2608 = vmatpush2.bf16.msra.mxu0 %v2059
    %2609 = vmatprep.subr.bf16.mxu0 %v2052
    %2610 = vmatpush2.bf16.msra.mxu0 %v2051
    %2611 = vmatprep.mubr.bf16.mxu0 %v958
    %2612 = vmatmul.mubr.bf16.gmra.mxu0 %v957
    %v2613 = vpop.f32.mrf.mxu0
    %v2614 = vadd.f32 0.0, %v2613
    %v2615 = vpop.f32.mrf.mxu0
    %v2616 = vadd.f32 0.0, %v2615
    %v2617 = vpop.f32.mrf.mxu0
    %v2618 = vpop.f32.mrf.mxu0
    %2619 = vdwg.mxu0
    %2620 = vmatprep.subr.bf16.mxu0 %v2172
    %2621 = vmatpush1.bf16.msra.mxu0 %v2171
    %2622 = vmatprep.subr.bf16.mxu0 %v2164
    %2623 = vmatpush1.bf16.msra.mxu0 %v2163
    %2624 = vmatprep.subr.bf16.mxu0 %v2156
    %2625 = vmatpush1.bf16.msra.mxu0 %v2155
    %2626 = vmatprep.subr.bf16.mxu0 %v2148
    %2627 = vmatpush1.bf16.msra.mxu0 %v2147
    %2628 = vmatprep.subr.bf16.mxu0 %v2140
    %2629 = vmatpush1.bf16.msra.mxu0 %v2139
    %2630 = vmatprep.subr.bf16.mxu0 %v2132
    %2631 = vmatpush1.bf16.msra.mxu0 %v2131
    %2632 = vmatprep.subr.bf16.mxu0 %v2124
    %2633 = vmatpush1.bf16.msra.mxu0 %v2123
    %2634 = vmatprep.subr.bf16.mxu0 %v2116
    %2635 = vmatpush1.bf16.msra.mxu0 %v2115
    %2636 = vmatprep.subr.bf16.mxu0 %v2236
    %2637 = vmatpush2.bf16.msra.mxu0 %v2235
    %2638 = vmatprep.subr.bf16.mxu0 %v2228
    %2639 = vmatpush2.bf16.msra.mxu0 %v2227
    %2640 = vmatprep.subr.bf16.mxu0 %v2220
    %2641 = vmatpush2.bf16.msra.mxu0 %v2219
    %2642 = vmatprep.subr.bf16.mxu0 %v2212
    %2643 = vmatpush2.bf16.msra.mxu0 %v2211
    %2644 = vmatprep.subr.bf16.mxu0 %v2204
    %2645 = vmatpush2.bf16.msra.mxu0 %v2203
    %2646 = vmatprep.subr.bf16.mxu0 %v2196
    %2647 = vmatpush2.bf16.msra.mxu0 %v2195
    %2648 = vmatprep.subr.bf16.mxu0 %v2188
    %2649 = vmatpush2.bf16.msra.mxu0 %v2187
    %2650 = vmatprep.subr.bf16.mxu0 %v2180
    %2651 = vmatpush2.bf16.msra.mxu0 %v2179
    %2652 = vmatprep.mubr.bf16.mxu0 %v960
    %2653 = vmatmul.mubr.bf16.gmra.mxu0 %v959
    %v2654 = vpop.f32.mrf.mxu0
    %v2655 = vadd.f32 %v2614, %v2654
    %v2656 = vpop.f32.mrf.mxu0
    %v2657 = vadd.f32 %v2616, %v2656
    %v2658 = vpop.f32.mrf.mxu0
    %v2659 = vpop.f32.mrf.mxu0
    %2660 = vdwg.mxu0
    %2661 = vmatprep.subr.bf16.mxu0 %v2046
    %2662 = vmatpush1.bf16.msra.mxu0 %v2045
    %2663 = vmatprep.subr.bf16.mxu0 %v2038
    %2664 = vmatpush1.bf16.msra.mxu0 %v2037
    %2665 = vmatprep.subr.bf16.mxu0 %v2030
    %2666 = vmatpush1.bf16.msra.mxu0 %v2029
    %2667 = vmatprep.subr.bf16.mxu0 %v2022
    %2668 = vmatpush1.bf16.msra.mxu0 %v2021
    %2669 = vmatprep.subr.bf16.mxu0 %v2014
    %2670 = vmatpush1.bf16.msra.mxu0 %v2013
    %2671 = vmatprep.subr.bf16.mxu0 %v2006
    %2672 = vmatpush1.bf16.msra.mxu0 %v2005
    %2673 = vmatprep.subr.bf16.mxu0 %v1998
    %2674 = vmatpush1.bf16.msra.mxu0 %v1997
    %2675 = vmatprep.subr.bf16.mxu0 %v1990
    %2676 = vmatpush1.bf16.msra.mxu0 %v1989
    %2677 = vmatprep.subr.bf16.mxu0 %v2110
    %2678 = vmatpush2.bf16.msra.mxu0 %v2109
    %2679 = vmatprep.subr.bf16.mxu0 %v2102
    %2680 = vmatpush2.bf16.msra.mxu0 %v2101
    %2681 = vmatprep.subr.bf16.mxu0 %v2094
    %2682 = vmatpush2.bf16.msra.mxu0 %v2093
    %2683 = vmatprep.subr.bf16.mxu0 %v2086
    %2684 = vmatpush2.bf16.msra.mxu0 %v2085
    %2685 = vmatprep.subr.bf16.mxu0 %v2078
    %2686 = vmatpush2.bf16.msra.mxu0 %v2077
    %2687 = vmatprep.subr.bf16.mxu0 %v2070
    %2688 = vmatpush2.bf16.msra.mxu0 %v2069
    %2689 = vmatprep.subr.bf16.mxu0 %v2062
    %2690 = vmatpush2.bf16.msra.mxu0 %v2061
    %2691 = vmatprep.subr.bf16.mxu0 %v2054
    %2692 = vmatpush2.bf16.msra.mxu0 %v2053
    %2693 = vmatprep.mubr.bf16.mxu0 %v958
    %2694 = vmatmul.mubr.bf16.gmra.mxu0 %v957
    %v2695 = vpop.f32.mrf.mxu0
    %v2696 = vadd.f32 0.0, %v2695
    %v2697 = vpop.f32.mrf.mxu0
    %v2698 = vadd.f32 0.0, %v2697
    %v2699 = vpop.f32.mrf.mxu0
    %v2700 = vpop.f32.mrf.mxu0
    %2701 = vdwg.mxu0
    %2702 = vmatprep.subr.bf16.mxu0 %v2174
    %2703 = vmatpush1.bf16.msra.mxu0 %v2173
    %2704 = vmatprep.subr.bf16.mxu0 %v2166
    %2705 = vmatpush1.bf16.msra.mxu0 %v2165
    %2706 = vmatprep.subr.bf16.mxu0 %v2158
    %2707 = vmatpush1.bf16.msra.mxu0 %v2157
    %2708 = vmatprep.subr.bf16.mxu0 %v2150
    %2709 = vmatpush1.bf16.msra.mxu0 %v2149
    %2710 = vmatprep.subr.bf16.mxu0 %v2142
    %2711 = vmatpush1.bf16.msra.mxu0 %v2141
    %2712 = vmatprep.subr.bf16.mxu0 %v2134
    %2713 = vmatpush1.bf16.msra.mxu0 %v2133
    %2714 = vmatprep.subr.bf16.mxu0 %v2126
    %2715 = vmatpush1.bf16.msra.mxu0 %v2125
    %2716 = vmatprep.subr.bf16.mxu0 %v2118
    %2717 = vmatpush1.bf16.msra.mxu0 %v2117
    %2718 = vmatprep.subr.bf16.mxu0 %v2238
    %2719 = vmatpush2.bf16.msra.mxu0 %v2237
    %2720 = vmatprep.subr.bf16.mxu0 %v2230
    %2721 = vmatpush2.bf16.msra.mxu0 %v2229
    %2722 = vmatprep.subr.bf16.mxu0 %v2222
    %2723 = vmatpush2.bf16.msra.mxu0 %v2221
    %2724 = vmatprep.subr.bf16.mxu0 %v2214
    %2725 = vmatpush2.bf16.msra.mxu0 %v2213
    %2726 = vmatprep.subr.bf16.mxu0 %v2206
    %2727 = vmatpush2.bf16.msra.mxu0 %v2205
    %2728 = vmatprep.subr.bf16.mxu0 %v2198
    %2729 = vmatpush2.bf16.msra.mxu0 %v2197
    %2730 = vmatprep.subr.bf16.mxu0 %v2190
    %2731 = vmatpush2.bf16.msra.mxu0 %v2189
    %2732 = vmatprep.subr.bf16.mxu0 %v2182
    %2733 = vmatpush2.bf16.msra.mxu0 %v2181
    %2734 = vmatprep.mubr.bf16.mxu0 %v960
    %2735 = vmatmul.mubr.bf16.gmra.mxu0 %v959
    %v2736 = vpop.f32.mrf.mxu0
    %v2737 = vadd.f32 %v2696, %v2736
    %v2738 = vpop.f32.mrf.mxu0
    %v2739 = vadd.f32 %v2698, %v2738
    %v2740 = vpop.f32.mrf.mxu0
    %v2741 = vpop.f32.mrf.mxu0
    %2742 = vdwg.mxu0
    %2743 = vmatprep.subr.bf16.mxu0 %v2048
    %2744 = vmatpush1.bf16.msra.mxu0 %v2047
    %2745 = vmatprep.subr.bf16.mxu0 %v2040
    %2746 = vmatpush1.bf16.msra.mxu0 %v2039
    %2747 = vmatprep.subr.bf16.mxu0 %v2032
    %2748 = vmatpush1.bf16.msra.mxu0 %v2031
    %2749 = vmatprep.subr.bf16.mxu0 %v2024
    %2750 = vmatpush1.bf16.msra.mxu0 %v2023
    %2751 = vmatprep.subr.bf16.mxu0 %v2016
    %2752 = vmatpush1.bf16.msra.mxu0 %v2015
    %2753 = vmatprep.subr.bf16.mxu0 %v2008
    %2754 = vmatpush1.bf16.msra.mxu0 %v2007
    %2755 = vmatprep.subr.bf16.mxu0 %v2000
    %2756 = vmatpush1.bf16.msra.mxu0 %v1999
    %2757 = vmatprep.subr.bf16.mxu0 %v1992
    %2758 = vmatpush1.bf16.msra.mxu0 %v1991
    %2759 = vmatprep.subr.bf16.mxu0 %v2112
    %2760 = vmatpush2.bf16.msra.mxu0 %v2111
    %2761 = vmatprep.subr.bf16.mxu0 %v2104
    %2762 = vmatpush2.bf16.msra.mxu0 %v2103
    %2763 = vmatprep.subr.bf16.mxu0 %v2096
    %2764 = vmatpush2.bf16.msra.mxu0 %v2095
    %2765 = vmatprep.subr.bf16.mxu0 %v2088
    %2766 = vmatpush2.bf16.msra.mxu0 %v2087
    %2767 = vmatprep.subr.bf16.mxu0 %v2080
    %2768 = vmatpush2.bf16.msra.mxu0 %v2079
    %2769 = vmatprep.subr.bf16.mxu0 %v2072
    %2770 = vmatpush2.bf16.msra.mxu0 %v2071
    %2771 = vmatprep.subr.bf16.mxu0 %v2064
    %2772 = vmatpush2.bf16.msra.mxu0 %v2063
    %2773 = vmatprep.subr.bf16.mxu0 %v2056
    %2774 = vmatpush2.bf16.msra.mxu0 %v2055
    %2775 = vmatprep.mubr.bf16.mxu0 %v958
    %2776 = vmatmul.mubr.bf16.gmra.mxu0 %v957
    %v2777 = vpop.f32.mrf.mxu0
    %v2778 = vadd.f32 0.0, %v2777
    %v2779 = vpop.f32.mrf.mxu0
    %v2780 = vadd.f32 0.0, %v2779
    %v2781 = vpop.f32.mrf.mxu0
    %v2782 = vpop.f32.mrf.mxu0
    %2783 = vdwg.mxu0
    %2784 = vmatprep.subr.bf16.mxu0 %v2176
    %2785 = vmatpush1.bf16.msra.mxu0 %v2175
    %2786 = vmatprep.subr.bf16.mxu0 %v2168
    %2787 = vmatpush1.bf16.msra.mxu0 %v2167
    %2788 = vmatprep.subr.bf16.mxu0 %v2160
    %2789 = vmatpush1.bf16.msra.mxu0 %v2159
    %2790 = vmatprep.subr.bf16.mxu0 %v2152
    %2791 = vmatpush1.bf16.msra.mxu0 %v2151
    %2792 = vmatprep.subr.bf16.mxu0 %v2144
    %2793 = vmatpush1.bf16.msra.mxu0 %v2143
    %2794 = vmatprep.subr.bf16.mxu0 %v2136
    %2795 = vmatpush1.bf16.msra.mxu0 %v2135
    %2796 = vmatprep.subr.bf16.mxu0 %v2128
    %2797 = vmatpush1.bf16.msra.mxu0 %v2127
    %2798 = vmatprep.subr.bf16.mxu0 %v2120
    %2799 = vmatpush1.bf16.msra.mxu0 %v2119
    %2800 = vmatprep.subr.bf16.mxu0 %v2240
    %2801 = vmatpush2.bf16.msra.mxu0 %v2239
    %2802 = vmatprep.subr.bf16.mxu0 %v2232
    %2803 = vmatpush2.bf16.msra.mxu0 %v2231
    %2804 = vmatprep.subr.bf16.mxu0 %v2224
    %2805 = vmatpush2.bf16.msra.mxu0 %v2223
    %2806 = vmatprep.subr.bf16.mxu0 %v2216
    %2807 = vmatpush2.bf16.msra.mxu0 %v2215
    %2808 = vmatprep.subr.bf16.mxu0 %v2208
    %2809 = vmatpush2.bf16.msra.mxu0 %v2207
    %2810 = vmatprep.subr.bf16.mxu0 %v2200
    %2811 = vmatpush2.bf16.msra.mxu0 %v2199
    %2812 = vmatprep.subr.bf16.mxu0 %v2192
    %2813 = vmatpush2.bf16.msra.mxu0 %v2191
    %2814 = vmatprep.subr.bf16.mxu0 %v2184
    %2815 = vmatpush2.bf16.msra.mxu0 %v2183
    %2816 = vmatprep.mubr.bf16.mxu0 %v960
    %2817 = vmatmul.mubr.bf16.gmra.mxu0 %v959
    %v2818 = vpop.f32.mrf.mxu0
    %v2819 = vadd.f32 %v2778, %v2818
    %v2820 = vpop.f32.mrf.mxu0
    %v2821 = vadd.f32 %v2780, %v2820
    %v2822 = vpop.f32.mrf.mxu0
    %v2823 = vpop.f32.mrf.mxu0
    %2824 = vdwg.mxu0
    %v2825 = vld [vmem:[#allocation14] sm:$0xff]
    %v2826 = vld [vmem:[#allocation16] sm:$0xff]
    %v2827 = vrot.slane %v2573, 4
    %v2828 = vadd.f32 %v2573, %v2827
    %v2829 = vrot.slane %v2828, 2
    %v2830 = vadd.f32 %v2828, %v2829
    %v2831 = vrot.slane %v2830, 1
    %v2832 = vadd.f32 %v2830, %v2831
    %v2833 = vrot.slane %v2575, 4
    %v2834 = vadd.f32 %v2575, %v2833
    %v2835 = vrot.slane %v2834, 2
    %v2836 = vadd.f32 %v2834, %v2835
    %v2837 = vrot.slane %v2836, 1
    %v2838 = vadd.f32 %v2836, %v2837
    %v2839 = vrot.slane %v2655, 4
    %v2840 = vadd.f32 %v2655, %v2839
    %v2841 = vrot.slane %v2840, 2
    %v2842 = vadd.f32 %v2840, %v2841
    %v2843 = vrot.slane %v2842, 1
    %v2844 = vadd.f32 %v2842, %v2843
    %v2845 = vrot.slane %v2657, 4
    %v2846 = vadd.f32 %v2657, %v2845
    %v2847 = vrot.slane %v2846, 2
    %v2848 = vadd.f32 %v2846, %v2847
    %v2849 = vrot.slane %v2848, 1
    %v2850 = vadd.f32 %v2848, %v2849
    %v2851 = vrot.slane %v2737, 4
    %v2852 = vadd.f32 %v2737, %v2851
    %v2853 = vrot.slane %v2852, 2
    %v2854 = vadd.f32 %v2852, %v2853
    %v2855 = vrot.slane %v2854, 1
    %v2856 = vadd.f32 %v2854, %v2855
    %v2857 = vrot.slane %v2739, 4
    %v2858 = vadd.f32 %v2739, %v2857
    %v2859 = vrot.slane %v2858, 2
    %v2860 = vadd.f32 %v2858, %v2859
    %v2861 = vrot.slane %v2860, 1
    %v2862 = vadd.f32 %v2860, %v2861
    %v2863 = vrot.slane %v2819, 4
    %v2864 = vadd.f32 %v2819, %v2863
    %v2865 = vrot.slane %v2864, 2
    %v2866 = vadd.f32 %v2864, %v2865
    %v2867 = vrot.slane %v2866, 1
    %v2868 = vadd.f32 %v2866, %v2867
    %v2869 = vrot.slane %v2821, 4
    %v2870 = vadd.f32 %v2821, %v2869
    %v2871 = vrot.slane %v2870, 2
    %v2872 = vadd.f32 %v2870, %v2871
    %v2873 = vrot.slane %v2872, 1
    %v2874 = vadd.f32 %v2872, %v2873
    %v2875 = vmul.f32 %v2832, %v782
    %v2876 = vmul.f32 %v2838, %v782
    %v2877 = vmul.f32 %v2844, %v782
    %v2878 = vmul.f32 %v2850, %v782
    %v2879 = vmul.f32 %v2856, %v782
    %v2880 = vmul.f32 %v2862, %v782
    %v2881 = vmul.f32 %v2868, %v782
    %v2882 = vmul.f32 %v2874, %v782
    %v2883 = vsub.f32 %v2573, %v2875
    %v2884 = vsub.f32 %v2575, %v2876
    %v2885 = vsub.f32 %v2655, %v2877
    %v2886 = vsub.f32 %v2657, %v2878
    %v2887 = vsub.f32 %v2737, %v2879
    %v2888 = vsub.f32 %v2739, %v2880
    %v2889 = vsub.f32 %v2819, %v2881
    %v2890 = vsub.f32 %v2821, %v2882
    %v2891 = vmul.f32 %v2883, %v2883
    %v2892 = vmul.f32 %v2884, %v2884
    %v2893 = vmul.f32 %v2885, %v2885
    %v2894 = vmul.f32 %v2886, %v2886
    %v2895 = vmul.f32 %v2887, %v2887
    %v2896 = vmul.f32 %v2888, %v2888
    %v2897 = vmul.f32 %v2889, %v2889
    %v2898 = vmul.f32 %v2890, %v2890
    %v2899 = vrot.slane %v2891, 4
    %v2900 = vadd.f32 %v2891, %v2899
    %v2901 = vrot.slane %v2900, 2
    %v2902 = vadd.f32 %v2900, %v2901
    %v2903 = vrot.slane %v2902, 1
    %v2904 = vadd.f32 %v2902, %v2903
    %v2905 = vrot.slane %v2892, 4
    %v2906 = vadd.f32 %v2892, %v2905
    %v2907 = vrot.slane %v2906, 2
    %v2908 = vadd.f32 %v2906, %v2907
    %v2909 = vrot.slane %v2908, 1
    %v2910 = vadd.f32 %v2908, %v2909
    %v2911 = vrot.slane %v2893, 4
    %v2912 = vadd.f32 %v2893, %v2911
    %v2913 = vrot.slane %v2912, 2
    %v2914 = vadd.f32 %v2912, %v2913
    %v2915 = vrot.slane %v2914, 1
    %v2916 = vadd.f32 %v2914, %v2915
    %v2917 = vrot.slane %v2894, 4
    %v2918 = vadd.f32 %v2894, %v2917
    %v2919 = vrot.slane %v2918, 2
    %v2920 = vadd.f32 %v2918, %v2919
    %v2921 = vrot.slane %v2920, 1
    %v2922 = vadd.f32 %v2920, %v2921
    %v2923 = vrot.slane %v2895, 4
    %v2924 = vadd.f32 %v2895, %v2923
    %v2925 = vrot.slane %v2924, 2
    %v2926 = vadd.f32 %v2924, %v2925
    %v2927 = vrot.slane %v2926, 1
    %v2928 = vadd.f32 %v2926, %v2927
    %v2929 = vrot.slane %v2896, 4
    %v2930 = vadd.f32 %v2896, %v2929
    %v2931 = vrot.slane %v2930, 2
    %v2932 = vadd.f32 %v2930, %v2931
    %v2933 = vrot.slane %v2932, 1
    %v2934 = vadd.f32 %v2932, %v2933
    %v2935 = vrot.slane %v2897, 4
    %v2936 = vadd.f32 %v2897, %v2935
    %v2937 = vrot.slane %v2936, 2
    %v2938 = vadd.f32 %v2936, %v2937
    %v2939 = vrot.slane %v2938, 1
    %v2940 = vadd.f32 %v2938, %v2939
    %v2941 = vrot.slane %v2898, 4
    %v2942 = vadd.f32 %v2898, %v2941
    %v2943 = vrot.slane %v2942, 2
    %v2944 = vadd.f32 %v2942, %v2943
    %v2945 = vrot.slane %v2944, 1
    %v2946 = vadd.f32 %v2944, %v2945
    %v2947 = vmul.f32 %v2904, %v782
    %v2948 = vmul.f32 %v2910, %v782
    %v2949 = vmul.f32 %v2916, %v782
    %v2950 = vmul.f32 %v2922, %v782
    %v2951 = vmul.f32 %v2928, %v782
    %v2952 = vmul.f32 %v2934, %v782
    %v2953 = vmul.f32 %v2940, %v782
    %v2954 = vmul.f32 %v2946, %v782
    %v2955 = vadd.f32 %v2947, 1e-05
    %v2956 = vadd.f32 %v2948, 1e-05
    %v2957 = vadd.f32 %v2949, 1e-05
    %v2958 = vadd.f32 %v2950, 1e-05
    %v2959 = vadd.f32 %v2951, 1e-05
    %v2960 = vadd.f32 %v2952, 1e-05
    %v2961 = vadd.f32 %v2953, 1e-05
    %v2962 = vadd.f32 %v2954, 1e-05
    %v2963 = vrsqrt.pop %v2955
    %v2964 = vrsqrt.pop %v2956
    %v2965 = vrsqrt.pop %v2957
    %v2966 = vrsqrt.pop %v2958
    %v2967 = vrsqrt.pop %v2959
    %v2968 = vrsqrt.pop %v2960
    %v2969 = vrsqrt.pop %v2961
    %v2970 = vrsqrt.pop %v2962
    %v2979 = vcombine.low %v2963, %v2964
    %v2980 = vcombine.low %v2965, %v2966
    %v2981 = vcombine.low %v2967, %v2968
    %v2982 = vcombine.low %v2969, %v2970
    %v2984 = vunpack.c.l.s4 1966171168
    %v2985 = vunpack.c.0.s8 %v2984
    %v2986 = vlaneseq
    %v2987 = vshrl.u32 %v2986, 7
    %v2988 = vsub.s32 %v2985, %v2987
    %v2989 = vrot.slane %v2979, %v2988
    %v2991 = vunpack.c.l.s4 1966171168
    %v2992 = vunpack.c.0.s8 %v2991
    %v2993 = vlaneseq
    %v2994 = vshrl.u32 %v2993, 7
    %v2995 = vsub.s32 %v2992, %v2994
    %v2996 = vrot.slane %v2980, %v2995
    %v2998 = vunpack.c.l.s4 1966171168
    %v2999 = vunpack.c.0.s8 %v2998
    %v3000 = vlaneseq
    %v3001 = vshrl.u32 %v3000, 7
    %v3002 = vsub.s32 %v2999, %v3001
    %v3003 = vrot.slane %v2981, %v3002
    %v3005 = vunpack.c.l.s4 1966171168
    %v3006 = vunpack.c.0.s8 %v3005
    %v3007 = vlaneseq
    %v3008 = vshrl.u32 %v3007, 7
    %v3009 = vsub.s32 %v3006, %v3008
    %v3010 = vrot.slane %v2982, %v3009
    %v3011 = vcombine.low %v2989, %v2996
    %v3012 = vcombine.low %v3003, %v3010
    %v3014 = vunpack.c.l.s4 1966171168
    %v3015 = vunpack.c.0.s8 %v3014
    %v3016 = vlaneseq
    %v3017 = vshrl.u32 %v3016, 7
    %v3018 = vsub.s32 %v3015, %v3017
    %v3019 = vrot.slane %v3011, %v3018
    %v3021 = vunpack.c.l.s4 1966171168
    %v3022 = vunpack.c.0.s8 %v3021
    %v3023 = vlaneseq
    %v3024 = vshrl.u32 %v3023, 7
    %v3025 = vsub.s32 %v3022, %v3024
    %v3026 = vrot.slane %v3012, %v3025
    %v3027 = vcombine.low %v3019, %v3026
    %v3029 = vmul.f32 %v2825, %v3027
    %v3031 = vlaneseq
    %v3032 = vshrl.u32 %v3031, 7
    %v3033 = vsub.s32 0, %v3032
    %v3034 = vrot.slane %v3029, %v3033
    %v3035 = vlaneseq
    %v3036 = vshrl.u32 %v3035, 7
    %v3037 = vsub.s32 1, %v3036
    %v3038 = vrot.slane %v3029, %v3037
    %v3039 = vlaneseq
    %v3040 = vshrl.u32 %v3039, 7
    %v3041 = vsub.s32 2, %v3040
    %v3042 = vrot.slane %v3029, %v3041
    %v3043 = vlaneseq
    %v3044 = vshrl.u32 %v3043, 7
    %v3045 = vsub.s32 3, %v3044
    %v3046 = vrot.slane %v3029, %v3045
    %v3047 = vlaneseq
    %v3048 = vshrl.u32 %v3047, 7
    %v3049 = vsub.s32 4, %v3048
    %v3050 = vrot.slane %v3029, %v3049
    %v3051 = vlaneseq
    %v3052 = vshrl.u32 %v3051, 7
    %v3053 = vsub.s32 5, %v3052
    %v3054 = vrot.slane %v3029, %v3053
    %v3055 = vlaneseq
    %v3056 = vshrl.u32 %v3055, 7
    %v3057 = vsub.s32 6, %v3056
    %v3058 = vrot.slane %v3029, %v3057
    %v3059 = vlaneseq
    %v3060 = vshrl.u32 %v3059, 7
    %v3061 = vsub.s32 7, %v3060
    %v3062 = vrot.slane %v3029, %v3061
    %v3071 = vmul.f32 %v2875, %v3034
    %v3072 = vmul.f32 %v2876, %v3038
    %v3073 = vmul.f32 %v2877, %v3042
    %v3074 = vmul.f32 %v2878, %v3046
    %v3075 = vmul.f32 %v2879, %v3050
    %v3076 = vmul.f32 %v2880, %v3054
    %v3077 = vmul.f32 %v2881, %v3058
    %v3078 = vmul.f32 %v2882, %v3062
    %v3087 = vcombine.low %v3071, %v3072
    %v3088 = vcombine.low %v3073, %v3074
    %v3089 = vcombine.low %v3075, %v3076
    %v3090 = vcombine.low %v3077, %v3078
    %v3092 = vunpack.c.l.s4 1966171168
    %v3093 = vunpack.c.0.s8 %v3092
    %v3094 = vlaneseq
    %v3095 = vshrl.u32 %v3094, 7
    %v3096 = vsub.s32 %v3093, %v3095
    %v3097 = vrot.slane %v3087, %v3096
    %v3099 = vunpack.c.l.s4 1966171168
    %v3100 = vunpack.c.0.s8 %v3099
    %v3101 = vlaneseq
    %v3102 = vshrl.u32 %v3101, 7
    %v3103 = vsub.s32 %v3100, %v3102
    %v3104 = vrot.slane %v3088, %v3103
    %v3106 = vunpack.c.l.s4 1966171168
    %v3107 = vunpack.c.0.s8 %v3106
    %v3108 = vlaneseq
    %v3109 = vshrl.u32 %v3108, 7
    %v3110 = vsub.s32 %v3107, %v3109
    %v3111 = vrot.slane %v3089, %v3110
    %v3113 = vunpack.c.l.s4 1966171168
    %v3114 = vunpack.c.0.s8 %v3113
    %v3115 = vlaneseq
    %v3116 = vshrl.u32 %v3115, 7
    %v3117 = vsub.s32 %v3114, %v3116
    %v3118 = vrot.slane %v3090, %v3117
    %v3119 = vcombine.low %v3097, %v3104
    %v3120 = vcombine.low %v3111, %v3118
    %v3122 = vunpack.c.l.s4 1966171168
    %v3123 = vunpack.c.0.s8 %v3122
    %v3124 = vlaneseq
    %v3125 = vshrl.u32 %v3124, 7
    %v3126 = vsub.s32 %v3123, %v3125
    %v3127 = vrot.slane %v3119, %v3126
    %v3129 = vunpack.c.l.s4 1966171168
    %v3130 = vunpack.c.0.s8 %v3129
    %v3131 = vlaneseq
    %v3132 = vshrl.u32 %v3131, 7
    %v3133 = vsub.s32 %v3130, %v3132
    %v3134 = vrot.slane %v3120, %v3133
    %v3135 = vcombine.low %v3127, %v3134
    %v3137 = vsub.f32 %v2826, %v3135
    %v3138 = vmul.f32 %v2573, %v3034
    %v3139 = vmul.f32 %v2575, %v3038
    %v3140 = vmul.f32 %v2655, %v3042
    %v3141 = vmul.f32 %v2657, %v3046
    %v3142 = vmul.f32 %v2737, %v3050
    %v3143 = vmul.f32 %v2739, %v3054
    %v3144 = vmul.f32 %v2819, %v3058
    %v3145 = vmul.f32 %v2821, %v3062
    %v3147 = vlaneseq
    %v3148 = vshrl.u32 %v3147, 7
    %v3149 = vsub.s32 0, %v3148
    %v3150 = vrot.slane %v3137, %v3149
    %v3151 = vlaneseq
    %v3152 = vshrl.u32 %v3151, 7
    %v3153 = vsub.s32 1, %v3152
    %v3154 = vrot.slane %v3137, %v3153
    %v3155 = vlaneseq
    %v3156 = vshrl.u32 %v3155, 7
    %v3157 = vsub.s32 2, %v3156
    %v3158 = vrot.slane %v3137, %v3157
    %v3159 = vlaneseq
    %v3160 = vshrl.u32 %v3159, 7
    %v3161 = vsub.s32 3, %v3160
    %v3162 = vrot.slane %v3137, %v3161
    %v3163 = vlaneseq
    %v3164 = vshrl.u32 %v3163, 7
    %v3165 = vsub.s32 4, %v3164
    %v3166 = vrot.slane %v3137, %v3165
    %v3167 = vlaneseq
    %v3168 = vshrl.u32 %v3167, 7
    %v3169 = vsub.s32 5, %v3168
    %v3170 = vrot.slane %v3137, %v3169
    %v3171 = vlaneseq
    %v3172 = vshrl.u32 %v3171, 7
    %v3173 = vsub.s32 6, %v3172
    %v3174 = vrot.slane %v3137, %v3173
    %v3175 = vlaneseq
    %v3176 = vshrl.u32 %v3175, 7
    %v3177 = vsub.s32 7, %v3176
    %v3178 = vrot.slane %v3137, %v3177
    %v3187 = vadd.f32 %v3138, %v3150
    %v3188 = vadd.f32 %v3139, %v3154
    %v3189 = vadd.f32 %v3140, %v3158
    %v3190 = vadd.f32 %v3141, %v3162
    %v3191 = vadd.f32 %v3142, %v3166
    %v3192 = vadd.f32 %v3143, %v3170
    %v3193 = vadd.f32 %v3144, %v3174
    %v3194 = vadd.f32 %v3145, %v3178
    %vm3195 = vcmp.gt.f32.partialorder %v3187, 0.0
    %vm3196 = vcmp.gt.f32.partialorder %v3188, 0.0
    %vm3197 = vcmp.gt.f32.partialorder %v3189, 0.0
    %vm3198 = vcmp.gt.f32.partialorder %v3190, 0.0
    %vm3199 = vcmp.gt.f32.partialorder %v3191, 0.0
    %vm3200 = vcmp.gt.f32.partialorder %v3192, 0.0
    %vm3201 = vcmp.gt.f32.partialorder %v3193, 0.0
    %vm3202 = vcmp.gt.f32.partialorder %v3194, 0.0
    %v3203 = vmul.f32 %v3187, 0.2
    %v3204 = vmul.f32 %v3188, 0.2
    %v3205 = vmul.f32 %v3189, 0.2
    %v3206 = vmul.f32 %v3190, 0.2
    %v3207 = vmul.f32 %v3191, 0.2
    %v3208 = vmul.f32 %v3192, 0.2
    %v3209 = vmul.f32 %v3193, 0.2
    %v3210 = vmul.f32 %v3194, 0.2
    %v3211 = vsel %vm3195, %v3187, %v3203
    %v3212 = vsel %vm3196, %v3188, %v3204
    %v3213 = vsel %vm3197, %v3189, %v3205
    %v3214 = vsel %vm3198, %v3190, %v3206
    %v3215 = vsel %vm3199, %v3191, %v3207
    %v3216 = vsel %vm3200, %v3192, %v3208
    %v3217 = vsel %vm3201, %v3193, %v3209
    %v3218 = vsel %vm3202, %v3194, %v3210
    %v3219 = vpack.c.bf16 %v3211, %v3211
    %v3220 = vpack.c.bf16 %v3212, %v3212
    %v3221 = vpack.c.bf16 %v3213, %v3213
    %v3222 = vpack.c.bf16 %v3214, %v3214
    %v3223 = vpack.c.bf16 %v3215, %v3215
    %v3224 = vpack.c.bf16 %v3216, %v3216
    %v3225 = vpack.c.bf16 %v3217, %v3217
    %v3226 = vpack.c.bf16 %v3218, %v3218
    %v3227 = vld [vmem:[#allocation17] sm:$0xff]
    %v3228 = vld [vmem:[#allocation17 + $0x8] sm:$0xff]
    %v3229 = vld [vmem:[#allocation17 + $0x10] sm:$0xff]
    %v3230 = vld [vmem:[#allocation17 + $0x18] sm:$0xf]
    %v3231 = vld [vmem:[#allocation17 + $0x1c] sm:$0xff]
    %v3232 = vld [vmem:[#allocation17 + $0x24] sm:$0xff]
    %v3233 = vld [vmem:[#allocation17 + $0x2c] sm:$0xff]
    %v3234 = vld [vmem:[#allocation17 + $0x34] sm:$0xf]
    %v3235 = vld [vmem:[#allocation17 + $0x38] sm:$0xff]
    %v3236 = vld [vmem:[#allocation17 + $0x40] sm:$0xff]
    %v3237 = vld [vmem:[#allocation17 + $0x48] sm:$0xff]
    %v3238 = vld [vmem:[#allocation17 + $0x50] sm:$0xf]
    %v3239 = vld [vmem:[#allocation17 + $0x54] sm:$0xff]
    %v3240 = vld [vmem:[#allocation17 + $0x5c] sm:$0xff]
    %v3241 = vld [vmem:[#allocation17 + $0x64] sm:$0xff]
    %v3242 = vld [vmem:[#allocation17 + $0x6c] sm:$0xf]
    %v3243 = vld [vmem:[#allocation17 + $0x70] sm:$0xff]
    %v3244 = vld [vmem:[#allocation17 + $0x78] sm:$0xff]
    %v3245 = vld [vmem:[#allocation17 + $0x80] sm:$0xff]
    %v3246 = vld [vmem:[#allocation17 + $0x88] sm:$0xf]
    %v3247 = vld [vmem:[#allocation17 + $0x8c] sm:$0xff]
    %v3248 = vld [vmem:[#allocation17 + $0x94] sm:$0xff]
    %v3249 = vld [vmem:[#allocation17 + $0x9c] sm:$0xff]
    %v3250 = vld [vmem:[#allocation17 + $0xa4] sm:$0xf]
    %v3251 = vld [vmem:[#allocation17 + $0xa8] sm:$0xff]
    %v3252 = vld [vmem:[#allocation17 + $0xb0] sm:$0xff]
    %v3253 = vld [vmem:[#allocation17 + $0xb8] sm:$0xff]
    %v3254 = vld [vmem:[#allocation17 + $0xc0] sm:$0xf]
    %v3255 = vld [vmem:[#allocation17 + $0xc4] sm:$0xff]
    %v3256 = vld [vmem:[#allocation17 + $0xcc] sm:$0xff]
    %v3257 = vld [vmem:[#allocation17 + $0xd4] sm:$0xff]
    %v3258 = vld [vmem:[#allocation17 + $0xdc] sm:$0xf]
    %v3259 = vld [vmem:[#allocation17 + $0xe0] sm:$0xff]
    %v3260 = vld [vmem:[#allocation17 + $0xe8] sm:$0xff]
    %v3261 = vld [vmem:[#allocation17 + $0xf0] sm:$0xff]
    %v3262 = vld [vmem:[#allocation17 + $0xf8] sm:$0xf]
    %v3263 = vld [vmem:[#allocation17 + $0xfc] sm:$0xff]
    %v3264 = vld [vmem:[#allocation17 + $0x104] sm:$0xff]
    %v3265 = vld [vmem:[#allocation17 + $0x10c] sm:$0xff]
    %v3266 = vld [vmem:[#allocation17 + $0x114] sm:$0xf]
    %v3267 = vld [vmem:[#allocation17 + $0x118] sm:$0xff]
    %v3268 = vld [vmem:[#allocation17 + $0x120] sm:$0xff]
    %v3269 = vld [vmem:[#allocation17 + $0x128] sm:$0xff]
    %v3270 = vld [vmem:[#allocation17 + $0x130] sm:$0xf]
    %v3271 = vld [vmem:[#allocation17 + $0x134] sm:$0xff]
    %v3272 = vld [vmem:[#allocation17 + $0x13c] sm:$0xff]
    %v3273 = vld [vmem:[#allocation17 + $0x144] sm:$0xff]
    %v3274 = vld [vmem:[#allocation17 + $0x14c] sm:$0xf]
    %v3275 = vld [vmem:[#allocation17 + $0x150] sm:$0xff]
    %v3276 = vld [vmem:[#allocation17 + $0x158] sm:$0xff]
    %v3277 = vld [vmem:[#allocation17 + $0x160] sm:$0xff]
    %v3278 = vld [vmem:[#allocation17 + $0x168] sm:$0xf]
    %v3279 = vld [vmem:[#allocation17 + $0x16c] sm:$0xff]
    %v3280 = vld [vmem:[#allocation17 + $0x174] sm:$0xff]
    %v3281 = vld [vmem:[#allocation17 + $0x17c] sm:$0xff]
    %v3282 = vld [vmem:[#allocation17 + $0x184] sm:$0xf]
    %v3283 = vld [vmem:[#allocation17 + $0x188] sm:$0xff]
    %v3284 = vld [vmem:[#allocation17 + $0x190] sm:$0xff]
    %v3285 = vld [vmem:[#allocation17 + $0x198] sm:$0xff]
    %v3286 = vld [vmem:[#allocation17 + $0x1a0] sm:$0xf]
    %v3287 = vld [vmem:[#allocation17 + $0x1a4] sm:$0xff]
    %v3288 = vld [vmem:[#allocation17 + $0x1ac] sm:$0xff]
    %v3289 = vld [vmem:[#allocation17 + $0x1b4] sm:$0xff]
    %v3290 = vld [vmem:[#allocation17 + $0x1bc] sm:$0xf]
    %v3291 = vld [vmem:[#allocation17 + $0x1c0] sm:$0xff]
    %v3292 = vld [vmem:[#allocation17 + $0x1c8] sm:$0xff]
    %v3293 = vld [vmem:[#allocation17 + $0x1d0] sm:$0xff]
    %v3294 = vld [vmem:[#allocation17 + $0x1d8] sm:$0xf]
    %v3295 = vld [vmem:[#allocation17 + $0x1dc] sm:$0xff]
    %v3296 = vld [vmem:[#allocation17 + $0x1e4] sm:$0xff]
    %v3297 = vld [vmem:[#allocation17 + $0x1ec] sm:$0xff]
    %v3298 = vld [vmem:[#allocation17 + $0x1f4] sm:$0xf]
    %v3299 = vld [vmem:[#allocation17 + $0x1f8] sm:$0xff]
    %v3300 = vld [vmem:[#allocation17 + $0x200] sm:$0xff]
    %v3301 = vld [vmem:[#allocation17 + $0x208] sm:$0xff]
    %v3302 = vld [vmem:[#allocation17 + $0x210] sm:$0xf]
    %v3303 = vld [vmem:[#allocation17 + $0x214] sm:$0xff]
    %v3304 = vld [vmem:[#allocation17 + $0x21c] sm:$0xff]
    %v3305 = vld [vmem:[#allocation17 + $0x224] sm:$0xff]
    %v3306 = vld [vmem:[#allocation17 + $0x22c] sm:$0xf]
    %v3307 = vld [vmem:[#allocation17 + $0x230] sm:$0xff]
    %v3308 = vld [vmem:[#allocation17 + $0x238] sm:$0xff]
    %v3309 = vld [vmem:[#allocation17 + $0x240] sm:$0xff]
    %v3310 = vld [vmem:[#allocation17 + $0x248] sm:$0xf]
    %v3311 = vld [vmem:[#allocation17 + $0x24c] sm:$0xff]
    %v3312 = vld [vmem:[#allocation17 + $0x254] sm:$0xff]
    %v3313 = vld [vmem:[#allocation17 + $0x25c] sm:$0xff]
    %v3314 = vld [vmem:[#allocation17 + $0x264] sm:$0xf]
    %v3315 = vld [vmem:[#allocation17 + $0x268] sm:$0xff]
    %v3316 = vld [vmem:[#allocation17 + $0x270] sm:$0xff]
    %v3317 = vld [vmem:[#allocation17 + $0x278] sm:$0xff]
    %v3318 = vld [vmem:[#allocation17 + $0x280] sm:$0xf]
    %v3319 = vld [vmem:[#allocation17 + $0x284] sm:$0xff]
    %v3320 = vld [vmem:[#allocation17 + $0x28c] sm:$0xff]
    %v3321 = vld [vmem:[#allocation17 + $0x294] sm:$0xff]
    %v3322 = vld [vmem:[#allocation17 + $0x29c] sm:$0xf]
    %v3323 = vld [vmem:[#allocation17 + $0x2a0] sm:$0xff]
    %v3324 = vld [vmem:[#allocation17 + $0x2a8] sm:$0xff]
    %v3325 = vld [vmem:[#allocation17 + $0x2b0] sm:$0xff]
    %v3326 = vld [vmem:[#allocation17 + $0x2b8] sm:$0xf]
    %v3327 = vld [vmem:[#allocation17 + $0x2bc] sm:$0xff]
    %v3328 = vld [vmem:[#allocation17 + $0x2c4] sm:$0xff]
    %v3329 = vld [vmem:[#allocation17 + $0x2cc] sm:$0xff]
    %v3330 = vld [vmem:[#allocation17 + $0x2d4] sm:$0xf]
    %v3331 = vld [vmem:[#allocation17 + $0x2d8] sm:$0xff]
    %v3332 = vld [vmem:[#allocation17 + $0x2e0] sm:$0xff]
    %v3333 = vld [vmem:[#allocation17 + $0x2e8] sm:$0xff]
    %v3334 = vld [vmem:[#allocation17 + $0x2f0] sm:$0xf]
    %v3335 = vld [vmem:[#allocation17 + $0x2f4] sm:$0xff]
    %v3336 = vld [vmem:[#allocation17 + $0x2fc] sm:$0xff]
    %v3337 = vld [vmem:[#allocation17 + $0x304] sm:$0xff]
    %v3338 = vld [vmem:[#allocation17 + $0x30c] sm:$0xf]
    %v3339 = vld [vmem:[#allocation17 + $0x310] sm:$0xff]
    %v3340 = vld [vmem:[#allocation17 + $0x318] sm:$0xff]
    %v3341 = vld [vmem:[#allocation17 + $0x320] sm:$0xff]
    %v3342 = vld [vmem:[#allocation17 + $0x328] sm:$0xf]
    %v3343 = vld [vmem:[#allocation17 + $0x32c] sm:$0xff]
    %v3344 = vld [vmem:[#allocation17 + $0x334] sm:$0xff]
    %v3345 = vld [vmem:[#allocation17 + $0x33c] sm:$0xff]
    %v3346 = vld [vmem:[#allocation17 + $0x344] sm:$0xf]
    %v3347 = vld [vmem:[#allocation17 + $0x348] sm:$0xff]
    %v3348 = vld [vmem:[#allocation17 + $0x350] sm:$0xff]
    %v3349 = vld [vmem:[#allocation17 + $0x358] sm:$0xff]
    %v3350 = vld [vmem:[#allocation17 + $0x360] sm:$0xf]
    %v3351 = vld [vmem:[#allocation17 + $0x364] sm:$0xff]
    %v3352 = vld [vmem:[#allocation17 + $0x36c] sm:$0xff]
    %v3353 = vld [vmem:[#allocation17 + $0x374] sm:$0xff]
    %v3354 = vld [vmem:[#allocation17 + $0x37c] sm:$0xf]
    %v3355 = vld [vmem:[#allocation17 + $0x380] sm:$0xff]
    %v3356 = vld [vmem:[#allocation17 + $0x388] sm:$0xff]
    %v3357 = vld [vmem:[#allocation17 + $0x390] sm:$0xff]
    %v3358 = vld [vmem:[#allocation17 + $0x398] sm:$0xf]
    %v3359 = vld [vmem:[#allocation17 + $0x39c] sm:$0xff]
    %v3360 = vld [vmem:[#allocation17 + $0x3a4] sm:$0xff]
    %v3361 = vld [vmem:[#allocation17 + $0x3ac] sm:$0xff]
    %v3362 = vld [vmem:[#allocation17 + $0x3b4] sm:$0xf]
    %v3363 = vld [vmem:[#allocation17 + $0x3b8] sm:$0xff]
    %v3364 = vld [vmem:[#allocation17 + $0x3c0] sm:$0xff]
    %v3365 = vld [vmem:[#allocation17 + $0x3c8] sm:$0xff]
    %v3366 = vld [vmem:[#allocation17 + $0x3d0] sm:$0xf]
    %v3367 = vld [vmem:[#allocation17 + $0x3d4] sm:$0xff]
    %v3368 = vld [vmem:[#allocation17 + $0x3dc] sm:$0xff]
    %v3369 = vld [vmem:[#allocation17 + $0x3e4] sm:$0xff]
    %v3370 = vld [vmem:[#allocation17 + $0x3ec] sm:$0xf]
    %v3371 = vld [vmem:[#allocation17 + $0x3f0] sm:$0xff]
    %v3372 = vld [vmem:[#allocation17 + $0x3f8] sm:$0xff]
    %v3373 = vld [vmem:[#allocation17 + $0x400] sm:$0xff]
    %v3374 = vld [vmem:[#allocation17 + $0x408] sm:$0xf]
    %v3375 = vld [vmem:[#allocation17 + $0x40c] sm:$0xff]
    %v3376 = vld [vmem:[#allocation17 + $0x414] sm:$0xff]
    %v3377 = vld [vmem:[#allocation17 + $0x41c] sm:$0xff]
    %v3378 = vld [vmem:[#allocation17 + $0x424] sm:$0xf]
    %v3379 = vld [vmem:[#allocation17 + $0x428] sm:$0xff]
    %v3380 = vld [vmem:[#allocation17 + $0x430] sm:$0xff]
    %v3381 = vld [vmem:[#allocation17 + $0x438] sm:$0xff]
    %v3382 = vld [vmem:[#allocation17 + $0x440] sm:$0xf]
    %v3383 = vld [vmem:[#allocation17 + $0x444] sm:$0xff]
    %v3384 = vld [vmem:[#allocation17 + $0x44c] sm:$0xff]
    %v3385 = vld [vmem:[#allocation17 + $0x454] sm:$0xff]
    %v3386 = vld [vmem:[#allocation17 + $0x45c] sm:$0xf]
    %v3387 = vld [vmem:[#allocation17 + $0x460] sm:$0xff]
    %v3388 = vld [vmem:[#allocation17 + $0x468] sm:$0xff]
    %v3389 = vld [vmem:[#allocation17 + $0x470] sm:$0xff]
    %v3390 = vld [vmem:[#allocation17 + $0x478] sm:$0xf]
    %v3391 = vld [vmem:[#allocation17 + $0x47c] sm:$0xff]
    %v3392 = vld [vmem:[#allocation17 + $0x484] sm:$0xff]
    %v3393 = vld [vmem:[#allocation17 + $0x48c] sm:$0xff]
    %v3394 = vld [vmem:[#allocation17 + $0x494] sm:$0xf]
    %v3395 = vld [vmem:[#allocation17 + $0x498] sm:$0xff]
    %v3396 = vld [vmem:[#allocation17 + $0x4a0] sm:$0xff]
    %v3397 = vld [vmem:[#allocation17 + $0x4a8] sm:$0xff]
    %v3398 = vld [vmem:[#allocation17 + $0x4b0] sm:$0xf]
    %v3399 = vld [vmem:[#allocation17 + $0x4b4] sm:$0xff]
    %v3400 = vld [vmem:[#allocation17 + $0x4bc] sm:$0xff]
    %v3401 = vld [vmem:[#allocation17 + $0x4c4] sm:$0xff]
    %v3402 = vld [vmem:[#allocation17 + $0x4cc] sm:$0xf]
    %v3403 = vld [vmem:[#allocation17 + $0x4d0] sm:$0xff]
    %v3404 = vld [vmem:[#allocation17 + $0x4d8] sm:$0xff]
    %v3405 = vld [vmem:[#allocation17 + $0x4e0] sm:$0xff]
    %v3406 = vld [vmem:[#allocation17 + $0x4e8] sm:$0xf]
    %v3407 = vld [vmem:[#allocation17 + $0x4ec] sm:$0xff]
    %v3408 = vld [vmem:[#allocation17 + $0x4f4] sm:$0xff]
    %v3409 = vld [vmem:[#allocation17 + $0x4fc] sm:$0xff]
    %v3410 = vld [vmem:[#allocation17 + $0x504] sm:$0xf]
    %v3411 = vld [vmem:[#allocation17 + $0x508] sm:$0xff]
    %v3412 = vld [vmem:[#allocation17 + $0x510] sm:$0xff]
    %v3413 = vld [vmem:[#allocation17 + $0x518] sm:$0xff]
    %v3414 = vld [vmem:[#allocation17 + $0x520] sm:$0xf]
    %v3415 = vld [vmem:[#allocation17 + $0x524] sm:$0xff]
    %v3416 = vld [vmem:[#allocation17 + $0x52c] sm:$0xff]
    %v3417 = vld [vmem:[#allocation17 + $0x534] sm:$0xff]
    %v3418 = vld [vmem:[#allocation17 + $0x53c] sm:$0xf]
    %v3419 = vld [vmem:[#allocation17 + $0x540] sm:$0xff]
    %v3420 = vld [vmem:[#allocation17 + $0x548] sm:$0xff]
    %v3421 = vld [vmem:[#allocation17 + $0x550] sm:$0xff]
    %v3422 = vld [vmem:[#allocation17 + $0x558] sm:$0xf]
    %v3423 = vld [vmem:[#allocation17 + $0x55c] sm:$0xff]
    %v3424 = vld [vmem:[#allocation17 + $0x564] sm:$0xff]
    %v3425 = vld [vmem:[#allocation17 + $0x56c] sm:$0xff]
    %v3426 = vld [vmem:[#allocation17 + $0x574] sm:$0xf]
    %v3427 = vld [vmem:[#allocation17 + $0x578] sm:$0xff]
    %v3428 = vld [vmem:[#allocation17 + $0x580] sm:$0xff]
    %v3429 = vld [vmem:[#allocation17 + $0x588] sm:$0xff]
    %v3430 = vld [vmem:[#allocation17 + $0x590] sm:$0xf]
    %v3431 = vld [vmem:[#allocation17 + $0x594] sm:$0xff]
    %v3432 = vld [vmem:[#allocation17 + $0x59c] sm:$0xff]
    %v3433 = vld [vmem:[#allocation17 + $0x5a4] sm:$0xff]
    %v3434 = vld [vmem:[#allocation17 + $0x5ac] sm:$0xf]
    %v3435 = vld [vmem:[#allocation17 + $0x5b0] sm:$0xff]
    %v3436 = vld [vmem:[#allocation17 + $0x5b8] sm:$0xff]
    %v3437 = vld [vmem:[#allocation17 + $0x5c0] sm:$0xff]
    %v3438 = vld [vmem:[#allocation17 + $0x5c8] sm:$0xf]
    %v3439 = vld [vmem:[#allocation17 + $0x5cc] sm:$0xff]
    %v3440 = vld [vmem:[#allocation17 + $0x5d4] sm:$0xff]
    %v3441 = vld [vmem:[#allocation17 + $0x5dc] sm:$0xff]
    %v3442 = vld [vmem:[#allocation17 + $0x5e4] sm:$0xf]
    %v3443 = vld [vmem:[#allocation17 + $0x5e8] sm:$0xff]
    %v3444 = vld [vmem:[#allocation17 + $0x5f0] sm:$0xff]
    %v3445 = vld [vmem:[#allocation17 + $0x5f8] sm:$0xff]
    %v3446 = vld [vmem:[#allocation17 + $0x600] sm:$0xf]
    %v3447 = vld [vmem:[#allocation17 + $0x604] sm:$0xff]
    %v3448 = vld [vmem:[#allocation17 + $0x60c] sm:$0xff]
    %v3449 = vld [vmem:[#allocation17 + $0x614] sm:$0xff]
    %v3450 = vld [vmem:[#allocation17 + $0x61c] sm:$0xf]
    %v3451 = vld [vmem:[#allocation17 + $0x620] sm:$0xff]
    %v3452 = vld [vmem:[#allocation17 + $0x628] sm:$0xff]
    %v3453 = vld [vmem:[#allocation17 + $0x630] sm:$0xff]
    %v3454 = vld [vmem:[#allocation17 + $0x638] sm:$0xf]
    %v3455 = vld [vmem:[#allocation17 + $0x63c] sm:$0xff]
    %v3456 = vld [vmem:[#allocation17 + $0x644] sm:$0xff]
    %v3457 = vld [vmem:[#allocation17 + $0x64c] sm:$0xff]
    %v3458 = vld [vmem:[#allocation17 + $0x654] sm:$0xf]
    %v3459 = vld [vmem:[#allocation17 + $0x658] sm:$0xff]
    %v3460 = vld [vmem:[#allocation17 + $0x660] sm:$0xff]
    %v3461 = vld [vmem:[#allocation17 + $0x668] sm:$0xff]
    %v3462 = vld [vmem:[#allocation17 + $0x670] sm:$0xf]
    %v3463 = vld [vmem:[#allocation17 + $0x674] sm:$0xff]
    %v3464 = vld [vmem:[#allocation17 + $0x67c] sm:$0xff]
    %v3465 = vld [vmem:[#allocation17 + $0x684] sm:$0xff]
    %v3466 = vld [vmem:[#allocation17 + $0x68c] sm:$0xf]
    %v3467 = vld [vmem:[#allocation17 + $0x690] sm:$0xff]
    %v3468 = vld [vmem:[#allocation17 + $0x698] sm:$0xff]
    %v3469 = vld [vmem:[#allocation17 + $0x6a0] sm:$0xff]
    %v3470 = vld [vmem:[#allocation17 + $0x6a8] sm:$0xf]
    %v3471 = vld [vmem:[#allocation17 + $0x6ac] sm:$0xff]
    %v3472 = vld [vmem:[#allocation17 + $0x6b4] sm:$0xff]
    %v3473 = vld [vmem:[#allocation17 + $0x6bc] sm:$0xff]
    %v3474 = vld [vmem:[#allocation17 + $0x6c4] sm:$0xf]
    %v3475 = vld [vmem:[#allocation17 + $0x6c8] sm:$0xff]
    %v3476 = vld [vmem:[#allocation17 + $0x6d0] sm:$0xff]
    %v3477 = vld [vmem:[#allocation17 + $0x6d8] sm:$0xff]
    %v3478 = vld [vmem:[#allocation17 + $0x6e0] sm:$0xf]
    %v3479 = vld [vmem:[#allocation17 + $0x6e4] sm:$0xff]
    %v3480 = vld [vmem:[#allocation17 + $0x6ec] sm:$0xff]
    %v3481 = vld [vmem:[#allocation17 + $0x6f4] sm:$0xff]
    %v3482 = vld [vmem:[#allocation17 + $0x6fc] sm:$0xf]
    %v3483 = vld [vmem:[#allocation17 + $0x700] sm:$0xff]
    %v3484 = vld [vmem:[#allocation17 + $0x708] sm:$0xff]
    %v3485 = vld [vmem:[#allocation17 + $0x710] sm:$0xff]
    %v3486 = vld [vmem:[#allocation17 + $0x718] sm:$0xf]
    %v3487 = vld [vmem:[#allocation17 + $0x71c] sm:$0xff]
    %v3488 = vld [vmem:[#allocation17 + $0x724] sm:$0xff]
    %v3489 = vld [vmem:[#allocation17 + $0x72c] sm:$0xff]
    %v3490 = vld [vmem:[#allocation17 + $0x734] sm:$0xf]
    %v3491 = vld [vmem:[#allocation17 + $0x738] sm:$0xff]
    %v3492 = vld [vmem:[#allocation17 + $0x740] sm:$0xff]
    %v3493 = vld [vmem:[#allocation17 + $0x748] sm:$0xff]
    %v3494 = vld [vmem:[#allocation17 + $0x750] sm:$0xf]
    %v3495 = vld [vmem:[#allocation17 + $0x754] sm:$0xff]
    %v3496 = vld [vmem:[#allocation17 + $0x75c] sm:$0xff]
    %v3497 = vld [vmem:[#allocation17 + $0x764] sm:$0xff]
    %v3498 = vld [vmem:[#allocation17 + $0x76c] sm:$0xf]
    %v3499 = vld [vmem:[#allocation17 + $0x770] sm:$0xff]
    %v3500 = vld [vmem:[#allocation17 + $0x778] sm:$0xff]
    %v3501 = vld [vmem:[#allocation17 + $0x780] sm:$0xff]
    %v3502 = vld [vmem:[#allocation17 + $0x788] sm:$0xf]
    %v3503 = vld [vmem:[#allocation17 + $0x78c] sm:$0xff]
    %v3504 = vld [vmem:[#allocation17 + $0x794] sm:$0xff]
    %v3505 = vld [vmem:[#allocation17 + $0x79c] sm:$0xff]
    %v3506 = vld [vmem:[#allocation17 + $0x7a4] sm:$0xf]
    %v3507 = vld [vmem:[#allocation17 + $0x7a8] sm:$0xff]
    %v3508 = vld [vmem:[#allocation17 + $0x7b0] sm:$0xff]
    %v3509 = vld [vmem:[#allocation17 + $0x7b8] sm:$0xff]
    %v3510 = vld [vmem:[#allocation17 + $0x7c0] sm:$0xf]
    %v3511 = vld [vmem:[#allocation17 + $0x7c4] sm:$0xff]
    %v3512 = vld [vmem:[#allocation17 + $0x7cc] sm:$0xff]
    %v3513 = vld [vmem:[#allocation17 + $0x7d4] sm:$0xff]
    %v3514 = vld [vmem:[#allocation17 + $0x7dc] sm:$0xf]
    %v3515 = vld [vmem:[#allocation17 + $0x7e0] sm:$0xff]
    %v3516 = vld [vmem:[#allocation17 + $0x7e8] sm:$0xff]
    %v3517 = vld [vmem:[#allocation17 + $0x7f0] sm:$0xff]
    %v3518 = vld [vmem:[#allocation17 + $0x7f8] sm:$0xf]
    %v3519 = vld [vmem:[#allocation17 + $0x7fc] sm:$0xff]
    %v3520 = vld [vmem:[#allocation17 + $0x804] sm:$0xff]
    %v3521 = vld [vmem:[#allocation17 + $0x80c] sm:$0xff]
    %v3522 = vld [vmem:[#allocation17 + $0x814] sm:$0xf]
    %v3523 = vld [vmem:[#allocation17 + $0x818] sm:$0xff]
    %v3524 = vld [vmem:[#allocation17 + $0x820] sm:$0xff]
    %v3525 = vld [vmem:[#allocation17 + $0x828] sm:$0xff]
    %v3526 = vld [vmem:[#allocation17 + $0x830] sm:$0xf]
    %v3527 = vld [vmem:[#allocation17 + $0x834] sm:$0xff]
    %v3528 = vld [vmem:[#allocation17 + $0x83c] sm:$0xff]
    %v3529 = vld [vmem:[#allocation17 + $0x844] sm:$0xff]
    %v3530 = vld [vmem:[#allocation17 + $0x84c] sm:$0xf]
    %v3531 = vld [vmem:[#allocation17 + $0x850] sm:$0xff]
    %v3532 = vld [vmem:[#allocation17 + $0x858] sm:$0xff]
    %v3533 = vld [vmem:[#allocation17 + $0x860] sm:$0xff]
    %v3534 = vld [vmem:[#allocation17 + $0x868] sm:$0xf]
    %v3535 = vld [vmem:[#allocation17 + $0x86c] sm:$0xff]
    %v3536 = vld [vmem:[#allocation17 + $0x874] sm:$0xff]
    %v3537 = vld [vmem:[#allocation17 + $0x87c] sm:$0xff]
    %v3538 = vld [vmem:[#allocation17 + $0x884] sm:$0xf]
    %v3539 = vld [vmem:[#allocation17 + $0x888] sm:$0xff]
    %v3540 = vld [vmem:[#allocation17 + $0x890] sm:$0xff]
    %v3541 = vld [vmem:[#allocation17 + $0x898] sm:$0xff]
    %v3542 = vld [vmem:[#allocation17 + $0x8a0] sm:$0xf]
    %v3543 = vld [vmem:[#allocation17 + $0x8a4] sm:$0xff]
    %v3544 = vld [vmem:[#allocation17 + $0x8ac] sm:$0xff]
    %v3545 = vld [vmem:[#allocation17 + $0x8b4] sm:$0xff]
    %v3546 = vld [vmem:[#allocation17 + $0x8bc] sm:$0xf]
    %v3547 = vld [vmem:[#allocation17 + $0x8c0] sm:$0xff]
    %v3548 = vld [vmem:[#allocation17 + $0x8c8] sm:$0xff]
    %v3549 = vld [vmem:[#allocation17 + $0x8d0] sm:$0xff]
    %v3550 = vld [vmem:[#allocation17 + $0x8d8] sm:$0xf]
    %v3551 = vld [vmem:[#allocation17 + $0x8dc] sm:$0xff]
    %v3552 = vld [vmem:[#allocation17 + $0x8e4] sm:$0xff]
    %v3553 = vld [vmem:[#allocation17 + $0x8ec] sm:$0xff]
    %v3554 = vld [vmem:[#allocation17 + $0x8f4] sm:$0xf]
    %v3555 = vld [vmem:[#allocation17 + $0x8f8] sm:$0xff]
    %v3556 = vld [vmem:[#allocation17 + $0x900] sm:$0xff]
    %v3557 = vld [vmem:[#allocation17 + $0x908] sm:$0xff]
    %v3558 = vld [vmem:[#allocation17 + $0x910] sm:$0xf]
    %v3559 = vld [vmem:[#allocation17 + $0x914] sm:$0xff]
    %v3560 = vld [vmem:[#allocation17 + $0x91c] sm:$0xff]
    %v3561 = vld [vmem:[#allocation17 + $0x924] sm:$0xff]
    %v3562 = vld [vmem:[#allocation17 + $0x92c] sm:$0xf]
    %v3563 = vld [vmem:[#allocation17 + $0x930] sm:$0xff]
    %v3564 = vld [vmem:[#allocation17 + $0x938] sm:$0xff]
    %v3565 = vld [vmem:[#allocation17 + $0x940] sm:$0xff]
    %v3566 = vld [vmem:[#allocation17 + $0x948] sm:$0xf]
    %v3567 = vld [vmem:[#allocation17 + $0x94c] sm:$0xff]
    %v3568 = vld [vmem:[#allocation17 + $0x954] sm:$0xff]
    %v3569 = vld [vmem:[#allocation17 + $0x95c] sm:$0xff]
    %v3570 = vld [vmem:[#allocation17 + $0x964] sm:$0xf]
    %v3571 = vld [vmem:[#allocation17 + $0x968] sm:$0xff]
    %v3572 = vld [vmem:[#allocation17 + $0x970] sm:$0xff]
    %v3573 = vld [vmem:[#allocation17 + $0x978] sm:$0xff]
    %v3574 = vld [vmem:[#allocation17 + $0x980] sm:$0xf]
    %v3575 = vld [vmem:[#allocation17 + $0x984] sm:$0xff]
    %v3576 = vld [vmem:[#allocation17 + $0x98c] sm:$0xff]
    %v3577 = vld [vmem:[#allocation17 + $0x994] sm:$0xff]
    %v3578 = vld [vmem:[#allocation17 + $0x99c] sm:$0xf]
    %v3579 = vld [vmem:[#allocation17 + $0x9a0] sm:$0xff]
    %v3580 = vld [vmem:[#allocation17 + $0x9a8] sm:$0xff]
    %v3581 = vld [vmem:[#allocation17 + $0x9b0] sm:$0xff]
    %v3582 = vld [vmem:[#allocation17 + $0x9b8] sm:$0xf]
    %v3583 = vld [vmem:[#allocation17 + $0x9bc] sm:$0xff]
    %v3584 = vld [vmem:[#allocation17 + $0x9c4] sm:$0xff]
    %v3585 = vld [vmem:[#allocation17 + $0x9cc] sm:$0xff]
    %v3586 = vld [vmem:[#allocation17 + $0x9d4] sm:$0xf]
    %v3587 = vld [vmem:[#allocation17 + $0x9d8] sm:$0xff]
    %v3588 = vld [vmem:[#allocation17 + $0x9e0] sm:$0xff]
    %v3589 = vld [vmem:[#allocation17 + $0x9e8] sm:$0xff]
    %v3590 = vld [vmem:[#allocation17 + $0x9f0] sm:$0xf]
    %v3591 = vld [vmem:[#allocation17 + $0x9f4] sm:$0xff]
    %v3592 = vld [vmem:[#allocation17 + $0x9fc] sm:$0xff]
    %v3593 = vld [vmem:[#allocation17 + $0xa04] sm:$0xff]
    %v3594 = vld [vmem:[#allocation17 + $0xa0c] sm:$0xf]
    %v3595 = vld [vmem:[#allocation17 + $0xa10] sm:$0xff]
    %v3596 = vld [vmem:[#allocation17 + $0xa18] sm:$0xff]
    %v3597 = vld [vmem:[#allocation17 + $0xa20] sm:$0xff]
    %v3598 = vld [vmem:[#allocation17 + $0xa28] sm:$0xf]
    %v3599 = vld [vmem:[#allocation17 + $0xa2c] sm:$0xff]
    %v3600 = vld [vmem:[#allocation17 + $0xa34] sm:$0xff]
    %v3601 = vld [vmem:[#allocation17 + $0xa3c] sm:$0xff]
    %v3602 = vld [vmem:[#allocation17 + $0xa44] sm:$0xf]
    %v3603 = vld [vmem:[#allocation17 + $0xa48] sm:$0xff]
    %v3604 = vld [vmem:[#allocation17 + $0xa50] sm:$0xff]
    %v3605 = vld [vmem:[#allocation17 + $0xa58] sm:$0xff]
    %v3606 = vld [vmem:[#allocation17 + $0xa60] sm:$0xf]
    %v3607 = vld [vmem:[#allocation17 + $0xa64] sm:$0xff]
    %v3608 = vld [vmem:[#allocation17 + $0xa6c] sm:$0xff]
    %v3609 = vld [vmem:[#allocation17 + $0xa74] sm:$0xff]
    %v3610 = vld [vmem:[#allocation17 + $0xa7c] sm:$0xf]
    %v3611 = vld [vmem:[#allocation17 + $0xa80] sm:$0xff]
    %v3612 = vld [vmem:[#allocation17 + $0xa88] sm:$0xff]
    %v3613 = vld [vmem:[#allocation17 + $0xa90] sm:$0xff]
    %v3614 = vld [vmem:[#allocation17 + $0xa98] sm:$0xf]
    %v3615 = vld [vmem:[#allocation17 + $0xa9c] sm:$0xff]
    %v3616 = vld [vmem:[#allocation17 + $0xaa4] sm:$0xff]
    %v3617 = vld [vmem:[#allocation17 + $0xaac] sm:$0xff]
    %v3618 = vld [vmem:[#allocation17 + $0xab4] sm:$0xf]
    %v3619 = vld [vmem:[#allocation17 + $0xab8] sm:$0xff]
    %v3620 = vld [vmem:[#allocation17 + $0xac0] sm:$0xff]
    %v3621 = vld [vmem:[#allocation17 + $0xac8] sm:$0xff]
    %v3622 = vld [vmem:[#allocation17 + $0xad0] sm:$0xf]
    %v3623 = vld [vmem:[#allocation17 + $0xad4] sm:$0xff]
    %v3624 = vld [vmem:[#allocation17 + $0xadc] sm:$0xff]
    %v3625 = vld [vmem:[#allocation17 + $0xae4] sm:$0xff]
    %v3626 = vld [vmem:[#allocation17 + $0xaec] sm:$0xf]
    %v3627 = vld [vmem:[#allocation17 + $0xaf0] sm:$0xff]
    %v3628 = vld [vmem:[#allocation17 + $0xaf8] sm:$0xff]
    %v3629 = vld [vmem:[#allocation17 + $0xb00] sm:$0xff]
    %v3630 = vld [vmem:[#allocation17 + $0xb08] sm:$0xf]
    %v3631 = vld [vmem:[#allocation17 + $0xb0c] sm:$0xff]
    %v3632 = vld [vmem:[#allocation17 + $0xb14] sm:$0xff]
    %v3633 = vld [vmem:[#allocation17 + $0xb1c] sm:$0xff]
    %v3634 = vld [vmem:[#allocation17 + $0xb24] sm:$0xf]
    %v3635 = vld [vmem:[#allocation17 + $0xb28] sm:$0xff]
    %v3636 = vld [vmem:[#allocation17 + $0xb30] sm:$0xff]
    %v3637 = vld [vmem:[#allocation17 + $0xb38] sm:$0xff]
    %v3638 = vld [vmem:[#allocation17 + $0xb40] sm:$0xf]
    %v3639 = vld [vmem:[#allocation17 + $0xb44] sm:$0xff]
    %v3640 = vld [vmem:[#allocation17 + $0xb4c] sm:$0xff]
    %v3641 = vld [vmem:[#allocation17 + $0xb54] sm:$0xff]
    %v3642 = vld [vmem:[#allocation17 + $0xb5c] sm:$0xf]
    %v3643 = vld [vmem:[#allocation17 + $0xb60] sm:$0xff]
    %v3644 = vld [vmem:[#allocation17 + $0xb68] sm:$0xff]
    %v3645 = vld [vmem:[#allocation17 + $0xb70] sm:$0xff]
    %v3646 = vld [vmem:[#allocation17 + $0xb78] sm:$0xf]
    %v3647 = vld [vmem:[#allocation17 + $0xb7c] sm:$0xff]
    %v3648 = vld [vmem:[#allocation17 + $0xb84] sm:$0xff]
    %v3649 = vld [vmem:[#allocation17 + $0xb8c] sm:$0xff]
    %v3650 = vld [vmem:[#allocation17 + $0xb94] sm:$0xf]
    %v3651 = vld [vmem:[#allocation17 + $0xb98] sm:$0xff]
    %v3652 = vld [vmem:[#allocation17 + $0xba0] sm:$0xff]
    %v3653 = vld [vmem:[#allocation17 + $0xba8] sm:$0xff]
    %v3654 = vld [vmem:[#allocation17 + $0xbb0] sm:$0xf]
    %v3655 = vld [vmem:[#allocation17 + $0xbb4] sm:$0xff]
    %v3656 = vld [vmem:[#allocation17 + $0xbbc] sm:$0xff]
    %v3657 = vld [vmem:[#allocation17 + $0xbc4] sm:$0xff]
    %v3658 = vld [vmem:[#allocation17 + $0xbcc] sm:$0xf]
    %v3659 = vld [vmem:[#allocation17 + $0xbd0] sm:$0xff]
    %v3660 = vld [vmem:[#allocation17 + $0xbd8] sm:$0xff]
    %v3661 = vld [vmem:[#allocation17 + $0xbe0] sm:$0xff]
    %v3662 = vld [vmem:[#allocation17 + $0xbe8] sm:$0xf]
    %v3663 = vld [vmem:[#allocation17 + $0xbec] sm:$0xff]
    %v3664 = vld [vmem:[#allocation17 + $0xbf4] sm:$0xff]
    %v3665 = vld [vmem:[#allocation17 + $0xbfc] sm:$0xff]
    %v3666 = vld [vmem:[#allocation17 + $0xc04] sm:$0xf]
    %v3667 = vld [vmem:[#allocation17 + $0xc08] sm:$0xff]
    %v3668 = vld [vmem:[#allocation17 + $0xc10] sm:$0xff]
    %v3669 = vld [vmem:[#allocation17 + $0xc18] sm:$0xff]
    %v3670 = vld [vmem:[#allocation17 + $0xc20] sm:$0xf]
    %v3671 = vld [vmem:[#allocation17 + $0xc24] sm:$0xff]
    %v3672 = vld [vmem:[#allocation17 + $0xc2c] sm:$0xff]
    %v3673 = vld [vmem:[#allocation17 + $0xc34] sm:$0xff]
    %v3674 = vld [vmem:[#allocation17 + $0xc3c] sm:$0xf]
    %v3675 = vld [vmem:[#allocation17 + $0xc40] sm:$0xff]
    %v3676 = vld [vmem:[#allocation17 + $0xc48] sm:$0xff]
    %v3677 = vld [vmem:[#allocation17 + $0xc50] sm:$0xff]
    %v3678 = vld [vmem:[#allocation17 + $0xc58] sm:$0xf]
    %v3679 = vld [vmem:[#allocation17 + $0xc5c] sm:$0xff]
    %v3680 = vld [vmem:[#allocation17 + $0xc64] sm:$0xff]
    %v3681 = vld [vmem:[#allocation17 + $0xc6c] sm:$0xff]
    %v3682 = vld [vmem:[#allocation17 + $0xc74] sm:$0xf]
    %v3683 = vld [vmem:[#allocation17 + $0xc78] sm:$0xff]
    %v3684 = vld [vmem:[#allocation17 + $0xc80] sm:$0xff]
    %v3685 = vld [vmem:[#allocation17 + $0xc88] sm:$0xff]
    %v3686 = vld [vmem:[#allocation17 + $0xc90] sm:$0xf]
    %v3687 = vld [vmem:[#allocation17 + $0xc94] sm:$0xff]
    %v3688 = vld [vmem:[#allocation17 + $0xc9c] sm:$0xff]
    %v3689 = vld [vmem:[#allocation17 + $0xca4] sm:$0xff]
    %v3690 = vld [vmem:[#allocation17 + $0xcac] sm:$0xf]
    %v3691 = vld [vmem:[#allocation17 + $0xcb0] sm:$0xff]
    %v3692 = vld [vmem:[#allocation17 + $0xcb8] sm:$0xff]
    %v3693 = vld [vmem:[#allocation17 + $0xcc0] sm:$0xff]
    %v3694 = vld [vmem:[#allocation17 + $0xcc8] sm:$0xf]
    %v3695 = vld [vmem:[#allocation17 + $0xccc] sm:$0xff]
    %v3696 = vld [vmem:[#allocation17 + $0xcd4] sm:$0xff]
    %v3697 = vld [vmem:[#allocation17 + $0xcdc] sm:$0xff]
    %v3698 = vld [vmem:[#allocation17 + $0xce4] sm:$0xf]
    %v3699 = vld [vmem:[#allocation17 + $0xce8] sm:$0xff]
    %v3700 = vld [vmem:[#allocation17 + $0xcf0] sm:$0xff]
    %v3701 = vld [vmem:[#allocation17 + $0xcf8] sm:$0xff]
    %v3702 = vld [vmem:[#allocation17 + $0xd00] sm:$0xf]
    %v3703 = vld [vmem:[#allocation17 + $0xd04] sm:$0xff]
    %v3704 = vld [vmem:[#allocation17 + $0xd0c] sm:$0xff]
    %v3705 = vld [vmem:[#allocation17 + $0xd14] sm:$0xff]
    %v3706 = vld [vmem:[#allocation17 + $0xd1c] sm:$0xf]
    %v3707 = vld [vmem:[#allocation17 + $0xd20] sm:$0xff]
    %v3708 = vld [vmem:[#allocation17 + $0xd28] sm:$0xff]
    %v3709 = vld [vmem:[#allocation17 + $0xd30] sm:$0xff]
    %v3710 = vld [vmem:[#allocation17 + $0xd38] sm:$0xf]
    %v3711 = vld [vmem:[#allocation17 + $0xd3c] sm:$0xff]
    %v3712 = vld [vmem:[#allocation17 + $0xd44] sm:$0xff]
    %v3713 = vld [vmem:[#allocation17 + $0xd4c] sm:$0xff]
    %v3714 = vld [vmem:[#allocation17 + $0xd54] sm:$0xf]
    %v3715 = vld [vmem:[#allocation17 + $0xd58] sm:$0xff]
    %v3716 = vld [vmem:[#allocation17 + $0xd60] sm:$0xff]
    %v3717 = vld [vmem:[#allocation17 + $0xd68] sm:$0xff]
    %v3718 = vld [vmem:[#allocation17 + $0xd70] sm:$0xf]
    %v3719 = vld [vmem:[#allocation17 + $0xd74] sm:$0xff]
    %v3720 = vld [vmem:[#allocation17 + $0xd7c] sm:$0xff]
    %v3721 = vld [vmem:[#allocation17 + $0xd84] sm:$0xff]
    %v3722 = vld [vmem:[#allocation17 + $0xd8c] sm:$0xf]
    %v3723 = vld [vmem:[#allocation17 + $0xd90] sm:$0xff]
    %v3724 = vld [vmem:[#allocation17 + $0xd98] sm:$0xff]
    %v3725 = vld [vmem:[#allocation17 + $0xda0] sm:$0xff]
    %v3726 = vld [vmem:[#allocation17 + $0xda8] sm:$0xf]
    %v3727 = vld [vmem:[#allocation17 + $0xdac] sm:$0xff]
    %v3728 = vld [vmem:[#allocation17 + $0xdb4] sm:$0xff]
    %v3729 = vld [vmem:[#allocation17 + $0xdbc] sm:$0xff]
    %v3730 = vld [vmem:[#allocation17 + $0xdc4] sm:$0xf]
    %v3731 = vld [vmem:[#allocation17 + $0xdc8] sm:$0xff]
    %v3732 = vld [vmem:[#allocation17 + $0xdd0] sm:$0xff]
    %v3733 = vld [vmem:[#allocation17 + $0xdd8] sm:$0xff]
    %v3734 = vld [vmem:[#allocation17 + $0xde0] sm:$0xf]
    %v3735 = vld [vmem:[#allocation17 + $0xde4] sm:$0xff]
    %v3736 = vld [vmem:[#allocation17 + $0xdec] sm:$0xff]
    %v3737 = vld [vmem:[#allocation17 + $0xdf4] sm:$0xff]
    %v3738 = vld [vmem:[#allocation17 + $0xdfc] sm:$0xf]
    %v3739 = vld [vmem:[#allocation19] sm:$0xff]
    %v3741 = vlaneseq
    %v3742 = vshrl.u32 %v3741, 7
    %v3743 = vsub.s32 0, %v3742
    %v3744 = vrot.slane %v3739, %v3743
    %v3745 = vlaneseq
    %v3746 = vshrl.u32 %v3745, 7
    %v3747 = vsub.s32 1, %v3746
    %v3748 = vrot.slane %v3739, %v3747
    %v3749 = vlaneseq
    %v3750 = vshrl.u32 %v3749, 7
    %v3751 = vsub.s32 2, %v3750
    %v3752 = vrot.slane %v3739, %v3751
    %v3753 = vlaneseq
    %v3754 = vshrl.u32 %v3753, 7
    %v3755 = vsub.s32 3, %v3754
    %v3756 = vrot.slane %v3739, %v3755
    %v3757 = vlaneseq
    %v3758 = vshrl.u32 %v3757, 7
    %v3759 = vsub.s32 4, %v3758
    %v3760 = vrot.slane %v3739, %v3759
    %v3761 = vlaneseq
    %v3762 = vshrl.u32 %v3761, 7
    %v3763 = vsub.s32 5, %v3762
    %v3764 = vrot.slane %v3739, %v3763
    %v3765 = vlaneseq
    %v3766 = vshrl.u32 %v3765, 7
    %v3767 = vsub.s32 6, %v3766
    %v3768 = vrot.slane %v3739, %v3767
    %v4288 = vunpack.c.l.b16 %v3227
    %v4289 = vunpack.c.h.b16 %v3227
    %v4290 = vunpack.c.l.b16 %v3228
    %v4291 = vunpack.c.h.b16 %v3228
    %v4292 = vunpack.c.l.b16 %v3229
    %v4293 = vunpack.c.h.b16 %v3229
    %v4294 = vunpack.c.l.b16 %v3230
    %v4295 = vunpack.c.l.b16 %v3231
    %v4296 = vunpack.c.h.b16 %v3231
    %v4297 = vunpack.c.l.b16 %v3232
    %v4298 = vunpack.c.h.b16 %v3232
    %v4299 = vunpack.c.l.b16 %v3233
    %v4300 = vunpack.c.h.b16 %v3233
    %v4301 = vunpack.c.l.b16 %v3234
    %v4302 = vunpack.c.l.b16 %v3235
    %v4303 = vunpack.c.h.b16 %v3235
    %v4304 = vunpack.c.l.b16 %v3236
    %v4305 = vunpack.c.h.b16 %v3236
    %v4306 = vunpack.c.l.b16 %v3237
    %v4307 = vunpack.c.h.b16 %v3237
    %v4308 = vunpack.c.l.b16 %v3238
    %v4309 = vunpack.c.l.b16 %v3239
    %v4310 = vunpack.c.h.b16 %v3239
    %v4311 = vunpack.c.l.b16 %v3240
    %v4312 = vunpack.c.h.b16 %v3240
    %v4313 = vunpack.c.l.b16 %v3241
    %v4314 = vunpack.c.h.b16 %v3241
    %v4315 = vunpack.c.l.b16 %v3242
    %v4316 = vunpack.c.l.b16 %v3243
    %v4317 = vunpack.c.h.b16 %v3243
    %v4318 = vunpack.c.l.b16 %v3244
    %v4319 = vunpack.c.h.b16 %v3244
    %v4320 = vunpack.c.l.b16 %v3245
    %v4321 = vunpack.c.h.b16 %v3245
    %v4322 = vunpack.c.l.b16 %v3246
    %v4323 = vunpack.c.l.b16 %v3247
    %v4324 = vunpack.c.h.b16 %v3247
    %v4325 = vunpack.c.l.b16 %v3248
    %v4326 = vunpack.c.h.b16 %v3248
    %v4327 = vunpack.c.l.b16 %v3249
    %v4328 = vunpack.c.h.b16 %v3249
    %v4329 = vunpack.c.l.b16 %v3250
    %v4330 = vunpack.c.l.b16 %v3251
    %v4331 = vunpack.c.h.b16 %v3251
    %v4332 = vunpack.c.l.b16 %v3252
    %v4333 = vunpack.c.h.b16 %v3252
    %v4334 = vunpack.c.l.b16 %v3253
    %v4335 = vunpack.c.h.b16 %v3253
    %v4336 = vunpack.c.l.b16 %v3254
    %v4337 = vunpack.c.l.b16 %v3255
    %v4338 = vunpack.c.h.b16 %v3255
    %v4339 = vunpack.c.l.b16 %v3256
    %v4340 = vunpack.c.h.b16 %v3256
    %v4341 = vunpack.c.l.b16 %v3257
    %v4342 = vunpack.c.h.b16 %v3257
    %v4343 = vunpack.c.l.b16 %v3258
    %v4344 = vunpack.c.l.b16 %v3259
    %v4345 = vunpack.c.h.b16 %v3259
    %v4346 = vunpack.c.l.b16 %v3260
    %v4347 = vunpack.c.h.b16 %v3260
    %v4348 = vunpack.c.l.b16 %v3261
    %v4349 = vunpack.c.h.b16 %v3261
    %v4350 = vunpack.c.l.b16 %v3262
    %v4351 = vunpack.c.l.b16 %v3263
    %v4352 = vunpack.c.h.b16 %v3263
    %v4353 = vunpack.c.l.b16 %v3264
    %v4354 = vunpack.c.h.b16 %v3264
    %v4355 = vunpack.c.l.b16 %v3265
    %v4356 = vunpack.c.h.b16 %v3265
    %v4357 = vunpack.c.l.b16 %v3266
    %v4358 = vunpack.c.l.b16 %v3267
    %v4359 = vunpack.c.h.b16 %v3267
    %v4360 = vunpack.c.l.b16 %v3268
    %v4361 = vunpack.c.h.b16 %v3268
    %v4362 = vunpack.c.l.b16 %v3269
    %v4363 = vunpack.c.h.b16 %v3269
    %v4364 = vunpack.c.l.b16 %v3270
    %v4365 = vunpack.c.l.b16 %v3271
    %v4366 = vunpack.c.h.b16 %v3271
    %v4367 = vunpack.c.l.b16 %v3272
    %v4368 = vunpack.c.h.b16 %v3272
    %v4369 = vunpack.c.l.b16 %v3273
    %v4370 = vunpack.c.h.b16 %v3273
    %v4371 = vunpack.c.l.b16 %v3274
    %v4372 = vunpack.c.l.b16 %v3275
    %v4373 = vunpack.c.h.b16 %v3275
    %v4374 = vunpack.c.l.b16 %v3276
    %v4375 = vunpack.c.h.b16 %v3276
    %v4376 = vunpack.c.l.b16 %v3277
    %v4377 = vunpack.c.h.b16 %v3277
    %v4378 = vunpack.c.l.b16 %v3278
    %v4379 = vunpack.c.l.b16 %v3279
    %v4380 = vunpack.c.h.b16 %v3279
    %v4381 = vunpack.c.l.b16 %v3280
    %v4382 = vunpack.c.h.b16 %v3280
    %v4383 = vunpack.c.l.b16 %v3281
    %v4384 = vunpack.c.h.b16 %v3281
    %v4385 = vunpack.c.l.b16 %v3282
    %v4386 = vunpack.c.l.b16 %v3283
    %v4387 = vunpack.c.h.b16 %v3283
    %v4388 = vunpack.c.l.b16 %v3284
    %v4389 = vunpack.c.h.b16 %v3284
    %v4390 = vunpack.c.l.b16 %v3285
    %v4391 = vunpack.c.h.b16 %v3285
    %v4392 = vunpack.c.l.b16 %v3286
    %v4393 = vunpack.c.l.b16 %v3287
    %v4394 = vunpack.c.h.b16 %v3287
    %v4395 = vunpack.c.l.b16 %v3288
    %v4396 = vunpack.c.h.b16 %v3288
    %v4397 = vunpack.c.l.b16 %v3289
    %v4398 = vunpack.c.h.b16 %v3289
    %v4399 = vunpack.c.l.b16 %v3290
    %v4400 = vunpack.c.l.b16 %v3291
    %v4401 = vunpack.c.h.b16 %v3291
    %v4402 = vunpack.c.l.b16 %v3292
    %v4403 = vunpack.c.h.b16 %v3292
    %v4404 = vunpack.c.l.b16 %v3293
    %v4405 = vunpack.c.h.b16 %v3293
    %v4406 = vunpack.c.l.b16 %v3294
    %v4407 = vunpack.c.l.b16 %v3295
    %v4408 = vunpack.c.h.b16 %v3295
    %v4409 = vunpack.c.l.b16 %v3296
    %v4410 = vunpack.c.h.b16 %v3296
    %v4411 = vunpack.c.l.b16 %v3297
    %v4412 = vunpack.c.h.b16 %v3297
    %v4413 = vunpack.c.l.b16 %v3298
    %v4414 = vunpack.c.l.b16 %v3299
    %v4415 = vunpack.c.h.b16 %v3299
    %v4416 = vunpack.c.l.b16 %v3300
    %v4417 = vunpack.c.h.b16 %v3300
    %v4418 = vunpack.c.l.b16 %v3301
    %v4419 = vunpack.c.h.b16 %v3301
    %v4420 = vunpack.c.l.b16 %v3302
    %v4421 = vunpack.c.l.b16 %v3303
    %v4422 = vunpack.c.h.b16 %v3303
    %v4423 = vunpack.c.l.b16 %v3304
    %v4424 = vunpack.c.h.b16 %v3304
    %v4425 = vunpack.c.l.b16 %v3305
    %v4426 = vunpack.c.h.b16 %v3305
    %v4427 = vunpack.c.l.b16 %v3306
    %v4428 = vunpack.c.l.b16 %v3307
    %v4429 = vunpack.c.h.b16 %v3307
    %v4430 = vunpack.c.l.b16 %v3308
    %v4431 = vunpack.c.h.b16 %v3308
    %v4432 = vunpack.c.l.b16 %v3309
    %v4433 = vunpack.c.h.b16 %v3309
    %v4434 = vunpack.c.l.b16 %v3310
    %v4435 = vunpack.c.l.b16 %v3311
    %v4436 = vunpack.c.h.b16 %v3311
    %v4437 = vunpack.c.l.b16 %v3312
    %v4438 = vunpack.c.h.b16 %v3312
    %v4439 = vunpack.c.l.b16 %v3313
    %v4440 = vunpack.c.h.b16 %v3313
    %v4441 = vunpack.c.l.b16 %v3314
    %v4442 = vunpack.c.l.b16 %v3315
    %v4443 = vunpack.c.h.b16 %v3315
    %v4444 = vunpack.c.l.b16 %v3316
    %v4445 = vunpack.c.h.b16 %v3316
    %v4446 = vunpack.c.l.b16 %v3317
    %v4447 = vunpack.c.h.b16 %v3317
    %v4448 = vunpack.c.l.b16 %v3318
    %v4449 = vunpack.c.l.b16 %v3319
    %v4450 = vunpack.c.h.b16 %v3319
    %v4451 = vunpack.c.l.b16 %v3320
    %v4452 = vunpack.c.h.b16 %v3320
    %v4453 = vunpack.c.l.b16 %v3321
    %v4454 = vunpack.c.h.b16 %v3321
    %v4455 = vunpack.c.l.b16 %v3322
    %v4456 = vunpack.c.l.b16 %v3323
    %v4457 = vunpack.c.h.b16 %v3323
    %v4458 = vunpack.c.l.b16 %v3324
    %v4459 = vunpack.c.h.b16 %v3324
    %v4460 = vunpack.c.l.b16 %v3325
    %v4461 = vunpack.c.h.b16 %v3325
    %v4462 = vunpack.c.l.b16 %v3326
    %v4463 = vunpack.c.l.b16 %v3327
    %v4464 = vunpack.c.h.b16 %v3327
    %v4465 = vunpack.c.l.b16 %v3328
    %v4466 = vunpack.c.h.b16 %v3328
    %v4467 = vunpack.c.l.b16 %v3329
    %v4468 = vunpack.c.h.b16 %v3329
    %v4469 = vunpack.c.l.b16 %v3330
    %v4470 = vunpack.c.l.b16 %v3331
    %v4471 = vunpack.c.h.b16 %v3331
    %v4472 = vunpack.c.l.b16 %v3332
    %v4473 = vunpack.c.h.b16 %v3332
    %v4474 = vunpack.c.l.b16 %v3333
    %v4475 = vunpack.c.h.b16 %v3333
    %v4476 = vunpack.c.l.b16 %v3334
    %v4477 = vunpack.c.l.b16 %v3335
    %v4478 = vunpack.c.h.b16 %v3335
    %v4479 = vunpack.c.l.b16 %v3336
    %v4480 = vunpack.c.h.b16 %v3336
    %v4481 = vunpack.c.l.b16 %v3337
    %v4482 = vunpack.c.h.b16 %v3337
    %v4483 = vunpack.c.l.b16 %v3338
    %v4484 = vunpack.c.l.b16 %v3339
    %v4485 = vunpack.c.h.b16 %v3339
    %v4486 = vunpack.c.l.b16 %v3340
    %v4487 = vunpack.c.h.b16 %v3340
    %v4488 = vunpack.c.l.b16 %v3341
    %v4489 = vunpack.c.h.b16 %v3341
    %v4490 = vunpack.c.l.b16 %v3342
    %v4491 = vunpack.c.l.b16 %v3343
    %v4492 = vunpack.c.h.b16 %v3343
    %v4493 = vunpack.c.l.b16 %v3344
    %v4494 = vunpack.c.h.b16 %v3344
    %v4495 = vunpack.c.l.b16 %v3345
    %v4496 = vunpack.c.h.b16 %v3345
    %v4497 = vunpack.c.l.b16 %v3346
    %v4498 = vunpack.c.l.b16 %v3347
    %v4499 = vunpack.c.h.b16 %v3347
    %v4500 = vunpack.c.l.b16 %v3348
    %v4501 = vunpack.c.h.b16 %v3348
    %v4502 = vunpack.c.l.b16 %v3349
    %v4503 = vunpack.c.h.b16 %v3349
    %v4504 = vunpack.c.l.b16 %v3350
    %v4505 = vunpack.c.l.b16 %v3351
    %v4506 = vunpack.c.h.b16 %v3351
    %v4507 = vunpack.c.l.b16 %v3352
    %v4508 = vunpack.c.h.b16 %v3352
    %v4509 = vunpack.c.l.b16 %v3353
    %v4510 = vunpack.c.h.b16 %v3353
    %v4511 = vunpack.c.l.b16 %v3354
    %v4512 = vunpack.c.l.b16 %v3355
    %v4513 = vunpack.c.h.b16 %v3355
    %v4514 = vunpack.c.l.b16 %v3356
    %v4515 = vunpack.c.h.b16 %v3356
    %v4516 = vunpack.c.l.b16 %v3357
    %v4517 = vunpack.c.h.b16 %v3357
    %v4518 = vunpack.c.l.b16 %v3358
    %v4519 = vunpack.c.l.b16 %v3359
    %v4520 = vunpack.c.h.b16 %v3359
    %v4521 = vunpack.c.l.b16 %v3360
    %v4522 = vunpack.c.h.b16 %v3360
    %v4523 = vunpack.c.l.b16 %v3361
    %v4524 = vunpack.c.h.b16 %v3361
    %v4525 = vunpack.c.l.b16 %v3362
    %v4526 = vunpack.c.l.b16 %v3363
    %v4527 = vunpack.c.h.b16 %v3363
    %v4528 = vunpack.c.l.b16 %v3364
    %v4529 = vunpack.c.h.b16 %v3364
    %v4530 = vunpack.c.l.b16 %v3365
    %v4531 = vunpack.c.h.b16 %v3365
    %v4532 = vunpack.c.l.b16 %v3366
    %v4533 = vunpack.c.l.b16 %v3367
    %v4534 = vunpack.c.h.b16 %v3367
    %v4535 = vunpack.c.l.b16 %v3368
    %v4536 = vunpack.c.h.b16 %v3368
    %v4537 = vunpack.c.l.b16 %v3369
    %v4538 = vunpack.c.h.b16 %v3369
    %v4539 = vunpack.c.l.b16 %v3370
    %v4540 = vunpack.c.l.b16 %v3371
    %v4541 = vunpack.c.h.b16 %v3371
    %v4542 = vunpack.c.l.b16 %v3372
    %v4543 = vunpack.c.h.b16 %v3372
    %v4544 = vunpack.c.l.b16 %v3373
    %v4545 = vunpack.c.h.b16 %v3373
    %v4546 = vunpack.c.l.b16 %v3374
    %v4547 = vunpack.c.l.b16 %v3375
    %v4548 = vunpack.c.h.b16 %v3375
    %v4549 = vunpack.c.l.b16 %v3376
    %v4550 = vunpack.c.h.b16 %v3376
    %v4551 = vunpack.c.l.b16 %v3377
    %v4552 = vunpack.c.h.b16 %v3377
    %v4553 = vunpack.c.l.b16 %v3378
    %v4554 = vunpack.c.l.b16 %v3379
    %v4555 = vunpack.c.h.b16 %v3379
    %v4556 = vunpack.c.l.b16 %v3380
    %v4557 = vunpack.c.h.b16 %v3380
    %v4558 = vunpack.c.l.b16 %v3381
    %v4559 = vunpack.c.h.b16 %v3381
    %v4560 = vunpack.c.l.b16 %v3382
    %v4561 = vunpack.c.l.b16 %v3383
    %v4562 = vunpack.c.h.b16 %v3383
    %v4563 = vunpack.c.l.b16 %v3384
    %v4564 = vunpack.c.h.b16 %v3384
    %v4565 = vunpack.c.l.b16 %v3385
    %v4566 = vunpack.c.h.b16 %v3385
    %v4567 = vunpack.c.l.b16 %v3386
    %v4568 = vunpack.c.l.b16 %v3387
    %v4569 = vunpack.c.h.b16 %v3387
    %v4570 = vunpack.c.l.b16 %v3388
    %v4571 = vunpack.c.h.b16 %v3388
    %v4572 = vunpack.c.l.b16 %v3389
    %v4573 = vunpack.c.h.b16 %v3389
    %v4574 = vunpack.c.l.b16 %v3390
    %v4575 = vunpack.c.l.b16 %v3391
    %v4576 = vunpack.c.h.b16 %v3391
    %v4577 = vunpack.c.l.b16 %v3392
    %v4578 = vunpack.c.h.b16 %v3392
    %v4579 = vunpack.c.l.b16 %v3393
    %v4580 = vunpack.c.h.b16 %v3393
    %v4581 = vunpack.c.l.b16 %v3394
    %v4582 = vunpack.c.l.b16 %v3395
    %v4583 = vunpack.c.h.b16 %v3395
    %v4584 = vunpack.c.l.b16 %v3396
    %v4585 = vunpack.c.h.b16 %v3396
    %v4586 = vunpack.c.l.b16 %v3397
    %v4587 = vunpack.c.h.b16 %v3397
    %v4588 = vunpack.c.l.b16 %v3398
    %v4589 = vunpack.c.l.b16 %v3399
    %v4590 = vunpack.c.h.b16 %v3399
    %v4591 = vunpack.c.l.b16 %v3400
    %v4592 = vunpack.c.h.b16 %v3400
    %v4593 = vunpack.c.l.b16 %v3401
    %v4594 = vunpack.c.h.b16 %v3401
    %v4595 = vunpack.c.l.b16 %v3402
    %v4596 = vunpack.c.l.b16 %v3403
    %v4597 = vunpack.c.h.b16 %v3403
    %v4598 = vunpack.c.l.b16 %v3404
    %v4599 = vunpack.c.h.b16 %v3404
    %v4600 = vunpack.c.l.b16 %v3405
    %v4601 = vunpack.c.h.b16 %v3405
    %v4602 = vunpack.c.l.b16 %v3406
    %v4603 = vunpack.c.l.b16 %v3407
    %v4604 = vunpack.c.h.b16 %v3407
    %v4605 = vunpack.c.l.b16 %v3408
    %v4606 = vunpack.c.h.b16 %v3408
    %v4607 = vunpack.c.l.b16 %v3409
    %v4608 = vunpack.c.h.b16 %v3409
    %v4609 = vunpack.c.l.b16 %v3410
    %v4610 = vunpack.c.l.b16 %v3411
    %v4611 = vunpack.c.h.b16 %v3411
    %v4612 = vunpack.c.l.b16 %v3412
    %v4613 = vunpack.c.h.b16 %v3412
    %v4614 = vunpack.c.l.b16 %v3413
    %v4615 = vunpack.c.h.b16 %v3413
    %v4616 = vunpack.c.l.b16 %v3414
    %v4617 = vunpack.c.l.b16 %v3415
    %v4618 = vunpack.c.h.b16 %v3415
    %v4619 = vunpack.c.l.b16 %v3416
    %v4620 = vunpack.c.h.b16 %v3416
    %v4621 = vunpack.c.l.b16 %v3417
    %v4622 = vunpack.c.h.b16 %v3417
    %v4623 = vunpack.c.l.b16 %v3418
    %v4624 = vunpack.c.l.b16 %v3419
    %v4625 = vunpack.c.h.b16 %v3419
    %v4626 = vunpack.c.l.b16 %v3420
    %v4627 = vunpack.c.h.b16 %v3420
    %v4628 = vunpack.c.l.b16 %v3421
    %v4629 = vunpack.c.h.b16 %v3421
    %v4630 = vunpack.c.l.b16 %v3422
    %v4631 = vunpack.c.l.b16 %v3423
    %v4632 = vunpack.c.h.b16 %v3423
    %v4633 = vunpack.c.l.b16 %v3424
    %v4634 = vunpack.c.h.b16 %v3424
    %v4635 = vunpack.c.l.b16 %v3425
    %v4636 = vunpack.c.h.b16 %v3425
    %v4637 = vunpack.c.l.b16 %v3426
    %v4638 = vunpack.c.l.b16 %v3427
    %v4639 = vunpack.c.h.b16 %v3427
    %v4640 = vunpack.c.l.b16 %v3428
    %v4641 = vunpack.c.h.b16 %v3428
    %v4642 = vunpack.c.l.b16 %v3429
    %v4643 = vunpack.c.h.b16 %v3429
    %v4644 = vunpack.c.l.b16 %v3430
    %v4645 = vunpack.c.l.b16 %v3431
    %v4646 = vunpack.c.h.b16 %v3431
    %v4647 = vunpack.c.l.b16 %v3432
    %v4648 = vunpack.c.h.b16 %v3432
    %v4649 = vunpack.c.l.b16 %v3433
    %v4650 = vunpack.c.h.b16 %v3433
    %v4651 = vunpack.c.l.b16 %v3434
    %v4652 = vunpack.c.l.b16 %v3435
    %v4653 = vunpack.c.h.b16 %v3435
    %v4654 = vunpack.c.l.b16 %v3436
    %v4655 = vunpack.c.h.b16 %v3436
    %v4656 = vunpack.c.l.b16 %v3437
    %v4657 = vunpack.c.h.b16 %v3437
    %v4658 = vunpack.c.l.b16 %v3438
    %v4659 = vunpack.c.l.b16 %v3439
    %v4660 = vunpack.c.h.b16 %v3439
    %v4661 = vunpack.c.l.b16 %v3440
    %v4662 = vunpack.c.h.b16 %v3440
    %v4663 = vunpack.c.l.b16 %v3441
    %v4664 = vunpack.c.h.b16 %v3441
    %v4665 = vunpack.c.l.b16 %v3442
    %v4666 = vunpack.c.l.b16 %v3443
    %v4667 = vunpack.c.h.b16 %v3443
    %v4668 = vunpack.c.l.b16 %v3444
    %v4669 = vunpack.c.h.b16 %v3444
    %v4670 = vunpack.c.l.b16 %v3445
    %v4671 = vunpack.c.h.b16 %v3445
    %v4672 = vunpack.c.l.b16 %v3446
    %v4673 = vunpack.c.l.b16 %v3447
    %v4674 = vunpack.c.h.b16 %v3447
    %v4675 = vunpack.c.l.b16 %v3448
    %v4676 = vunpack.c.h.b16 %v3448
    %v4677 = vunpack.c.l.b16 %v3449
    %v4678 = vunpack.c.h.b16 %v3449
    %v4679 = vunpack.c.l.b16 %v3450
    %v4680 = vunpack.c.l.b16 %v3451
    %v4681 = vunpack.c.h.b16 %v3451
    %v4682 = vunpack.c.l.b16 %v3452
    %v4683 = vunpack.c.h.b16 %v3452
    %v4684 = vunpack.c.l.b16 %v3453
    %v4685 = vunpack.c.h.b16 %v3453
    %v4686 = vunpack.c.l.b16 %v3454
    %v4687 = vunpack.c.l.b16 %v3455
    %v4688 = vunpack.c.h.b16 %v3455
    %v4689 = vunpack.c.l.b16 %v3456
    %v4690 = vunpack.c.h.b16 %v3456
    %v4691 = vunpack.c.l.b16 %v3457
    %v4692 = vunpack.c.h.b16 %v3457
    %v4693 = vunpack.c.l.b16 %v3458
    %v4694 = vunpack.c.l.b16 %v3459
    %v4695 = vunpack.c.h.b16 %v3459
    %v4696 = vunpack.c.l.b16 %v3460
    %v4697 = vunpack.c.h.b16 %v3460
    %v4698 = vunpack.c.l.b16 %v3461
    %v4699 = vunpack.c.h.b16 %v3461
    %v4700 = vunpack.c.l.b16 %v3462
    %v4701 = vunpack.c.l.b16 %v3463
    %v4702 = vunpack.c.h.b16 %v3463
    %v4703 = vunpack.c.l.b16 %v3464
    %v4704 = vunpack.c.h.b16 %v3464
    %v4705 = vunpack.c.l.b16 %v3465
    %v4706 = vunpack.c.h.b16 %v3465
    %v4707 = vunpack.c.l.b16 %v3466
    %v4708 = vunpack.c.l.b16 %v3467
    %v4709 = vunpack.c.h.b16 %v3467
    %v4710 = vunpack.c.l.b16 %v3468
    %v4711 = vunpack.c.h.b16 %v3468
    %v4712 = vunpack.c.l.b16 %v3469
    %v4713 = vunpack.c.h.b16 %v3469
    %v4714 = vunpack.c.l.b16 %v3470
    %v4715 = vunpack.c.l.b16 %v3471
    %v4716 = vunpack.c.h.b16 %v3471
    %v4717 = vunpack.c.l.b16 %v3472
    %v4718 = vunpack.c.h.b16 %v3472
    %v4719 = vunpack.c.l.b16 %v3473
    %v4720 = vunpack.c.h.b16 %v3473
    %v4721 = vunpack.c.l.b16 %v3474
    %v4722 = vunpack.c.l.b16 %v3475
    %v4723 = vunpack.c.h.b16 %v3475
    %v4724 = vunpack.c.l.b16 %v3476
    %v4725 = vunpack.c.h.b16 %v3476
    %v4726 = vunpack.c.l.b16 %v3477
    %v4727 = vunpack.c.h.b16 %v3477
    %v4728 = vunpack.c.l.b16 %v3478
    %v4729 = vunpack.c.l.b16 %v3479
    %v4730 = vunpack.c.h.b16 %v3479
    %v4731 = vunpack.c.l.b16 %v3480
    %v4732 = vunpack.c.h.b16 %v3480
    %v4733 = vunpack.c.l.b16 %v3481
    %v4734 = vunpack.c.h.b16 %v3481
    %v4735 = vunpack.c.l.b16 %v3482
    %v4736 = vunpack.c.l.b16 %v3483
    %v4737 = vunpack.c.h.b16 %v3483
    %v4738 = vunpack.c.l.b16 %v3484
    %v4739 = vunpack.c.h.b16 %v3484
    %v4740 = vunpack.c.l.b16 %v3485
    %v4741 = vunpack.c.h.b16 %v3485
    %v4742 = vunpack.c.l.b16 %v3486
    %v4743 = vunpack.c.l.b16 %v3487
    %v4744 = vunpack.c.h.b16 %v3487
    %v4745 = vunpack.c.l.b16 %v3488
    %v4746 = vunpack.c.h.b16 %v3488
    %v4747 = vunpack.c.l.b16 %v3489
    %v4748 = vunpack.c.h.b16 %v3489
    %v4749 = vunpack.c.l.b16 %v3490
    %v4750 = vunpack.c.l.b16 %v3491
    %v4751 = vunpack.c.h.b16 %v3491
    %v4752 = vunpack.c.l.b16 %v3492
    %v4753 = vunpack.c.h.b16 %v3492
    %v4754 = vunpack.c.l.b16 %v3493
    %v4755 = vunpack.c.h.b16 %v3493
    %v4756 = vunpack.c.l.b16 %v3494
    %v4757 = vunpack.c.l.b16 %v3495
    %v4758 = vunpack.c.h.b16 %v3495
    %v4759 = vunpack.c.l.b16 %v3496
    %v4760 = vunpack.c.h.b16 %v3496
    %v4761 = vunpack.c.l.b16 %v3497
    %v4762 = vunpack.c.h.b16 %v3497
    %v4763 = vunpack.c.l.b16 %v3498
    %v4764 = vunpack.c.l.b16 %v3499
    %v4765 = vunpack.c.h.b16 %v3499
    %v4766 = vunpack.c.l.b16 %v3500
    %v4767 = vunpack.c.h.b16 %v3500
    %v4768 = vunpack.c.l.b16 %v3501
    %v4769 = vunpack.c.h.b16 %v3501
    %v4770 = vunpack.c.l.b16 %v3502
    %v4771 = vunpack.c.l.b16 %v3503
    %v4772 = vunpack.c.h.b16 %v3503
    %v4773 = vunpack.c.l.b16 %v3504
    %v4774 = vunpack.c.h.b16 %v3504
    %v4775 = vunpack.c.l.b16 %v3505
    %v4776 = vunpack.c.h.b16 %v3505
    %v4777 = vunpack.c.l.b16 %v3506
    %v4778 = vunpack.c.l.b16 %v3507
    %v4779 = vunpack.c.h.b16 %v3507
    %v4780 = vunpack.c.l.b16 %v3508
    %v4781 = vunpack.c.h.b16 %v3508
    %v4782 = vunpack.c.l.b16 %v3509
    %v4783 = vunpack.c.h.b16 %v3509
    %v4784 = vunpack.c.l.b16 %v3510
    %v4785 = vunpack.c.l.b16 %v3511
    %v4786 = vunpack.c.h.b16 %v3511
    %v4787 = vunpack.c.l.b16 %v3512
    %v4788 = vunpack.c.h.b16 %v3512
    %v4789 = vunpack.c.l.b16 %v3513
    %v4790 = vunpack.c.h.b16 %v3513
    %v4791 = vunpack.c.l.b16 %v3514
    %v4792 = vunpack.c.l.b16 %v3515
    %v4793 = vunpack.c.h.b16 %v3515
    %v4794 = vunpack.c.l.b16 %v3516
    %v4795 = vunpack.c.h.b16 %v3516
    %v4796 = vunpack.c.l.b16 %v3517
    %v4797 = vunpack.c.h.b16 %v3517
    %v4798 = vunpack.c.l.b16 %v3518
    %v4799 = vunpack.c.l.b16 %v3519
    %v4800 = vunpack.c.h.b16 %v3519
    %v4801 = vunpack.c.l.b16 %v3520
    %v4802 = vunpack.c.h.b16 %v3520
    %v4803 = vunpack.c.l.b16 %v3521
    %v4804 = vunpack.c.h.b16 %v3521
    %v4805 = vunpack.c.l.b16 %v3522
    %v4806 = vunpack.c.l.b16 %v3523
    %v4807 = vunpack.c.h.b16 %v3523
    %v4808 = vunpack.c.l.b16 %v3524
    %v4809 = vunpack.c.h.b16 %v3524
    %v4810 = vunpack.c.l.b16 %v3525
    %v4811 = vunpack.c.h.b16 %v3525
    %v4812 = vunpack.c.l.b16 %v3526
    %v4813 = vunpack.c.l.b16 %v3527
    %v4814 = vunpack.c.h.b16 %v3527
    %v4815 = vunpack.c.l.b16 %v3528
    %v4816 = vunpack.c.h.b16 %v3528
    %v4817 = vunpack.c.l.b16 %v3529
    %v4818 = vunpack.c.h.b16 %v3529
    %v4819 = vunpack.c.l.b16 %v3530
    %v4820 = vunpack.c.l.b16 %v3531
    %v4821 = vunpack.c.h.b16 %v3531
    %v4822 = vunpack.c.l.b16 %v3532
    %v4823 = vunpack.c.h.b16 %v3532
    %v4824 = vunpack.c.l.b16 %v3533
    %v4825 = vunpack.c.h.b16 %v3533
    %v4826 = vunpack.c.l.b16 %v3534
    %v4827 = vunpack.c.l.b16 %v3535
    %v4828 = vunpack.c.h.b16 %v3535
    %v4829 = vunpack.c.l.b16 %v3536
    %v4830 = vunpack.c.h.b16 %v3536
    %v4831 = vunpack.c.l.b16 %v3537
    %v4832 = vunpack.c.h.b16 %v3537
    %v4833 = vunpack.c.l.b16 %v3538
    %v4834 = vunpack.c.l.b16 %v3539
    %v4835 = vunpack.c.h.b16 %v3539
    %v4836 = vunpack.c.l.b16 %v3540
    %v4837 = vunpack.c.h.b16 %v3540
    %v4838 = vunpack.c.l.b16 %v3541
    %v4839 = vunpack.c.h.b16 %v3541
    %v4840 = vunpack.c.l.b16 %v3542
    %v4841 = vunpack.c.l.b16 %v3543
    %v4842 = vunpack.c.h.b16 %v3543
    %v4843 = vunpack.c.l.b16 %v3544
    %v4844 = vunpack.c.h.b16 %v3544
    %v4845 = vunpack.c.l.b16 %v3545
    %v4846 = vunpack.c.h.b16 %v3545
    %v4847 = vunpack.c.l.b16 %v3546
    %v4848 = vunpack.c.l.b16 %v3547
    %v4849 = vunpack.c.h.b16 %v3547
    %v4850 = vunpack.c.l.b16 %v3548
    %v4851 = vunpack.c.h.b16 %v3548
    %v4852 = vunpack.c.l.b16 %v3549
    %v4853 = vunpack.c.h.b16 %v3549
    %v4854 = vunpack.c.l.b16 %v3550
    %v4855 = vunpack.c.l.b16 %v3551
    %v4856 = vunpack.c.h.b16 %v3551
    %v4857 = vunpack.c.l.b16 %v3552
    %v4858 = vunpack.c.h.b16 %v3552
    %v4859 = vunpack.c.l.b16 %v3553
    %v4860 = vunpack.c.h.b16 %v3553
    %v4861 = vunpack.c.l.b16 %v3554
    %v4862 = vunpack.c.l.b16 %v3555
    %v4863 = vunpack.c.h.b16 %v3555
    %v4864 = vunpack.c.l.b16 %v3556
    %v4865 = vunpack.c.h.b16 %v3556
    %v4866 = vunpack.c.l.b16 %v3557
    %v4867 = vunpack.c.h.b16 %v3557
    %v4868 = vunpack.c.l.b16 %v3558
    %v4869 = vunpack.c.l.b16 %v3559
    %v4870 = vunpack.c.h.b16 %v3559
    %v4871 = vunpack.c.l.b16 %v3560
    %v4872 = vunpack.c.h.b16 %v3560
    %v4873 = vunpack.c.l.b16 %v3561
    %v4874 = vunpack.c.h.b16 %v3561
    %v4875 = vunpack.c.l.b16 %v3562
    %v4876 = vunpack.c.l.b16 %v3563
    %v4877 = vunpack.c.h.b16 %v3563
    %v4878 = vunpack.c.l.b16 %v3564
    %v4879 = vunpack.c.h.b16 %v3564
    %v4880 = vunpack.c.l.b16 %v3565
    %v4881 = vunpack.c.h.b16 %v3565
    %v4882 = vunpack.c.l.b16 %v3566
    %v4883 = vunpack.c.l.b16 %v3567
    %v4884 = vunpack.c.h.b16 %v3567
    %v4885 = vunpack.c.l.b16 %v3568
    %v4886 = vunpack.c.h.b16 %v3568
    %v4887 = vunpack.c.l.b16 %v3569
    %v4888 = vunpack.c.h.b16 %v3569
    %v4889 = vunpack.c.l.b16 %v3570
    %v4890 = vunpack.c.l.b16 %v3571
    %v4891 = vunpack.c.h.b16 %v3571
    %v4892 = vunpack.c.l.b16 %v3572
    %v4893 = vunpack.c.h.b16 %v3572
    %v4894 = vunpack.c.l.b16 %v3573
    %v4895 = vunpack.c.h.b16 %v3573
    %v4896 = vunpack.c.l.b16 %v3574
    %v4897 = vunpack.c.l.b16 %v3575
    %v4898 = vunpack.c.h.b16 %v3575
    %v4899 = vunpack.c.l.b16 %v3576
    %v4900 = vunpack.c.h.b16 %v3576
    %v4901 = vunpack.c.l.b16 %v3577
    %v4902 = vunpack.c.h.b16 %v3577
    %v4903 = vunpack.c.l.b16 %v3578
    %v4904 = vunpack.c.l.b16 %v3579
    %v4905 = vunpack.c.h.b16 %v3579
    %v4906 = vunpack.c.l.b16 %v3580
    %v4907 = vunpack.c.h.b16 %v3580
    %v4908 = vunpack.c.l.b16 %v3581
    %v4909 = vunpack.c.h.b16 %v3581
    %v4910 = vunpack.c.l.b16 %v3582
    %v4911 = vunpack.c.l.b16 %v3583
    %v4912 = vunpack.c.h.b16 %v3583
    %v4913 = vunpack.c.l.b16 %v3584
    %v4914 = vunpack.c.h.b16 %v3584
    %v4915 = vunpack.c.l.b16 %v3585
    %v4916 = vunpack.c.h.b16 %v3585
    %v4917 = vunpack.c.l.b16 %v3586
    %v4918 = vunpack.c.l.b16 %v3587
    %v4919 = vunpack.c.h.b16 %v3587
    %v4920 = vunpack.c.l.b16 %v3588
    %v4921 = vunpack.c.h.b16 %v3588
    %v4922 = vunpack.c.l.b16 %v3589
    %v4923 = vunpack.c.h.b16 %v3589
    %v4924 = vunpack.c.l.b16 %v3590
    %v4925 = vunpack.c.l.b16 %v3591
    %v4926 = vunpack.c.h.b16 %v3591
    %v4927 = vunpack.c.l.b16 %v3592
    %v4928 = vunpack.c.h.b16 %v3592
    %v4929 = vunpack.c.l.b16 %v3593
    %v4930 = vunpack.c.h.b16 %v3593
    %v4931 = vunpack.c.l.b16 %v3594
    %v4932 = vunpack.c.l.b16 %v3595
    %v4933 = vunpack.c.h.b16 %v3595
    %v4934 = vunpack.c.l.b16 %v3596
    %v4935 = vunpack.c.h.b16 %v3596
    %v4936 = vunpack.c.l.b16 %v3597
    %v4937 = vunpack.c.h.b16 %v3597
    %v4938 = vunpack.c.l.b16 %v3598
    %v4939 = vunpack.c.l.b16 %v3599
    %v4940 = vunpack.c.h.b16 %v3599
    %v4941 = vunpack.c.l.b16 %v3600
    %v4942 = vunpack.c.h.b16 %v3600
    %v4943 = vunpack.c.l.b16 %v3601
    %v4944 = vunpack.c.h.b16 %v3601
    %v4945 = vunpack.c.l.b16 %v3602
    %v4946 = vunpack.c.l.b16 %v3603
    %v4947 = vunpack.c.h.b16 %v3603
    %v4948 = vunpack.c.l.b16 %v3604
    %v4949 = vunpack.c.h.b16 %v3604
    %v4950 = vunpack.c.l.b16 %v3605
    %v4951 = vunpack.c.h.b16 %v3605
    %v4952 = vunpack.c.l.b16 %v3606
    %v4953 = vunpack.c.l.b16 %v3607
    %v4954 = vunpack.c.h.b16 %v3607
    %v4955 = vunpack.c.l.b16 %v3608
    %v4956 = vunpack.c.h.b16 %v3608
    %v4957 = vunpack.c.l.b16 %v3609
    %v4958 = vunpack.c.h.b16 %v3609
    %v4959 = vunpack.c.l.b16 %v3610
    %v4960 = vunpack.c.l.b16 %v3611
    %v4961 = vunpack.c.h.b16 %v3611
    %v4962 = vunpack.c.l.b16 %v3612
    %v4963 = vunpack.c.h.b16 %v3612
    %v4964 = vunpack.c.l.b16 %v3613
    %v4965 = vunpack.c.h.b16 %v3613
    %v4966 = vunpack.c.l.b16 %v3614
    %v4967 = vunpack.c.l.b16 %v3615
    %v4968 = vunpack.c.h.b16 %v3615
    %v4969 = vunpack.c.l.b16 %v3616
    %v4970 = vunpack.c.h.b16 %v3616
    %v4971 = vunpack.c.l.b16 %v3617
    %v4972 = vunpack.c.h.b16 %v3617
    %v4973 = vunpack.c.l.b16 %v3618
    %v4974 = vunpack.c.l.b16 %v3619
    %v4975 = vunpack.c.h.b16 %v3619
    %v4976 = vunpack.c.l.b16 %v3620
    %v4977 = vunpack.c.h.b16 %v3620
    %v4978 = vunpack.c.l.b16 %v3621
    %v4979 = vunpack.c.h.b16 %v3621
    %v4980 = vunpack.c.l.b16 %v3622
    %v4981 = vunpack.c.l.b16 %v3623
    %v4982 = vunpack.c.h.b16 %v3623
    %v4983 = vunpack.c.l.b16 %v3624
    %v4984 = vunpack.c.h.b16 %v3624
    %v4985 = vunpack.c.l.b16 %v3625
    %v4986 = vunpack.c.h.b16 %v3625
    %v4987 = vunpack.c.l.b16 %v3626
    %v4988 = vunpack.c.l.b16 %v3627
    %v4989 = vunpack.c.h.b16 %v3627
    %v4990 = vunpack.c.l.b16 %v3628
    %v4991 = vunpack.c.h.b16 %v3628
    %v4992 = vunpack.c.l.b16 %v3629
    %v4993 = vunpack.c.h.b16 %v3629
    %v4994 = vunpack.c.l.b16 %v3630
    %v4995 = vunpack.c.l.b16 %v3631
    %v4996 = vunpack.c.h.b16 %v3631
    %v4997 = vunpack.c.l.b16 %v3632
    %v4998 = vunpack.c.h.b16 %v3632
    %v4999 = vunpack.c.l.b16 %v3633
    %v5000 = vunpack.c.h.b16 %v3633
    %v5001 = vunpack.c.l.b16 %v3634
    %v5002 = vunpack.c.l.b16 %v3635
    %v5003 = vunpack.c.h.b16 %v3635
    %v5004 = vunpack.c.l.b16 %v3636
    %v5005 = vunpack.c.h.b16 %v3636
    %v5006 = vunpack.c.l.b16 %v3637
    %v5007 = vunpack.c.h.b16 %v3637
    %v5008 = vunpack.c.l.b16 %v3638
    %v5009 = vunpack.c.l.b16 %v3639
    %v5010 = vunpack.c.h.b16 %v3639
    %v5011 = vunpack.c.l.b16 %v3640
    %v5012 = vunpack.c.h.b16 %v3640
    %v5013 = vunpack.c.l.b16 %v3641
    %v5014 = vunpack.c.h.b16 %v3641
    %v5015 = vunpack.c.l.b16 %v3642
    %v5016 = vunpack.c.l.b16 %v3643
    %v5017 = vunpack.c.h.b16 %v3643
    %v5018 = vunpack.c.l.b16 %v3644
    %v5019 = vunpack.c.h.b16 %v3644
    %v5020 = vunpack.c.l.b16 %v3645
    %v5021 = vunpack.c.h.b16 %v3645
    %v5022 = vunpack.c.l.b16 %v3646
    %v5023 = vunpack.c.l.b16 %v3647
    %v5024 = vunpack.c.h.b16 %v3647
    %v5025 = vunpack.c.l.b16 %v3648
    %v5026 = vunpack.c.h.b16 %v3648
    %v5027 = vunpack.c.l.b16 %v3649
    %v5028 = vunpack.c.h.b16 %v3649
    %v5029 = vunpack.c.l.b16 %v3650
    %v5030 = vunpack.c.l.b16 %v3651
    %v5031 = vunpack.c.h.b16 %v3651
    %v5032 = vunpack.c.l.b16 %v3652
    %v5033 = vunpack.c.h.b16 %v3652
    %v5034 = vunpack.c.l.b16 %v3653
    %v5035 = vunpack.c.h.b16 %v3653
    %v5036 = vunpack.c.l.b16 %v3654
    %v5037 = vunpack.c.l.b16 %v3655
    %v5038 = vunpack.c.h.b16 %v3655
    %v5039 = vunpack.c.l.b16 %v3656
    %v5040 = vunpack.c.h.b16 %v3656
    %v5041 = vunpack.c.l.b16 %v3657
    %v5042 = vunpack.c.h.b16 %v3657
    %v5043 = vunpack.c.l.b16 %v3658
    %v5044 = vunpack.c.l.b16 %v3659
    %v5045 = vunpack.c.h.b16 %v3659
    %v5046 = vunpack.c.l.b16 %v3660
    %v5047 = vunpack.c.h.b16 %v3660
    %v5048 = vunpack.c.l.b16 %v3661
    %v5049 = vunpack.c.h.b16 %v3661
    %v5050 = vunpack.c.l.b16 %v3662
    %v5051 = vunpack.c.l.b16 %v3663
    %v5052 = vunpack.c.h.b16 %v3663
    %v5053 = vunpack.c.l.b16 %v3664
    %v5054 = vunpack.c.h.b16 %v3664
    %v5055 = vunpack.c.l.b16 %v3665
    %v5056 = vunpack.c.h.b16 %v3665
    %v5057 = vunpack.c.l.b16 %v3666
    %v5058 = vunpack.c.l.b16 %v3667
    %v5059 = vunpack.c.h.b16 %v3667
    %v5060 = vunpack.c.l.b16 %v3668
    %v5061 = vunpack.c.h.b16 %v3668
    %v5062 = vunpack.c.l.b16 %v3669
    %v5063 = vunpack.c.h.b16 %v3669
    %v5064 = vunpack.c.l.b16 %v3670
    %v5065 = vunpack.c.l.b16 %v3671
    %v5066 = vunpack.c.h.b16 %v3671
    %v5067 = vunpack.c.l.b16 %v3672
    %v5068 = vunpack.c.h.b16 %v3672
    %v5069 = vunpack.c.l.b16 %v3673
    %v5070 = vunpack.c.h.b16 %v3673
    %v5071 = vunpack.c.l.b16 %v3674
    %v5072 = vunpack.c.l.b16 %v3675
    %v5073 = vunpack.c.h.b16 %v3675
    %v5074 = vunpack.c.l.b16 %v3676
    %v5075 = vunpack.c.h.b16 %v3676
    %v5076 = vunpack.c.l.b16 %v3677
    %v5077 = vunpack.c.h.b16 %v3677
    %v5078 = vunpack.c.l.b16 %v3678
    %v5079 = vunpack.c.l.b16 %v3679
    %v5080 = vunpack.c.h.b16 %v3679
    %v5081 = vunpack.c.l.b16 %v3680
    %v5082 = vunpack.c.h.b16 %v3680
    %v5083 = vunpack.c.l.b16 %v3681
    %v5084 = vunpack.c.h.b16 %v3681
    %v5085 = vunpack.c.l.b16 %v3682
    %v5086 = vunpack.c.l.b16 %v3683
    %v5087 = vunpack.c.h.b16 %v3683
    %v5088 = vunpack.c.l.b16 %v3684
    %v5089 = vunpack.c.h.b16 %v3684
    %v5090 = vunpack.c.l.b16 %v3685
    %v5091 = vunpack.c.h.b16 %v3685
    %v5092 = vunpack.c.l.b16 %v3686
    %v5093 = vunpack.c.l.b16 %v3687
    %v5094 = vunpack.c.h.b16 %v3687
    %v5095 = vunpack.c.l.b16 %v3688
    %v5096 = vunpack.c.h.b16 %v3688
    %v5097 = vunpack.c.l.b16 %v3689
    %v5098 = vunpack.c.h.b16 %v3689
    %v5099 = vunpack.c.l.b16 %v3690
    %v5100 = vunpack.c.l.b16 %v3691
    %v5101 = vunpack.c.h.b16 %v3691
    %v5102 = vunpack.c.l.b16 %v3692
    %v5103 = vunpack.c.h.b16 %v3692
    %v5104 = vunpack.c.l.b16 %v3693
    %v5105 = vunpack.c.h.b16 %v3693
    %v5106 = vunpack.c.l.b16 %v3694
    %v5107 = vunpack.c.l.b16 %v3695
    %v5108 = vunpack.c.h.b16 %v3695
    %v5109 = vunpack.c.l.b16 %v3696
    %v5110 = vunpack.c.h.b16 %v3696
    %v5111 = vunpack.c.l.b16 %v3697
    %v5112 = vunpack.c.h.b16 %v3697
    %v5113 = vunpack.c.l.b16 %v3698
    %v5114 = vunpack.c.l.b16 %v3699
    %v5115 = vunpack.c.h.b16 %v3699
    %v5116 = vunpack.c.l.b16 %v3700
    %v5117 = vunpack.c.h.b16 %v3700
    %v5118 = vunpack.c.l.b16 %v3701
    %v5119 = vunpack.c.h.b16 %v3701
    %v5120 = vunpack.c.l.b16 %v3702
    %v5121 = vunpack.c.l.b16 %v3703
    %v5122 = vunpack.c.h.b16 %v3703
    %v5123 = vunpack.c.l.b16 %v3704
    %v5124 = vunpack.c.h.b16 %v3704
    %v5125 = vunpack.c.l.b16 %v3705
    %v5126 = vunpack.c.h.b16 %v3705
    %v5127 = vunpack.c.l.b16 %v3706
    %v5128 = vunpack.c.l.b16 %v3707
    %v5129 = vunpack.c.h.b16 %v3707
    %v5130 = vunpack.c.l.b16 %v3708
    %v5131 = vunpack.c.h.b16 %v3708
    %v5132 = vunpack.c.l.b16 %v3709
    %v5133 = vunpack.c.h.b16 %v3709
    %v5134 = vunpack.c.l.b16 %v3710
    %v5135 = vunpack.c.l.b16 %v3711
    %v5136 = vunpack.c.h.b16 %v3711
    %v5137 = vunpack.c.l.b16 %v3712
    %v5138 = vunpack.c.h.b16 %v3712
    %v5139 = vunpack.c.l.b16 %v3713
    %v5140 = vunpack.c.h.b16 %v3713
    %v5141 = vunpack.c.l.b16 %v3714
    %v5142 = vunpack.c.l.b16 %v3715
    %v5143 = vunpack.c.h.b16 %v3715
    %v5144 = vunpack.c.l.b16 %v3716
    %v5145 = vunpack.c.h.b16 %v3716
    %v5146 = vunpack.c.l.b16 %v3717
    %v5147 = vunpack.c.h.b16 %v3717
    %v5148 = vunpack.c.l.b16 %v3718
    %v5149 = vunpack.c.l.b16 %v3719
    %v5150 = vunpack.c.h.b16 %v3719
    %v5151 = vunpack.c.l.b16 %v3720
    %v5152 = vunpack.c.h.b16 %v3720
    %v5153 = vunpack.c.l.b16 %v3721
    %v5154 = vunpack.c.h.b16 %v3721
    %v5155 = vunpack.c.l.b16 %v3722
    %v5156 = vunpack.c.l.b16 %v3723
    %v5157 = vunpack.c.h.b16 %v3723
    %v5158 = vunpack.c.l.b16 %v3724
    %v5159 = vunpack.c.h.b16 %v3724
    %v5160 = vunpack.c.l.b16 %v3725
    %v5161 = vunpack.c.h.b16 %v3725
    %v5162 = vunpack.c.l.b16 %v3726
    %v5163 = vunpack.c.l.b16 %v3727
    %v5164 = vunpack.c.h.b16 %v3727
    %v5165 = vunpack.c.l.b16 %v3728
    %v5166 = vunpack.c.h.b16 %v3728
    %v5167 = vunpack.c.l.b16 %v3729
    %v5168 = vunpack.c.h.b16 %v3729
    %v5169 = vunpack.c.l.b16 %v3730
    %v5170 = vunpack.c.l.b16 %v3731
    %v5171 = vunpack.c.h.b16 %v3731
    %v5172 = vunpack.c.l.b16 %v3732
    %v5173 = vunpack.c.h.b16 %v3732
    %v5174 = vunpack.c.l.b16 %v3733
    %v5175 = vunpack.c.h.b16 %v3733
    %v5176 = vunpack.c.l.b16 %v3734
    %v5177 = vunpack.c.l.b16 %v3735
    %v5178 = vunpack.c.h.b16 %v3735
    %v5179 = vunpack.c.l.b16 %v3736
    %v5180 = vunpack.c.h.b16 %v3736
    %v5181 = vunpack.c.l.b16 %v3737
    %v5182 = vunpack.c.h.b16 %v3737
    %v5183 = vunpack.c.l.b16 %v3738
    %v5184 = vpack.c.b16 %v4295, %v4288
    %v5185 = vpack.c.b16 %v4296, %v4289
    %v5186 = vpack.c.b16 %v4297, %v4290
    %v5187 = vpack.c.b16 %v4298, %v4291
    %v5188 = vpack.c.b16 %v4299, %v4292
    %v5189 = vpack.c.b16 %v4300, %v4293
    %v5190 = vpack.c.b16 %v4301, %v4294
    %v5191 = vpack.c.b16 %v4309, %v4302
    %v5192 = vpack.c.b16 %v4310, %v4303
    %v5193 = vpack.c.b16 %v4311, %v4304
    %v5194 = vpack.c.b16 %v4312, %v4305
    %v5195 = vpack.c.b16 %v4313, %v4306
    %v5196 = vpack.c.b16 %v4314, %v4307
    %v5197 = vpack.c.b16 %v4315, %v4308
    %v5198 = vpack.c.b16 %v4323, %v4316
    %v5199 = vpack.c.b16 %v4324, %v4317
    %v5200 = vpack.c.b16 %v4325, %v4318
    %v5201 = vpack.c.b16 %v4326, %v4319
    %v5202 = vpack.c.b16 %v4327, %v4320
    %v5203 = vpack.c.b16 %v4328, %v4321
    %v5204 = vpack.c.b16 %v4329, %v4322
    %v5205 = vpack.c.b16 %v4337, %v4330
    %v5206 = vpack.c.b16 %v4338, %v4331
    %v5207 = vpack.c.b16 %v4339, %v4332
    %v5208 = vpack.c.b16 %v4340, %v4333
    %v5209 = vpack.c.b16 %v4341, %v4334
    %v5210 = vpack.c.b16 %v4342, %v4335
    %v5211 = vpack.c.b16 %v4343, %v4336
    %v5212 = vpack.c.b16 %v4351, %v4344
    %v5213 = vpack.c.b16 %v4352, %v4345
    %v5214 = vpack.c.b16 %v4353, %v4346
    %v5215 = vpack.c.b16 %v4354, %v4347
    %v5216 = vpack.c.b16 %v4355, %v4348
    %v5217 = vpack.c.b16 %v4356, %v4349
    %v5218 = vpack.c.b16 %v4357, %v4350
    %v5219 = vpack.c.b16 %v4365, %v4358
    %v5220 = vpack.c.b16 %v4366, %v4359
    %v5221 = vpack.c.b16 %v4367, %v4360
    %v5222 = vpack.c.b16 %v4368, %v4361
    %v5223 = vpack.c.b16 %v4369, %v4362
    %v5224 = vpack.c.b16 %v4370, %v4363
    %v5225 = vpack.c.b16 %v4371, %v4364
    %v5226 = vpack.c.b16 %v4379, %v4372
    %v5227 = vpack.c.b16 %v4380, %v4373
    %v5228 = vpack.c.b16 %v4381, %v4374
    %v5229 = vpack.c.b16 %v4382, %v4375
    %v5230 = vpack.c.b16 %v4383, %v4376
    %v5231 = vpack.c.b16 %v4384, %v4377
    %v5232 = vpack.c.b16 %v4385, %v4378
    %v5233 = vpack.c.b16 %v4393, %v4386
    %v5234 = vpack.c.b16 %v4394, %v4387
    %v5235 = vpack.c.b16 %v4395, %v4388
    %v5236 = vpack.c.b16 %v4396, %v4389
    %v5237 = vpack.c.b16 %v4397, %v4390
    %v5238 = vpack.c.b16 %v4398, %v4391
    %v5239 = vpack.c.b16 %v4399, %v4392
    %v5240 = vpack.c.b16 %v4407, %v4400
    %v5241 = vpack.c.b16 %v4408, %v4401
    %v5242 = vpack.c.b16 %v4409, %v4402
    %v5243 = vpack.c.b16 %v4410, %v4403
    %v5244 = vpack.c.b16 %v4411, %v4404
    %v5245 = vpack.c.b16 %v4412, %v4405
    %v5246 = vpack.c.b16 %v4413, %v4406
    %v5247 = vpack.c.b16 %v4421, %v4414
    %v5248 = vpack.c.b16 %v4422, %v4415
    %v5249 = vpack.c.b16 %v4423, %v4416
    %v5250 = vpack.c.b16 %v4424, %v4417
    %v5251 = vpack.c.b16 %v4425, %v4418
    %v5252 = vpack.c.b16 %v4426, %v4419
    %v5253 = vpack.c.b16 %v4427, %v4420
    %v5254 = vpack.c.b16 %v4435, %v4428
    %v5255 = vpack.c.b16 %v4436, %v4429
    %v5256 = vpack.c.b16 %v4437, %v4430
    %v5257 = vpack.c.b16 %v4438, %v4431
    %v5258 = vpack.c.b16 %v4439, %v4432
    %v5259 = vpack.c.b16 %v4440, %v4433
    %v5260 = vpack.c.b16 %v4441, %v4434
    %v5261 = vpack.c.b16 %v4449, %v4442
    %v5262 = vpack.c.b16 %v4450, %v4443
    %v5263 = vpack.c.b16 %v4451, %v4444
    %v5264 = vpack.c.b16 %v4452, %v4445
    %v5265 = vpack.c.b16 %v4453, %v4446
    %v5266 = vpack.c.b16 %v4454, %v4447
    %v5267 = vpack.c.b16 %v4455, %v4448
    %v5268 = vpack.c.b16 %v4463, %v4456
    %v5269 = vpack.c.b16 %v4464, %v4457
    %v5270 = vpack.c.b16 %v4465, %v4458
    %v5271 = vpack.c.b16 %v4466, %v4459
    %v5272 = vpack.c.b16 %v4467, %v4460
    %v5273 = vpack.c.b16 %v4468, %v4461
    %v5274 = vpack.c.b16 %v4469, %v4462
    %v5275 = vpack.c.b16 %v4477, %v4470
    %v5276 = vpack.c.b16 %v4478, %v4471
    %v5277 = vpack.c.b16 %v4479, %v4472
    %v5278 = vpack.c.b16 %v4480, %v4473
    %v5279 = vpack.c.b16 %v4481, %v4474
    %v5280 = vpack.c.b16 %v4482, %v4475
    %v5281 = vpack.c.b16 %v4483, %v4476
    %v5282 = vpack.c.b16 %v4491, %v4484
    %v5283 = vpack.c.b16 %v4492, %v4485
    %v5284 = vpack.c.b16 %v4493, %v4486
    %v5285 = vpack.c.b16 %v4494, %v4487
    %v5286 = vpack.c.b16 %v4495, %v4488
    %v5287 = vpack.c.b16 %v4496, %v4489
    %v5288 = vpack.c.b16 %v4497, %v4490
    %v5289 = vpack.c.b16 %v4505, %v4498
    %v5290 = vpack.c.b16 %v4506, %v4499
    %v5291 = vpack.c.b16 %v4507, %v4500
    %v5292 = vpack.c.b16 %v4508, %v4501
    %v5293 = vpack.c.b16 %v4509, %v4502
    %v5294 = vpack.c.b16 %v4510, %v4503
    %v5295 = vpack.c.b16 %v4511, %v4504
    %v5296 = vpack.c.b16 %v4519, %v4512
    %v5297 = vpack.c.b16 %v4520, %v4513
    %v5298 = vpack.c.b16 %v4521, %v4514
    %v5299 = vpack.c.b16 %v4522, %v4515
    %v5300 = vpack.c.b16 %v4523, %v4516
    %v5301 = vpack.c.b16 %v4524, %v4517
    %v5302 = vpack.c.b16 %v4525, %v4518
    %v5303 = vpack.c.b16 %v4533, %v4526
    %v5304 = vpack.c.b16 %v4534, %v4527
    %v5305 = vpack.c.b16 %v4535, %v4528
    %v5306 = vpack.c.b16 %v4536, %v4529
    %v5307 = vpack.c.b16 %v4537, %v4530
    %v5308 = vpack.c.b16 %v4538, %v4531
    %v5309 = vpack.c.b16 %v4539, %v4532
    %v5310 = vpack.c.b16 %v4547, %v4540
    %v5311 = vpack.c.b16 %v4548, %v4541
    %v5312 = vpack.c.b16 %v4549, %v4542
    %v5313 = vpack.c.b16 %v4550, %v4543
    %v5314 = vpack.c.b16 %v4551, %v4544
    %v5315 = vpack.c.b16 %v4552, %v4545
    %v5316 = vpack.c.b16 %v4553, %v4546
    %v5317 = vpack.c.b16 %v4561, %v4554
    %v5318 = vpack.c.b16 %v4562, %v4555
    %v5319 = vpack.c.b16 %v4563, %v4556
    %v5320 = vpack.c.b16 %v4564, %v4557
    %v5321 = vpack.c.b16 %v4565, %v4558
    %v5322 = vpack.c.b16 %v4566, %v4559
    %v5323 = vpack.c.b16 %v4567, %v4560
    %v5324 = vpack.c.b16 %v4575, %v4568
    %v5325 = vpack.c.b16 %v4576, %v4569
    %v5326 = vpack.c.b16 %v4577, %v4570
    %v5327 = vpack.c.b16 %v4578, %v4571
    %v5328 = vpack.c.b16 %v4579, %v4572
    %v5329 = vpack.c.b16 %v4580, %v4573
    %v5330 = vpack.c.b16 %v4581, %v4574
    %v5331 = vpack.c.b16 %v4589, %v4582
    %v5332 = vpack.c.b16 %v4590, %v4583
    %v5333 = vpack.c.b16 %v4591, %v4584
    %v5334 = vpack.c.b16 %v4592, %v4585
    %v5335 = vpack.c.b16 %v4593, %v4586
    %v5336 = vpack.c.b16 %v4594, %v4587
    %v5337 = vpack.c.b16 %v4595, %v4588
    %v5338 = vpack.c.b16 %v4603, %v4596
    %v5339 = vpack.c.b16 %v4604, %v4597
    %v5340 = vpack.c.b16 %v4605, %v4598
    %v5341 = vpack.c.b16 %v4606, %v4599
    %v5342 = vpack.c.b16 %v4607, %v4600
    %v5343 = vpack.c.b16 %v4608, %v4601
    %v5344 = vpack.c.b16 %v4609, %v4602
    %v5345 = vpack.c.b16 %v4617, %v4610
    %v5346 = vpack.c.b16 %v4618, %v4611
    %v5347 = vpack.c.b16 %v4619, %v4612
    %v5348 = vpack.c.b16 %v4620, %v4613
    %v5349 = vpack.c.b16 %v4621, %v4614
    %v5350 = vpack.c.b16 %v4622, %v4615
    %v5351 = vpack.c.b16 %v4623, %v4616
    %v5352 = vpack.c.b16 %v4631, %v4624
    %v5353 = vpack.c.b16 %v4632, %v4625
    %v5354 = vpack.c.b16 %v4633, %v4626
    %v5355 = vpack.c.b16 %v4634, %v4627
    %v5356 = vpack.c.b16 %v4635, %v4628
    %v5357 = vpack.c.b16 %v4636, %v4629
    %v5358 = vpack.c.b16 %v4637, %v4630
    %v5359 = vpack.c.b16 %v4645, %v4638
    %v5360 = vpack.c.b16 %v4646, %v4639
    %v5361 = vpack.c.b16 %v4647, %v4640
    %v5362 = vpack.c.b16 %v4648, %v4641
    %v5363 = vpack.c.b16 %v4649, %v4642
    %v5364 = vpack.c.b16 %v4650, %v4643
    %v5365 = vpack.c.b16 %v4651, %v4644
    %v5366 = vpack.c.b16 %v4659, %v4652
    %v5367 = vpack.c.b16 %v4660, %v4653
    %v5368 = vpack.c.b16 %v4661, %v4654
    %v5369 = vpack.c.b16 %v4662, %v4655
    %v5370 = vpack.c.b16 %v4663, %v4656
    %v5371 = vpack.c.b16 %v4664, %v4657
    %v5372 = vpack.c.b16 %v4665, %v4658
    %v5373 = vpack.c.b16 %v4673, %v4666
    %v5374 = vpack.c.b16 %v4674, %v4667
    %v5375 = vpack.c.b16 %v4675, %v4668
    %v5376 = vpack.c.b16 %v4676, %v4669
    %v5377 = vpack.c.b16 %v4677, %v4670
    %v5378 = vpack.c.b16 %v4678, %v4671
    %v5379 = vpack.c.b16 %v4679, %v4672
    %v5380 = vpack.c.b16 %v4687, %v4680
    %v5381 = vpack.c.b16 %v4688, %v4681
    %v5382 = vpack.c.b16 %v4689, %v4682
    %v5383 = vpack.c.b16 %v4690, %v4683
    %v5384 = vpack.c.b16 %v4691, %v4684
    %v5385 = vpack.c.b16 %v4692, %v4685
    %v5386 = vpack.c.b16 %v4693, %v4686
    %v5387 = vpack.c.b16 %v4701, %v4694
    %v5388 = vpack.c.b16 %v4702, %v4695
    %v5389 = vpack.c.b16 %v4703, %v4696
    %v5390 = vpack.c.b16 %v4704, %v4697
    %v5391 = vpack.c.b16 %v4705, %v4698
    %v5392 = vpack.c.b16 %v4706, %v4699
    %v5393 = vpack.c.b16 %v4707, %v4700
    %v5394 = vpack.c.b16 %v4715, %v4708
    %v5395 = vpack.c.b16 %v4716, %v4709
    %v5396 = vpack.c.b16 %v4717, %v4710
    %v5397 = vpack.c.b16 %v4718, %v4711
    %v5398 = vpack.c.b16 %v4719, %v4712
    %v5399 = vpack.c.b16 %v4720, %v4713
    %v5400 = vpack.c.b16 %v4721, %v4714
    %v5401 = vpack.c.b16 %v4729, %v4722
    %v5402 = vpack.c.b16 %v4730, %v4723
    %v5403 = vpack.c.b16 %v4731, %v4724
    %v5404 = vpack.c.b16 %v4732, %v4725
    %v5405 = vpack.c.b16 %v4733, %v4726
    %v5406 = vpack.c.b16 %v4734, %v4727
    %v5407 = vpack.c.b16 %v4735, %v4728
    %v5408 = vpack.c.b16 %v4743, %v4736
    %v5409 = vpack.c.b16 %v4744, %v4737
    %v5410 = vpack.c.b16 %v4745, %v4738
    %v5411 = vpack.c.b16 %v4746, %v4739
    %v5412 = vpack.c.b16 %v4747, %v4740
    %v5413 = vpack.c.b16 %v4748, %v4741
    %v5414 = vpack.c.b16 %v4749, %v4742
    %v5415 = vpack.c.b16 %v4757, %v4750
    %v5416 = vpack.c.b16 %v4758, %v4751
    %v5417 = vpack.c.b16 %v4759, %v4752
    %v5418 = vpack.c.b16 %v4760, %v4753
    %v5419 = vpack.c.b16 %v4761, %v4754
    %v5420 = vpack.c.b16 %v4762, %v4755
    %v5421 = vpack.c.b16 %v4763, %v4756
    %v5422 = vpack.c.b16 %v4771, %v4764
    %v5423 = vpack.c.b16 %v4772, %v4765
    %v5424 = vpack.c.b16 %v4773, %v4766
    %v5425 = vpack.c.b16 %v4774, %v4767
    %v5426 = vpack.c.b16 %v4775, %v4768
    %v5427 = vpack.c.b16 %v4776, %v4769
    %v5428 = vpack.c.b16 %v4777, %v4770
    %v5429 = vpack.c.b16 %v4785, %v4778
    %v5430 = vpack.c.b16 %v4786, %v4779
    %v5431 = vpack.c.b16 %v4787, %v4780
    %v5432 = vpack.c.b16 %v4788, %v4781
    %v5433 = vpack.c.b16 %v4789, %v4782
    %v5434 = vpack.c.b16 %v4790, %v4783
    %v5435 = vpack.c.b16 %v4791, %v4784
    %v5436 = vpack.c.b16 %v4799, %v4792
    %v5437 = vpack.c.b16 %v4800, %v4793
    %v5438 = vpack.c.b16 %v4801, %v4794
    %v5439 = vpack.c.b16 %v4802, %v4795
    %v5440 = vpack.c.b16 %v4803, %v4796
    %v5441 = vpack.c.b16 %v4804, %v4797
    %v5442 = vpack.c.b16 %v4805, %v4798
    %v5443 = vpack.c.b16 %v4813, %v4806
    %v5444 = vpack.c.b16 %v4814, %v4807
    %v5445 = vpack.c.b16 %v4815, %v4808
    %v5446 = vpack.c.b16 %v4816, %v4809
    %v5447 = vpack.c.b16 %v4817, %v4810
    %v5448 = vpack.c.b16 %v4818, %v4811
    %v5449 = vpack.c.b16 %v4819, %v4812
    %v5450 = vpack.c.b16 %v4827, %v4820
    %v5451 = vpack.c.b16 %v4828, %v4821
    %v5452 = vpack.c.b16 %v4829, %v4822
    %v5453 = vpack.c.b16 %v4830, %v4823
    %v5454 = vpack.c.b16 %v4831, %v4824
    %v5455 = vpack.c.b16 %v4832, %v4825
    %v5456 = vpack.c.b16 %v4833, %v4826
    %v5457 = vpack.c.b16 %v4841, %v4834
    %v5458 = vpack.c.b16 %v4842, %v4835
    %v5459 = vpack.c.b16 %v4843, %v4836
    %v5460 = vpack.c.b16 %v4844, %v4837
    %v5461 = vpack.c.b16 %v4845, %v4838
    %v5462 = vpack.c.b16 %v4846, %v4839
    %v5463 = vpack.c.b16 %v4847, %v4840
    %v5464 = vpack.c.b16 %v4855, %v4848
    %v5465 = vpack.c.b16 %v4856, %v4849
    %v5466 = vpack.c.b16 %v4857, %v4850
    %v5467 = vpack.c.b16 %v4858, %v4851
    %v5468 = vpack.c.b16 %v4859, %v4852
    %v5469 = vpack.c.b16 %v4860, %v4853
    %v5470 = vpack.c.b16 %v4861, %v4854
    %v5471 = vpack.c.b16 %v4869, %v4862
    %v5472 = vpack.c.b16 %v4870, %v4863
    %v5473 = vpack.c.b16 %v4871, %v4864
    %v5474 = vpack.c.b16 %v4872, %v4865
    %v5475 = vpack.c.b16 %v4873, %v4866
    %v5476 = vpack.c.b16 %v4874, %v4867
    %v5477 = vpack.c.b16 %v4875, %v4868
    %v5478 = vpack.c.b16 %v4883, %v4876
    %v5479 = vpack.c.b16 %v4884, %v4877
    %v5480 = vpack.c.b16 %v4885, %v4878
    %v5481 = vpack.c.b16 %v4886, %v4879
    %v5482 = vpack.c.b16 %v4887, %v4880
    %v5483 = vpack.c.b16 %v4888, %v4881
    %v5484 = vpack.c.b16 %v4889, %v4882
    %v5485 = vpack.c.b16 %v4897, %v4890
    %v5486 = vpack.c.b16 %v4898, %v4891
    %v5487 = vpack.c.b16 %v4899, %v4892
    %v5488 = vpack.c.b16 %v4900, %v4893
    %v5489 = vpack.c.b16 %v4901, %v4894
    %v5490 = vpack.c.b16 %v4902, %v4895
    %v5491 = vpack.c.b16 %v4903, %v4896
    %v5492 = vpack.c.b16 %v4911, %v4904
    %v5493 = vpack.c.b16 %v4912, %v4905
    %v5494 = vpack.c.b16 %v4913, %v4906
    %v5495 = vpack.c.b16 %v4914, %v4907
    %v5496 = vpack.c.b16 %v4915, %v4908
    %v5497 = vpack.c.b16 %v4916, %v4909
    %v5498 = vpack.c.b16 %v4917, %v4910
    %v5499 = vpack.c.b16 %v4925, %v4918
    %v5500 = vpack.c.b16 %v4926, %v4919
    %v5501 = vpack.c.b16 %v4927, %v4920
    %v5502 = vpack.c.b16 %v4928, %v4921
    %v5503 = vpack.c.b16 %v4929, %v4922
    %v5504 = vpack.c.b16 %v4930, %v4923
    %v5505 = vpack.c.b16 %v4931, %v4924
    %v5506 = vpack.c.b16 %v4939, %v4932
    %v5507 = vpack.c.b16 %v4940, %v4933
    %v5508 = vpack.c.b16 %v4941, %v4934
    %v5509 = vpack.c.b16 %v4942, %v4935
    %v5510 = vpack.c.b16 %v4943, %v4936
    %v5511 = vpack.c.b16 %v4944, %v4937
    %v5512 = vpack.c.b16 %v4945, %v4938
    %v5513 = vpack.c.b16 %v4953, %v4946
    %v5514 = vpack.c.b16 %v4954, %v4947
    %v5515 = vpack.c.b16 %v4955, %v4948
    %v5516 = vpack.c.b16 %v4956, %v4949
    %v5517 = vpack.c.b16 %v4957, %v4950
    %v5518 = vpack.c.b16 %v4958, %v4951
    %v5519 = vpack.c.b16 %v4959, %v4952
    %v5520 = vpack.c.b16 %v4967, %v4960
    %v5521 = vpack.c.b16 %v4968, %v4961
    %v5522 = vpack.c.b16 %v4969, %v4962
    %v5523 = vpack.c.b16 %v4970, %v4963
    %v5524 = vpack.c.b16 %v4971, %v4964
    %v5525 = vpack.c.b16 %v4972, %v4965
    %v5526 = vpack.c.b16 %v4973, %v4966
    %v5527 = vpack.c.b16 %v4981, %v4974
    %v5528 = vpack.c.b16 %v4982, %v4975
    %v5529 = vpack.c.b16 %v4983, %v4976
    %v5530 = vpack.c.b16 %v4984, %v4977
    %v5531 = vpack.c.b16 %v4985, %v4978
    %v5532 = vpack.c.b16 %v4986, %v4979
    %v5533 = vpack.c.b16 %v4987, %v4980
    %v5534 = vpack.c.b16 %v4995, %v4988
    %v5535 = vpack.c.b16 %v4996, %v4989
    %v5536 = vpack.c.b16 %v4997, %v4990
    %v5537 = vpack.c.b16 %v4998, %v4991
    %v5538 = vpack.c.b16 %v4999, %v4992
    %v5539 = vpack.c.b16 %v5000, %v4993
    %v5540 = vpack.c.b16 %v5001, %v4994
    %v5541 = vpack.c.b16 %v5009, %v5002
    %v5542 = vpack.c.b16 %v5010, %v5003
    %v5543 = vpack.c.b16 %v5011, %v5004
    %v5544 = vpack.c.b16 %v5012, %v5005
    %v5545 = vpack.c.b16 %v5013, %v5006
    %v5546 = vpack.c.b16 %v5014, %v5007
    %v5547 = vpack.c.b16 %v5015, %v5008
    %v5548 = vpack.c.b16 %v5023, %v5016
    %v5549 = vpack.c.b16 %v5024, %v5017
    %v5550 = vpack.c.b16 %v5025, %v5018
    %v5551 = vpack.c.b16 %v5026, %v5019
    %v5552 = vpack.c.b16 %v5027, %v5020
    %v5553 = vpack.c.b16 %v5028, %v5021
    %v5554 = vpack.c.b16 %v5029, %v5022
    %v5555 = vpack.c.b16 %v5037, %v5030
    %v5556 = vpack.c.b16 %v5038, %v5031
    %v5557 = vpack.c.b16 %v5039, %v5032
    %v5558 = vpack.c.b16 %v5040, %v5033
    %v5559 = vpack.c.b16 %v5041, %v5034
    %v5560 = vpack.c.b16 %v5042, %v5035
    %v5561 = vpack.c.b16 %v5043, %v5036
    %v5562 = vpack.c.b16 %v5051, %v5044
    %v5563 = vpack.c.b16 %v5052, %v5045
    %v5564 = vpack.c.b16 %v5053, %v5046
    %v5565 = vpack.c.b16 %v5054, %v5047
    %v5566 = vpack.c.b16 %v5055, %v5048
    %v5567 = vpack.c.b16 %v5056, %v5049
    %v5568 = vpack.c.b16 %v5057, %v5050
    %v5569 = vpack.c.b16 %v5065, %v5058
    %v5570 = vpack.c.b16 %v5066, %v5059
    %v5571 = vpack.c.b16 %v5067, %v5060
    %v5572 = vpack.c.b16 %v5068, %v5061
    %v5573 = vpack.c.b16 %v5069, %v5062
    %v5574 = vpack.c.b16 %v5070, %v5063
    %v5575 = vpack.c.b16 %v5071, %v5064
    %v5576 = vpack.c.b16 %v5079, %v5072
    %v5577 = vpack.c.b16 %v5080, %v5073
    %v5578 = vpack.c.b16 %v5081, %v5074
    %v5579 = vpack.c.b16 %v5082, %v5075
    %v5580 = vpack.c.b16 %v5083, %v5076
    %v5581 = vpack.c.b16 %v5084, %v5077
    %v5582 = vpack.c.b16 %v5085, %v5078
    %v5583 = vpack.c.b16 %v5093, %v5086
    %v5584 = vpack.c.b16 %v5094, %v5087
    %v5585 = vpack.c.b16 %v5095, %v5088
    %v5586 = vpack.c.b16 %v5096, %v5089
    %v5587 = vpack.c.b16 %v5097, %v5090
    %v5588 = vpack.c.b16 %v5098, %v5091
    %v5589 = vpack.c.b16 %v5099, %v5092
    %v5590 = vpack.c.b16 %v5107, %v5100
    %v5591 = vpack.c.b16 %v5108, %v5101
    %v5592 = vpack.c.b16 %v5109, %v5102
    %v5593 = vpack.c.b16 %v5110, %v5103
    %v5594 = vpack.c.b16 %v5111, %v5104
    %v5595 = vpack.c.b16 %v5112, %v5105
    %v5596 = vpack.c.b16 %v5113, %v5106
    %v5597 = vpack.c.b16 %v5121, %v5114
    %v5598 = vpack.c.b16 %v5122, %v5115
    %v5599 = vpack.c.b16 %v5123, %v5116
    %v5600 = vpack.c.b16 %v5124, %v5117
    %v5601 = vpack.c.b16 %v5125, %v5118
    %v5602 = vpack.c.b16 %v5126, %v5119
    %v5603 = vpack.c.b16 %v5127, %v5120
    %v5604 = vpack.c.b16 %v5135, %v5128
    %v5605 = vpack.c.b16 %v5136, %v5129
    %v5606 = vpack.c.b16 %v5137, %v5130
    %v5607 = vpack.c.b16 %v5138, %v5131
    %v5608 = vpack.c.b16 %v5139, %v5132
    %v5609 = vpack.c.b16 %v5140, %v5133
    %v5610 = vpack.c.b16 %v5141, %v5134
    %v5611 = vpack.c.b16 %v5149, %v5142
    %v5612 = vpack.c.b16 %v5150, %v5143
    %v5613 = vpack.c.b16 %v5151, %v5144
    %v5614 = vpack.c.b16 %v5152, %v5145
    %v5615 = vpack.c.b16 %v5153, %v5146
    %v5616 = vpack.c.b16 %v5154, %v5147
    %v5617 = vpack.c.b16 %v5155, %v5148
    %v5618 = vpack.c.b16 %v5163, %v5156
    %v5619 = vpack.c.b16 %v5164, %v5157
    %v5620 = vpack.c.b16 %v5165, %v5158
    %v5621 = vpack.c.b16 %v5166, %v5159
    %v5622 = vpack.c.b16 %v5167, %v5160
    %v5623 = vpack.c.b16 %v5168, %v5161
    %v5624 = vpack.c.b16 %v5169, %v5162
    %v5625 = vpack.c.b16 %v5177, %v5170
    %v5626 = vpack.c.b16 %v5178, %v5171
    %v5627 = vpack.c.b16 %v5179, %v5172
    %v5628 = vpack.c.b16 %v5180, %v5173
    %v5629 = vpack.c.b16 %v5181, %v5174
    %v5630 = vpack.c.b16 %v5182, %v5175
    %v5631 = vpack.c.b16 %v5183, %v5176
    %6080 = vmatprep.subr.bf16.mxu0 %v5234
    %6081 = vmatpush1.bf16.msra.mxu0 %v5233
    %6082 = vmatprep.subr.bf16.mxu0 %v5227
    %6083 = vmatpush1.bf16.msra.mxu0 %v5226
    %6084 = vmatprep.subr.bf16.mxu0 %v5220
    %6085 = vmatpush1.bf16.msra.mxu0 %v5219
    %6086 = vmatprep.subr.bf16.mxu0 %v5213
    %6087 = vmatpush1.bf16.msra.mxu0 %v5212
    %6088 = vmatprep.subr.bf16.mxu0 %v5206
    %6089 = vmatpush1.bf16.msra.mxu0 %v5205
    %6090 = vmatprep.subr.bf16.mxu0 %v5199
    %6091 = vmatpush1.bf16.msra.mxu0 %v5198
    %6092 = vmatprep.subr.bf16.mxu0 %v5192
    %6093 = vmatpush1.bf16.msra.mxu0 %v5191
    %6094 = vmatprep.subr.bf16.mxu0 %v5185
    %6095 = vmatpush1.bf16.msra.mxu0 %v5184
    %6096 = vmatprep.subr.bf16.mxu0 %v5290
    %6097 = vmatpush2.bf16.msra.mxu0 %v5289
    %6098 = vmatprep.subr.bf16.mxu0 %v5283
    %6099 = vmatpush2.bf16.msra.mxu0 %v5282
    %6100 = vmatprep.subr.bf16.mxu0 %v5276
    %6101 = vmatpush2.bf16.msra.mxu0 %v5275
    %6102 = vmatprep.subr.bf16.mxu0 %v5269
    %6103 = vmatpush2.bf16.msra.mxu0 %v5268
    %6104 = vmatprep.subr.bf16.mxu0 %v5262
    %6105 = vmatpush2.bf16.msra.mxu0 %v5261
    %6106 = vmatprep.subr.bf16.mxu0 %v5255
    %6107 = vmatpush2.bf16.msra.mxu0 %v5254
    %6108 = vmatprep.subr.bf16.mxu0 %v5248
    %6109 = vmatpush2.bf16.msra.mxu0 %v5247
    %6110 = vmatprep.subr.bf16.mxu0 %v5241
    %6111 = vmatpush2.bf16.msra.mxu0 %v5240
    %6112 = vmatprep.mubr.bf16.mxu0 %v3220
    %6113 = vmatmul.mubr.bf16.gmra.mxu0 %v3219
    %v6114 = vpop.f32.mrf.mxu0
    %v6115 = vadd.f32 %v3744, %v6114
    %v6116 = vpop.f32.mrf.mxu0
    %v6117 = vadd.f32 %v3748, %v6116
    %v6118 = vpop.f32.mrf.mxu0
    %v6119 = vpop.f32.mrf.mxu0
    %6120 = vdwg.mxu0
    %6121 = vmatprep.subr.bf16.mxu0 %v5346
    %6122 = vmatpush1.bf16.msra.mxu0 %v5345
    %6123 = vmatprep.subr.bf16.mxu0 %v5339
    %6124 = vmatpush1.bf16.msra.mxu0 %v5338
    %6125 = vmatprep.subr.bf16.mxu0 %v5332
    %6126 = vmatpush1.bf16.msra.mxu0 %v5331
    %6127 = vmatprep.subr.bf16.mxu0 %v5325
    %6128 = vmatpush1.bf16.msra.mxu0 %v5324
    %6129 = vmatprep.subr.bf16.mxu0 %v5318
    %6130 = vmatpush1.bf16.msra.mxu0 %v5317
    %6131 = vmatprep.subr.bf16.mxu0 %v5311
    %6132 = vmatpush1.bf16.msra.mxu0 %v5310
    %6133 = vmatprep.subr.bf16.mxu0 %v5304
    %6134 = vmatpush1.bf16.msra.mxu0 %v5303
    %6135 = vmatprep.subr.bf16.mxu0 %v5297
    %6136 = vmatpush1.bf16.msra.mxu0 %v5296
    %6137 = vmatprep.subr.bf16.mxu0 %v5402
    %6138 = vmatpush2.bf16.msra.mxu0 %v5401
    %6139 = vmatprep.subr.bf16.mxu0 %v5395
    %6140 = vmatpush2.bf16.msra.mxu0 %v5394
    %6141 = vmatprep.subr.bf16.mxu0 %v5388
    %6142 = vmatpush2.bf16.msra.mxu0 %v5387
    %6143 = vmatprep.subr.bf16.mxu0 %v5381
    %6144 = vmatpush2.bf16.msra.mxu0 %v5380
    %6145 = vmatprep.subr.bf16.mxu0 %v5374
    %6146 = vmatpush2.bf16.msra.mxu0 %v5373
    %6147 = vmatprep.subr.bf16.mxu0 %v5367
    %6148 = vmatpush2.bf16.msra.mxu0 %v5366
    %6149 = vmatprep.subr.bf16.mxu0 %v5360
    %6150 = vmatpush2.bf16.msra.mxu0 %v5359
    %6151 = vmatprep.subr.bf16.mxu0 %v5353
    %6152 = vmatpush2.bf16.msra.mxu0 %v5352
    %6153 = vmatprep.mubr.bf16.mxu0 %v3222
    %6154 = vmatmul.mubr.bf16.gmra.mxu0 %v3221
    %v6155 = vpop.f32.mrf.mxu0
    %v6156 = vadd.f32 %v6115, %v6155
    %v6157 = vpop.f32.mrf.mxu0
    %v6158 = vadd.f32 %v6117, %v6157
    %v6159 = vpop.f32.mrf.mxu0
    %v6160 = vpop.f32.mrf.mxu0
    %6161 = vdwg.mxu0
    %6162 = vmatprep.subr.bf16.mxu0 %v5458
    %6163 = vmatpush1.bf16.msra.mxu0 %v5457
    %6164 = vmatprep.subr.bf16.mxu0 %v5451
    %6165 = vmatpush1.bf16.msra.mxu0 %v5450
    %6166 = vmatprep.subr.bf16.mxu0 %v5444
    %6167 = vmatpush1.bf16.msra.mxu0 %v5443
    %6168 = vmatprep.subr.bf16.mxu0 %v5437
    %6169 = vmatpush1.bf16.msra.mxu0 %v5436
    %6170 = vmatprep.subr.bf16.mxu0 %v5430
    %6171 = vmatpush1.bf16.msra.mxu0 %v5429
    %6172 = vmatprep.subr.bf16.mxu0 %v5423
    %6173 = vmatpush1.bf16.msra.mxu0 %v5422
    %6174 = vmatprep.subr.bf16.mxu0 %v5416
    %6175 = vmatpush1.bf16.msra.mxu0 %v5415
    %6176 = vmatprep.subr.bf16.mxu0 %v5409
    %6177 = vmatpush1.bf16.msra.mxu0 %v5408
    %6178 = vmatprep.subr.bf16.mxu0 %v5514
    %6179 = vmatpush2.bf16.msra.mxu0 %v5513
    %6180 = vmatprep.subr.bf16.mxu0 %v5507
    %6181 = vmatpush2.bf16.msra.mxu0 %v5506
    %6182 = vmatprep.subr.bf16.mxu0 %v5500
    %6183 = vmatpush2.bf16.msra.mxu0 %v5499
    %6184 = vmatprep.subr.bf16.mxu0 %v5493
    %6185 = vmatpush2.bf16.msra.mxu0 %v5492
    %6186 = vmatprep.subr.bf16.mxu0 %v5486
    %6187 = vmatpush2.bf16.msra.mxu0 %v5485
    %6188 = vmatprep.subr.bf16.mxu0 %v5479
    %6189 = vmatpush2.bf16.msra.mxu0 %v5478
    %6190 = vmatprep.subr.bf16.mxu0 %v5472
    %6191 = vmatpush2.bf16.msra.mxu0 %v5471
    %6192 = vmatprep.subr.bf16.mxu0 %v5465
    %6193 = vmatpush2.bf16.msra.mxu0 %v5464
    %6194 = vmatprep.mubr.bf16.mxu0 %v3224
    %6195 = vmatmul.mubr.bf16.gmra.mxu0 %v3223
    %v6196 = vpop.f32.mrf.mxu0
    %v6197 = vadd.f32 %v6156, %v6196
    %v6198 = vpop.f32.mrf.mxu0
    %v6199 = vadd.f32 %v6158, %v6198
    %v6200 = vpop.f32.mrf.mxu0
    %v6201 = vpop.f32.mrf.mxu0
    %6202 = vdwg.mxu0
    %6203 = vmatprep.subr.bf16.mxu0 %v5570
    %6204 = vmatpush1.bf16.msra.mxu0 %v5569
    %6205 = vmatprep.subr.bf16.mxu0 %v5563
    %6206 = vmatpush1.bf16.msra.mxu0 %v5562
    %6207 = vmatprep.subr.bf16.mxu0 %v5556
    %6208 = vmatpush1.bf16.msra.mxu0 %v5555
    %6209 = vmatprep.subr.bf16.mxu0 %v5549
    %6210 = vmatpush1.bf16.msra.mxu0 %v5548
    %6211 = vmatprep.subr.bf16.mxu0 %v5542
    %6212 = vmatpush1.bf16.msra.mxu0 %v5541
    %6213 = vmatprep.subr.bf16.mxu0 %v5535
    %6214 = vmatpush1.bf16.msra.mxu0 %v5534
    %6215 = vmatprep.subr.bf16.mxu0 %v5528
    %6216 = vmatpush1.bf16.msra.mxu0 %v5527
    %6217 = vmatprep.subr.bf16.mxu0 %v5521
    %6218 = vmatpush1.bf16.msra.mxu0 %v5520
    %6219 = vmatprep.subr.bf16.mxu0 %v5626
    %6220 = vmatpush2.bf16.msra.mxu0 %v5625
    %6221 = vmatprep.subr.bf16.mxu0 %v5619
    %6222 = vmatpush2.bf16.msra.mxu0 %v5618
    %6223 = vmatprep.subr.bf16.mxu0 %v5612
    %6224 = vmatpush2.bf16.msra.mxu0 %v5611
    %6225 = vmatprep.subr.bf16.mxu0 %v5605
    %6226 = vmatpush2.bf16.msra.mxu0 %v5604
    %6227 = vmatprep.subr.bf16.mxu0 %v5598
    %6228 = vmatpush2.bf16.msra.mxu0 %v5597
    %6229 = vmatprep.subr.bf16.mxu0 %v5591
    %6230 = vmatpush2.bf16.msra.mxu0 %v5590
    %6231 = vmatprep.subr.bf16.mxu0 %v5584
    %6232 = vmatpush2.bf16.msra.mxu0 %v5583
    %6233 = vmatprep.subr.bf16.mxu0 %v5577
    %6234 = vmatpush2.bf16.msra.mxu0 %v5576
    %6235 = vmatprep.mubr.bf16.mxu0 %v3226
    %6236 = vmatmul.mubr.bf16.gmra.mxu0 %v3225
    %v6237 = vpop.f32.mrf.mxu0
    %v6238 = vadd.f32 %v6197, %v6237
    %v6239 = vpop.f32.mrf.mxu0
    %v6240 = vadd.f32 %v6199, %v6239
    %v6241 = vpop.f32.mrf.mxu0
    %v6242 = vpop.f32.mrf.mxu0
    %6243 = vdwg.mxu0
    %6244 = vmatprep.subr.bf16.mxu0 %v5236
    %6245 = vmatpush1.bf16.msra.mxu0 %v5235
    %6246 = vmatprep.subr.bf16.mxu0 %v5229
    %6247 = vmatpush1.bf16.msra.mxu0 %v5228
    %6248 = vmatprep.subr.bf16.mxu0 %v5222
    %6249 = vmatpush1.bf16.msra.mxu0 %v5221
    %6250 = vmatprep.subr.bf16.mxu0 %v5215
    %6251 = vmatpush1.bf16.msra.mxu0 %v5214
    %6252 = vmatprep.subr.bf16.mxu0 %v5208
    %6253 = vmatpush1.bf16.msra.mxu0 %v5207
    %6254 = vmatprep.subr.bf16.mxu0 %v5201
    %6255 = vmatpush1.bf16.msra.mxu0 %v5200
    %6256 = vmatprep.subr.bf16.mxu0 %v5194
    %6257 = vmatpush1.bf16.msra.mxu0 %v5193
    %6258 = vmatprep.subr.bf16.mxu0 %v5187
    %6259 = vmatpush1.bf16.msra.mxu0 %v5186
    %6260 = vmatprep.subr.bf16.mxu0 %v5292
    %6261 = vmatpush2.bf16.msra.mxu0 %v5291
    %6262 = vmatprep.subr.bf16.mxu0 %v5285
    %6263 = vmatpush2.bf16.msra.mxu0 %v5284
    %6264 = vmatprep.subr.bf16.mxu0 %v5278
    %6265 = vmatpush2.bf16.msra.mxu0 %v5277
    %6266 = vmatprep.subr.bf16.mxu0 %v5271
    %6267 = vmatpush2.bf16.msra.mxu0 %v5270
    %6268 = vmatprep.subr.bf16.mxu0 %v5264
    %6269 = vmatpush2.bf16.msra.mxu0 %v5263
    %6270 = vmatprep.subr.bf16.mxu0 %v5257
    %6271 = vmatpush2.bf16.msra.mxu0 %v5256
    %6272 = vmatprep.subr.bf16.mxu0 %v5250
    %6273 = vmatpush2.bf16.msra.mxu0 %v5249
    %6274 = vmatprep.subr.bf16.mxu0 %v5243
    %6275 = vmatpush2.bf16.msra.mxu0 %v5242
    %6276 = vmatprep.mubr.bf16.mxu0 %v3220
    %6277 = vmatmul.mubr.bf16.gmra.mxu0 %v3219
    %v6278 = vpop.f32.mrf.mxu0
    %v6279 = vadd.f32 %v3752, %v6278
    %v6280 = vpop.f32.mrf.mxu0
    %v6281 = vadd.f32 %v3756, %v6280
    %v6282 = vpop.f32.mrf.mxu0
    %v6283 = vpop.f32.mrf.mxu0
    %6284 = vdwg.mxu0
    %6285 = vmatprep.subr.bf16.mxu0 %v5348
    %6286 = vmatpush1.bf16.msra.mxu0 %v5347
    %6287 = vmatprep.subr.bf16.mxu0 %v5341
    %6288 = vmatpush1.bf16.msra.mxu0 %v5340
    %6289 = vmatprep.subr.bf16.mxu0 %v5334
    %6290 = vmatpush1.bf16.msra.mxu0 %v5333
    %6291 = vmatprep.subr.bf16.mxu0 %v5327
    %6292 = vmatpush1.bf16.msra.mxu0 %v5326
    %6293 = vmatprep.subr.bf16.mxu0 %v5320
    %6294 = vmatpush1.bf16.msra.mxu0 %v5319
    %6295 = vmatprep.subr.bf16.mxu0 %v5313
    %6296 = vmatpush1.bf16.msra.mxu0 %v5312
    %6297 = vmatprep.subr.bf16.mxu0 %v5306
    %6298 = vmatpush1.bf16.msra.mxu0 %v5305
    %6299 = vmatprep.subr.bf16.mxu0 %v5299
    %6300 = vmatpush1.bf16.msra.mxu0 %v5298
    %6301 = vmatprep.subr.bf16.mxu0 %v5404
    %6302 = vmatpush2.bf16.msra.mxu0 %v5403
    %6303 = vmatprep.subr.bf16.mxu0 %v5397
    %6304 = vmatpush2.bf16.msra.mxu0 %v5396
    %6305 = vmatprep.subr.bf16.mxu0 %v5390
    %6306 = vmatpush2.bf16.msra.mxu0 %v5389
    %6307 = vmatprep.subr.bf16.mxu0 %v5383
    %6308 = vmatpush2.bf16.msra.mxu0 %v5382
    %6309 = vmatprep.subr.bf16.mxu0 %v5376
    %6310 = vmatpush2.bf16.msra.mxu0 %v5375
    %6311 = vmatprep.subr.bf16.mxu0 %v5369
    %6312 = vmatpush2.bf16.msra.mxu0 %v5368
    %6313 = vmatprep.subr.bf16.mxu0 %v5362
    %6314 = vmatpush2.bf16.msra.mxu0 %v5361
    %6315 = vmatprep.subr.bf16.mxu0 %v5355
    %6316 = vmatpush2.bf16.msra.mxu0 %v5354
    %6317 = vmatprep.mubr.bf16.mxu0 %v3222
    %6318 = vmatmul.mubr.bf16.gmra.mxu0 %v3221
    %v6319 = vpop.f32.mrf.mxu0
    %v6320 = vadd.f32 %v6279, %v6319
    %v6321 = vpop.f32.mrf.mxu0
    %v6322 = vadd.f32 %v6281, %v6321
    %v6323 = vpop.f32.mrf.mxu0
    %v6324 = vpop.f32.mrf.mxu0
    %6325 = vdwg.mxu0
    %6326 = vmatprep.subr.bf16.mxu0 %v5460
    %6327 = vmatpush1.bf16.msra.mxu0 %v5459
    %6328 = vmatprep.subr.bf16.mxu0 %v5453
    %6329 = vmatpush1.bf16.msra.mxu0 %v5452
    %6330 = vmatprep.subr.bf16.mxu0 %v5446
    %6331 = vmatpush1.bf16.msra.mxu0 %v5445
    %6332 = vmatprep.subr.bf16.mxu0 %v5439
    %6333 = vmatpush1.bf16.msra.mxu0 %v5438
    %6334 = vmatprep.subr.bf16.mxu0 %v5432
    %6335 = vmatpush1.bf16.msra.mxu0 %v5431
    %6336 = vmatprep.subr.bf16.mxu0 %v5425
    %6337 = vmatpush1.bf16.msra.mxu0 %v5424
    %6338 = vmatprep.subr.bf16.mxu0 %v5418
    %6339 = vmatpush1.bf16.msra.mxu0 %v5417
    %6340 = vmatprep.subr.bf16.mxu0 %v5411
    %6341 = vmatpush1.bf16.msra.mxu0 %v5410
    %6342 = vmatprep.subr.bf16.mxu0 %v5516
    %6343 = vmatpush2.bf16.msra.mxu0 %v5515
    %6344 = vmatprep.subr.bf16.mxu0 %v5509
    %6345 = vmatpush2.bf16.msra.mxu0 %v5508
    %6346 = vmatprep.subr.bf16.mxu0 %v5502
    %6347 = vmatpush2.bf16.msra.mxu0 %v5501
    %6348 = vmatprep.subr.bf16.mxu0 %v5495
    %6349 = vmatpush2.bf16.msra.mxu0 %v5494
    %6350 = vmatprep.subr.bf16.mxu0 %v5488
    %6351 = vmatpush2.bf16.msra.mxu0 %v5487
    %6352 = vmatprep.subr.bf16.mxu0 %v5481
    %6353 = vmatpush2.bf16.msra.mxu0 %v5480
    %6354 = vmatprep.subr.bf16.mxu0 %v5474
    %6355 = vmatpush2.bf16.msra.mxu0 %v5473
    %6356 = vmatprep.subr.bf16.mxu0 %v5467
    %6357 = vmatpush2.bf16.msra.mxu0 %v5466
    %6358 = vmatprep.mubr.bf16.mxu0 %v3224
    %6359 = vmatmul.mubr.bf16.gmra.mxu0 %v3223
    %v6360 = vpop.f32.mrf.mxu0
    %v6361 = vadd.f32 %v6320, %v6360
    %v6362 = vpop.f32.mrf.mxu0
    %v6363 = vadd.f32 %v6322, %v6362
    %v6364 = vpop.f32.mrf.mxu0
    %v6365 = vpop.f32.mrf.mxu0
    %6366 = vdwg.mxu0
    %6367 = vmatprep.subr.bf16.mxu0 %v5572
    %6368 = vmatpush1.bf16.msra.mxu0 %v5571
    %6369 = vmatprep.subr.bf16.mxu0 %v5565
    %6370 = vmatpush1.bf16.msra.mxu0 %v5564
    %6371 = vmatprep.subr.bf16.mxu0 %v5558
    %6372 = vmatpush1.bf16.msra.mxu0 %v5557
    %6373 = vmatprep.subr.bf16.mxu0 %v5551
    %6374 = vmatpush1.bf16.msra.mxu0 %v5550
    %6375 = vmatprep.subr.bf16.mxu0 %v5544
    %6376 = vmatpush1.bf16.msra.mxu0 %v5543
    %6377 = vmatprep.subr.bf16.mxu0 %v5537
    %6378 = vmatpush1.bf16.msra.mxu0 %v5536
    %6379 = vmatprep.subr.bf16.mxu0 %v5530
    %6380 = vmatpush1.bf16.msra.mxu0 %v5529
    %6381 = vmatprep.subr.bf16.mxu0 %v5523
    %6382 = vmatpush1.bf16.msra.mxu0 %v5522
    %6383 = vmatprep.subr.bf16.mxu0 %v5628
    %6384 = vmatpush2.bf16.msra.mxu0 %v5627
    %6385 = vmatprep.subr.bf16.mxu0 %v5621
    %6386 = vmatpush2.bf16.msra.mxu0 %v5620
    %6387 = vmatprep.subr.bf16.mxu0 %v5614
    %6388 = vmatpush2.bf16.msra.mxu0 %v5613
    %6389 = vmatprep.subr.bf16.mxu0 %v5607
    %6390 = vmatpush2.bf16.msra.mxu0 %v5606
    %6391 = vmatprep.subr.bf16.mxu0 %v5600
    %6392 = vmatpush2.bf16.msra.mxu0 %v5599
    %6393 = vmatprep.subr.bf16.mxu0 %v5593
    %6394 = vmatpush2.bf16.msra.mxu0 %v5592
    %6395 = vmatprep.subr.bf16.mxu0 %v5586
    %6396 = vmatpush2.bf16.msra.mxu0 %v5585
    %6397 = vmatprep.subr.bf16.mxu0 %v5579
    %6398 = vmatpush2.bf16.msra.mxu0 %v5578
    %6399 = vmatprep.mubr.bf16.mxu0 %v3226
    %6400 = vmatmul.mubr.bf16.gmra.mxu0 %v3225
    %v6401 = vpop.f32.mrf.mxu0
    %v6402 = vadd.f32 %v6361, %v6401
    %v6403 = vpop.f32.mrf.mxu0
    %v6404 = vadd.f32 %v6363, %v6403
    %v6405 = vpop.f32.mrf.mxu0
    %v6406 = vpop.f32.mrf.mxu0
    %6407 = vdwg.mxu0
    %6408 = vmatprep.subr.bf16.mxu0 %v5238
    %6409 = vmatpush1.bf16.msra.mxu0 %v5237
    %6410 = vmatprep.subr.bf16.mxu0 %v5231
    %6411 = vmatpush1.bf16.msra.mxu0 %v5230
    %6412 = vmatprep.subr.bf16.mxu0 %v5224
    %6413 = vmatpush1.bf16.msra.mxu0 %v5223
    %6414 = vmatprep.subr.bf16.mxu0 %v5217
    %6415 = vmatpush1.bf16.msra.mxu0 %v5216
    %6416 = vmatprep.subr.bf16.mxu0 %v5210
    %6417 = vmatpush1.bf16.msra.mxu0 %v5209
    %6418 = vmatprep.subr.bf16.mxu0 %v5203
    %6419 = vmatpush1.bf16.msra.mxu0 %v5202
    %6420 = vmatprep.subr.bf16.mxu0 %v5196
    %6421 = vmatpush1.bf16.msra.mxu0 %v5195
    %6422 = vmatprep.subr.bf16.mxu0 %v5189
    %6423 = vmatpush1.bf16.msra.mxu0 %v5188
    %6424 = vmatprep.subr.bf16.mxu0 %v5294
    %6425 = vmatpush2.bf16.msra.mxu0 %v5293
    %6426 = vmatprep.subr.bf16.mxu0 %v5287
    %6427 = vmatpush2.bf16.msra.mxu0 %v5286
    %6428 = vmatprep.subr.bf16.mxu0 %v5280
    %6429 = vmatpush2.bf16.msra.mxu0 %v5279
    %6430 = vmatprep.subr.bf16.mxu0 %v5273
    %6431 = vmatpush2.bf16.msra.mxu0 %v5272
    %6432 = vmatprep.subr.bf16.mxu0 %v5266
    %6433 = vmatpush2.bf16.msra.mxu0 %v5265
    %6434 = vmatprep.subr.bf16.mxu0 %v5259
    %6435 = vmatpush2.bf16.msra.mxu0 %v5258
    %6436 = vmatprep.subr.bf16.mxu0 %v5252
    %6437 = vmatpush2.bf16.msra.mxu0 %v5251
    %6438 = vmatprep.subr.bf16.mxu0 %v5245
    %6439 = vmatpush2.bf16.msra.mxu0 %v5244
    %6440 = vmatprep.mubr.bf16.mxu0 %v3220
    %6441 = vmatmul.mubr.bf16.gmra.mxu0 %v3219
    %v6442 = vpop.f32.mrf.mxu0
    %v6443 = vadd.f32 %v3760, %v6442
    %v6444 = vpop.f32.mrf.mxu0
    %v6445 = vadd.f32 %v3764, %v6444
    %v6446 = vpop.f32.mrf.mxu0
    %v6447 = vpop.f32.mrf.mxu0
    %6448 = vdwg.mxu0
    %6449 = vmatprep.subr.bf16.mxu0 %v5350
    %6450 = vmatpush1.bf16.msra.mxu0 %v5349
    %6451 = vmatprep.subr.bf16.mxu0 %v5343
    %6452 = vmatpush1.bf16.msra.mxu0 %v5342
    %6453 = vmatprep.subr.bf16.mxu0 %v5336
    %6454 = vmatpush1.bf16.msra.mxu0 %v5335
    %6455 = vmatprep.subr.bf16.mxu0 %v5329
    %6456 = vmatpush1.bf16.msra.mxu0 %v5328
    %6457 = vmatprep.subr.bf16.mxu0 %v5322
    %6458 = vmatpush1.bf16.msra.mxu0 %v5321
    %6459 = vmatprep.subr.bf16.mxu0 %v5315
    %6460 = vmatpush1.bf16.msra.mxu0 %v5314
    %6461 = vmatprep.subr.bf16.mxu0 %v5308
    %6462 = vmatpush1.bf16.msra.mxu0 %v5307
    %6463 = vmatprep.subr.bf16.mxu0 %v5301
    %6464 = vmatpush1.bf16.msra.mxu0 %v5300
    %6465 = vmatprep.subr.bf16.mxu0 %v5406
    %6466 = vmatpush2.bf16.msra.mxu0 %v5405
    %6467 = vmatprep.subr.bf16.mxu0 %v5399
    %6468 = vmatpush2.bf16.msra.mxu0 %v5398
    %6469 = vmatprep.subr.bf16.mxu0 %v5392
    %6470 = vmatpush2.bf16.msra.mxu0 %v5391
    %6471 = vmatprep.subr.bf16.mxu0 %v5385
    %6472 = vmatpush2.bf16.msra.mxu0 %v5384
    %6473 = vmatprep.subr.bf16.mxu0 %v5378
    %6474 = vmatpush2.bf16.msra.mxu0 %v5377
    %6475 = vmatprep.subr.bf16.mxu0 %v5371
    %6476 = vmatpush2.bf16.msra.mxu0 %v5370
    %6477 = vmatprep.subr.bf16.mxu0 %v5364
    %6478 = vmatpush2.bf16.msra.mxu0 %v5363
    %6479 = vmatprep.subr.bf16.mxu0 %v5357
    %6480 = vmatpush2.bf16.msra.mxu0 %v5356
    %6481 = vmatprep.mubr.bf16.mxu0 %v3222
    %6482 = vmatmul.mubr.bf16.gmra.mxu0 %v3221
    %v6483 = vpop.f32.mrf.mxu0
    %v6484 = vadd.f32 %v6443, %v6483
    %v6485 = vpop.f32.mrf.mxu0
    %v6486 = vadd.f32 %v6445, %v6485
    %v6487 = vpop.f32.mrf.mxu0
    %v6488 = vpop.f32.mrf.mxu0
    %6489 = vdwg.mxu0
    %6490 = vmatprep.subr.bf16.mxu0 %v5462
    %6491 = vmatpush1.bf16.msra.mxu0 %v5461
    %6492 = vmatprep.subr.bf16.mxu0 %v5455
    %6493 = vmatpush1.bf16.msra.mxu0 %v5454
    %6494 = vmatprep.subr.bf16.mxu0 %v5448
    %6495 = vmatpush1.bf16.msra.mxu0 %v5447
    %6496 = vmatprep.subr.bf16.mxu0 %v5441
    %6497 = vmatpush1.bf16.msra.mxu0 %v5440
    %6498 = vmatprep.subr.bf16.mxu0 %v5434
    %6499 = vmatpush1.bf16.msra.mxu0 %v5433
    %6500 = vmatprep.subr.bf16.mxu0 %v5427
    %6501 = vmatpush1.bf16.msra.mxu0 %v5426
    %6502 = vmatprep.subr.bf16.mxu0 %v5420
    %6503 = vmatpush1.bf16.msra.mxu0 %v5419
    %6504 = vmatprep.subr.bf16.mxu0 %v5413
    %6505 = vmatpush1.bf16.msra.mxu0 %v5412
    %6506 = vmatprep.subr.bf16.mxu0 %v5518
    %6507 = vmatpush2.bf16.msra.mxu0 %v5517
    %6508 = vmatprep.subr.bf16.mxu0 %v5511
    %6509 = vmatpush2.bf16.msra.mxu0 %v5510
    %6510 = vmatprep.subr.bf16.mxu0 %v5504
    %6511 = vmatpush2.bf16.msra.mxu0 %v5503
    %6512 = vmatprep.subr.bf16.mxu0 %v5497
    %6513 = vmatpush2.bf16.msra.mxu0 %v5496
    %6514 = vmatprep.subr.bf16.mxu0 %v5490
    %6515 = vmatpush2.bf16.msra.mxu0 %v5489
    %6516 = vmatprep.subr.bf16.mxu0 %v5483
    %6517 = vmatpush2.bf16.msra.mxu0 %v5482
    %6518 = vmatprep.subr.bf16.mxu0 %v5476
    %6519 = vmatpush2.bf16.msra.mxu0 %v5475
    %6520 = vmatprep.subr.bf16.mxu0 %v5469
    %6521 = vmatpush2.bf16.msra.mxu0 %v5468
    %6522 = vmatprep.mubr.bf16.mxu0 %v3224
    %6523 = vmatmul.mubr.bf16.gmra.mxu0 %v3223
    %v6524 = vpop.f32.mrf.mxu0
    %v6525 = vadd.f32 %v6484, %v6524
    %v6526 = vpop.f32.mrf.mxu0
    %v6527 = vadd.f32 %v6486, %v6526
    %v6528 = vpop.f32.mrf.mxu0
    %v6529 = vpop.f32.mrf.mxu0
    %6530 = vdwg.mxu0
    %6531 = vmatprep.subr.bf16.mxu0 %v5574
    %6532 = vmatpush1.bf16.msra.mxu0 %v5573
    %6533 = vmatprep.subr.bf16.mxu0 %v5567
    %6534 = vmatpush1.bf16.msra.mxu0 %v5566
    %6535 = vmatprep.subr.bf16.mxu0 %v5560
    %6536 = vmatpush1.bf16.msra.mxu0 %v5559
    %6537 = vmatprep.subr.bf16.mxu0 %v5553
    %6538 = vmatpush1.bf16.msra.mxu0 %v5552
    %6539 = vmatprep.subr.bf16.mxu0 %v5546
    %6540 = vmatpush1.bf16.msra.mxu0 %v5545
    %6541 = vmatprep.subr.bf16.mxu0 %v5539
    %6542 = vmatpush1.bf16.msra.mxu0 %v5538
    %6543 = vmatprep.subr.bf16.mxu0 %v5532
    %6544 = vmatpush1.bf16.msra.mxu0 %v5531
    %6545 = vmatprep.subr.bf16.mxu0 %v5525
    %6546 = vmatpush1.bf16.msra.mxu0 %v5524
    %6547 = vmatprep.subr.bf16.mxu0 %v5630
    %6548 = vmatpush2.bf16.msra.mxu0 %v5629
    %6549 = vmatprep.subr.bf16.mxu0 %v5623
    %6550 = vmatpush2.bf16.msra.mxu0 %v5622
    %6551 = vmatprep.subr.bf16.mxu0 %v5616
    %6552 = vmatpush2.bf16.msra.mxu0 %v5615
    %6553 = vmatprep.subr.bf16.mxu0 %v5609
    %6554 = vmatpush2.bf16.msra.mxu0 %v5608
    %6555 = vmatprep.subr.bf16.mxu0 %v5602
    %6556 = vmatpush2.bf16.msra.mxu0 %v5601
    %6557 = vmatprep.subr.bf16.mxu0 %v5595
    %6558 = vmatpush2.bf16.msra.mxu0 %v5594
    %6559 = vmatprep.subr.bf16.mxu0 %v5588
    %6560 = vmatpush2.bf16.msra.mxu0 %v5587
    %6561 = vmatprep.subr.bf16.mxu0 %v5581
    %6562 = vmatpush2.bf16.msra.mxu0 %v5580
    %6563 = vmatprep.mubr.bf16.mxu0 %v3226
    %6564 = vmatmul.mubr.bf16.gmra.mxu0 %v3225
    %v6565 = vpop.f32.mrf.mxu0
    %v6566 = vadd.f32 %v6525, %v6565
    %v6567 = vpop.f32.mrf.mxu0
    %v6568 = vadd.f32 %v6527, %v6567
    %v6569 = vpop.f32.mrf.mxu0
    %v6570 = vpop.f32.mrf.mxu0
    %6571 = vdwg.mxu0
    %6572 = vmatprep.subr.bf16.mxu0 0
    %6573 = vmatpush1.bf16.msra.mxu0 %v5239
    %6574 = vmatprep.subr.bf16.mxu0 0
    %6575 = vmatpush1.bf16.msra.mxu0 %v5232
    %6576 = vmatprep.subr.bf16.mxu0 0
    %6577 = vmatpush1.bf16.msra.mxu0 %v5225
    %6578 = vmatprep.subr.bf16.mxu0 0
    %6579 = vmatpush1.bf16.msra.mxu0 %v5218
    %6580 = vmatprep.subr.bf16.mxu0 0
    %6581 = vmatpush1.bf16.msra.mxu0 %v5211
    %6582 = vmatprep.subr.bf16.mxu0 0
    %6583 = vmatpush1.bf16.msra.mxu0 %v5204
    %6584 = vmatprep.subr.bf16.mxu0 0
    %6585 = vmatpush1.bf16.msra.mxu0 %v5197
    %6586 = vmatprep.subr.bf16.mxu0 0
    %6587 = vmatpush1.bf16.msra.mxu0 %v5190
    %6588 = vmatprep.subr.bf16.mxu0 0
    %6589 = vmatpush2.bf16.msra.mxu0 %v5295
    %6590 = vmatprep.subr.bf16.mxu0 0
    %6591 = vmatpush2.bf16.msra.mxu0 %v5288
    %6592 = vmatprep.subr.bf16.mxu0 0
    %6593 = vmatpush2.bf16.msra.mxu0 %v5281
    %6594 = vmatprep.subr.bf16.mxu0 0
    %6595 = vmatpush2.bf16.msra.mxu0 %v5274
    %6596 = vmatprep.subr.bf16.mxu0 0
    %6597 = vmatpush2.bf16.msra.mxu0 %v5267
    %6598 = vmatprep.subr.bf16.mxu0 0
    %6599 = vmatpush2.bf16.msra.mxu0 %v5260
    %6600 = vmatprep.subr.bf16.mxu0 0
    %6601 = vmatpush2.bf16.msra.mxu0 %v5253
    %6602 = vmatprep.subr.bf16.mxu0 0
    %6603 = vmatpush2.bf16.msra.mxu0 %v5246
    %6604 = vmatprep.mubr.bf16.mxu0 %v3220
    %6605 = vmatmul.mubr.bf16.gmra.mxu0 %v3219
    %v6606 = vpop.f32.mrf.mxu0
    %v6607 = vadd.f32 %v3768, %v6606
    %v6608 = vpop.f32.mrf.mxu0
    %v6609 = vpop.f32.mrf.mxu0
    %v6610 = vpop.f32.mrf.mxu0
    %6611 = vdwg.mxu0
    %6612 = vmatprep.subr.bf16.mxu0 0
    %6613 = vmatpush1.bf16.msra.mxu0 %v5351
    %6614 = vmatprep.subr.bf16.mxu0 0
    %6615 = vmatpush1.bf16.msra.mxu0 %v5344
    %6616 = vmatprep.subr.bf16.mxu0 0
    %6617 = vmatpush1.bf16.msra.mxu0 %v5337
    %6618 = vmatprep.subr.bf16.mxu0 0
    %6619 = vmatpush1.bf16.msra.mxu0 %v5330
    %6620 = vmatprep.subr.bf16.mxu0 0
    %6621 = vmatpush1.bf16.msra.mxu0 %v5323
    %6622 = vmatprep.subr.bf16.mxu0 0
    %6623 = vmatpush1.bf16.msra.mxu0 %v5316
    %6624 = vmatprep.subr.bf16.mxu0 0
    %6625 = vmatpush1.bf16.msra.mxu0 %v5309
    %6626 = vmatprep.subr.bf16.mxu0 0
    %6627 = vmatpush1.bf16.msra.mxu0 %v5302
    %6628 = vmatprep.subr.bf16.mxu0 0
    %6629 = vmatpush2.bf16.msra.mxu0 %v5407
    %6630 = vmatprep.subr.bf16.mxu0 0
    %6631 = vmatpush2.bf16.msra.mxu0 %v5400
    %6632 = vmatprep.subr.bf16.mxu0 0
    %6633 = vmatpush2.bf16.msra.mxu0 %v5393
    %6634 = vmatprep.subr.bf16.mxu0 0
    %6635 = vmatpush2.bf16.msra.mxu0 %v5386
    %6636 = vmatprep.subr.bf16.mxu0 0
    %6637 = vmatpush2.bf16.msra.mxu0 %v5379
    %6638 = vmatprep.subr.bf16.mxu0 0
    %6639 = vmatpush2.bf16.msra.mxu0 %v5372
    %6640 = vmatprep.subr.bf16.mxu0 0
    %6641 = vmatpush2.bf16.msra.mxu0 %v5365
    %6642 = vmatprep.subr.bf16.mxu0 0
    %6643 = vmatpush2.bf16.msra.mxu0 %v5358
    %6644 = vmatprep.mubr.bf16.mxu0 %v3222
    %6645 = vmatmul.mubr.bf16.gmra.mxu0 %v3221
    %v6646 = vpop.f32.mrf.mxu0
    %v6647 = vadd.f32 %v6607, %v6646
    %v6648 = vpop.f32.mrf.mxu0
    %v6649 = vpop.f32.mrf.mxu0
    %v6650 = vpop.f32.mrf.mxu0
    %6651 = vdwg.mxu0
    %6652 = vmatprep.subr.bf16.mxu0 0
    %6653 = vmatpush1.bf16.msra.mxu0 %v5463
    %6654 = vmatprep.subr.bf16.mxu0 0
    %6655 = vmatpush1.bf16.msra.mxu0 %v5456
    %6656 = vmatprep.subr.bf16.mxu0 0
    %6657 = vmatpush1.bf16.msra.mxu0 %v5449
    %6658 = vmatprep.subr.bf16.mxu0 0
    %6659 = vmatpush1.bf16.msra.mxu0 %v5442
    %6660 = vmatprep.subr.bf16.mxu0 0
    %6661 = vmatpush1.bf16.msra.mxu0 %v5435
    %6662 = vmatprep.subr.bf16.mxu0 0
    %6663 = vmatpush1.bf16.msra.mxu0 %v5428
    %6664 = vmatprep.subr.bf16.mxu0 0
    %6665 = vmatpush1.bf16.msra.mxu0 %v5421
    %6666 = vmatprep.subr.bf16.mxu0 0
    %6667 = vmatpush1.bf16.msra.mxu0 %v5414
    %6668 = vmatprep.subr.bf16.mxu0 0
    %6669 = vmatpush2.bf16.msra.mxu0 %v5519
    %6670 = vmatprep.subr.bf16.mxu0 0
    %6671 = vmatpush2.bf16.msra.mxu0 %v5512
    %6672 = vmatprep.subr.bf16.mxu0 0
    %6673 = vmatpush2.bf16.msra.mxu0 %v5505
    %6674 = vmatprep.subr.bf16.mxu0 0
    %6675 = vmatpush2.bf16.msra.mxu0 %v5498
    %6676 = vmatprep.subr.bf16.mxu0 0
    %6677 = vmatpush2.bf16.msra.mxu0 %v5491
    %6678 = vmatprep.subr.bf16.mxu0 0
    %6679 = vmatpush2.bf16.msra.mxu0 %v5484
    %6680 = vmatprep.subr.bf16.mxu0 0
    %6681 = vmatpush2.bf16.msra.mxu0 %v5477
    %6682 = vmatprep.subr.bf16.mxu0 0
    %6683 = vmatpush2.bf16.msra.mxu0 %v5470
    %6684 = vmatprep.mubr.bf16.mxu0 %v3224
    %6685 = vmatmul.mubr.bf16.gmra.mxu0 %v3223
    %v6686 = vpop.f32.mrf.mxu0
    %v6687 = vadd.f32 %v6647, %v6686
    %v6688 = vpop.f32.mrf.mxu0
    %v6689 = vpop.f32.mrf.mxu0
    %v6690 = vpop.f32.mrf.mxu0
    %6691 = vdwg.mxu0
    %6692 = vmatprep.subr.bf16.mxu0 0
    %6693 = vmatpush1.bf16.msra.mxu0 %v5575
    %6694 = vmatprep.subr.bf16.mxu0 0
    %6695 = vmatpush1.bf16.msra.mxu0 %v5568
    %6696 = vmatprep.subr.bf16.mxu0 0
    %6697 = vmatpush1.bf16.msra.mxu0 %v5561
    %6698 = vmatprep.subr.bf16.mxu0 0
    %6699 = vmatpush1.bf16.msra.mxu0 %v5554
    %6700 = vmatprep.subr.bf16.mxu0 0
    %6701 = vmatpush1.bf16.msra.mxu0 %v5547
    %6702 = vmatprep.subr.bf16.mxu0 0
    %6703 = vmatpush1.bf16.msra.mxu0 %v5540
    %6704 = vmatprep.subr.bf16.mxu0 0
    %6705 = vmatpush1.bf16.msra.mxu0 %v5533
    %6706 = vmatprep.subr.bf16.mxu0 0
    %6707 = vmatpush1.bf16.msra.mxu0 %v5526
    %6708 = vmatprep.subr.bf16.mxu0 0
    %6709 = vmatpush2.bf16.msra.mxu0 %v5631
    %6710 = vmatprep.subr.bf16.mxu0 0
    %6711 = vmatpush2.bf16.msra.mxu0 %v5624
    %6712 = vmatprep.subr.bf16.mxu0 0
    %6713 = vmatpush2.bf16.msra.mxu0 %v5617
    %6714 = vmatprep.subr.bf16.mxu0 0
    %6715 = vmatpush2.bf16.msra.mxu0 %v5610
    %6716 = vmatprep.subr.bf16.mxu0 0
    %6717 = vmatpush2.bf16.msra.mxu0 %v5603
    %6718 = vmatprep.subr.bf16.mxu0 0
    %6719 = vmatpush2.bf16.msra.mxu0 %v5596
    %6720 = vmatprep.subr.bf16.mxu0 0
    %6721 = vmatpush2.bf16.msra.mxu0 %v5589
    %6722 = vmatprep.subr.bf16.mxu0 0
    %6723 = vmatpush2.bf16.msra.mxu0 %v5582
    %6724 = vmatprep.mubr.bf16.mxu0 %v3226
    %6725 = vmatmul.mubr.bf16.gmra.mxu0 %v3225
    %v6726 = vpop.f32.mrf.mxu0
    %v6727 = vadd.f32 %v6687, %v6726
    %v6728 = vpop.f32.mrf.mxu0
    %v6729 = vpop.f32.mrf.mxu0
    %v6730 = vpop.f32.mrf.mxu0
    %6731 = vdwg.mxu0
    %v6732 = vxor.u32 %v6238, 2147483648
    %v6733 = vxor.u32 %v6240, 2147483648
    %v6734 = vxor.u32 %v6402, 2147483648
    %v6735 = vxor.u32 %v6404, 2147483648
    %v6736 = vxor.u32 %v6566, 2147483648
    %v6737 = vxor.u32 %v6568, 2147483648
    %v6738 = vxor.u32 %v6727, 2147483648
    %v6739 = vmul.f32 %v6732, 1.442695
    %v6740 = vpow.pop %v6739
    %v6741 = vmul.f32 %v6733, 1.442695
    %v6742 = vpow.pop %v6741
    %v6743 = vmul.f32 %v6734, 1.442695
    %v6744 = vpow.pop %v6743
    %v6745 = vmul.f32 %v6735, 1.442695
    %v6746 = vpow.pop %v6745
    %v6747 = vmul.f32 %v6736, 1.442695
    %v6748 = vpow.pop %v6747
    %v6749 = vmul.f32 %v6737, 1.442695
    %v6750 = vpow.pop %v6749
    %v6751 = vmul.f32 %v6738, 1.442695
    %v6752 = vpow.pop %v6751
    %v6753 = vadd.f32 %v6740, 1.0
    %v6754 = vadd.f32 %v6742, 1.0
    %v6755 = vadd.f32 %v6744, 1.0
    %v6756 = vadd.f32 %v6746, 1.0
    %v6757 = vadd.f32 %v6748, 1.0
    %v6758 = vadd.f32 %v6750, 1.0
    %v6759 = vadd.f32 %v6752, 1.0
    %v6760 = vrcp.pop %v6753
    %v6761 = vmul.f32 1.0, %v6760
    %v6762 = vrcp.pop %v6754
    %v6763 = vmul.f32 1.0, %v6762
    %v6764 = vrcp.pop %v6755
    %v6765 = vmul.f32 1.0, %v6764
    %v6766 = vrcp.pop %v6756
    %v6767 = vmul.f32 1.0, %v6766
    %v6768 = vrcp.pop %v6757
    %v6769 = vmul.f32 1.0, %v6768
    %v6770 = vrcp.pop %v6758
    %v6771 = vmul.f32 1.0, %v6770
    %v6772 = vrcp.pop %v6759
    %v6773 = vmul.f32 1.0, %v6772
    %6774 = vst [vmem:[#allocation20] sm:$0xff] %v6761
    %6775 = vst [vmem:[#allocation20 + $0x8] sm:$0xff] %v6763
    %6776 = vst [vmem:[#allocation20 + $0x10] sm:$0xff] %v6765
    %6777 = vst [vmem:[#allocation20 + $0x18] sm:$0xff] %v6767
    %6778 = vst [vmem:[#allocation20 + $0x20] sm:$0xff] %v6769
    %6779 = vst [vmem:[#allocation20 + $0x28] sm:$0xff] %v6771
    %6780 = vst [vmem:[#allocation20 + $0x30] sm:$0xff] %v6773
    // Predicated region
    $region90: #{gerador_forward.1} parent=1 // pred_check
      _
    $region91: #{gerador_forward.1} parent=1 // pred_check_branch
      %6782 = sbr.rel (0) target = $region93
    $region92: #{gerador_forward.1} parent=1 // pred_region
      %s6784 = ssub.s32 896, 896
      %6785 = vsyncadd [#allocation4], %s6784
      %s6787 = sshll.u32 [#allocation20], 4
      %s6788 = int_to_ptr.vmem [resolvable:$true] %s6787
      %6790 = dma.vmem_to_hbm [thread:$0]  %s6788, 896, %s11, [#allocation4]
    $region93: #{gerador_forward.1} parent=1 // pred_fallthru
      _
    // Predicated region
    $region94: #{gerador_forward.1} parent=1 // pred_check
      _
    $region95: #{gerador_forward.1} parent=1 // pred_check_branch
      %6792 = sbr.rel (0) target = $region97
    $region96: #{gerador_forward.1} parent=1 // pred_region
      %6793 = dma.done [#allocation4], 896
    $region97: #{gerador_forward.1} parent=1 // pred_fallthru
      _
    %6794 = vsyncpa [#allocation3], 1
    %6795 = vsyncpa [#allocation6], 1
    %6796 = vsyncpa [#allocation9], 1
    %6797 = vsyncpa [#allocation12], 1
    %6798 = vsyncpa [#allocation15], 1
    %6799 = vsyncpa [#allocation18], 1
    %6800 = vsyncpa [#allocation4], 1

</llo_original>
